<compile_context>
chip_gen: v5e
topology: v5e:2x2
jax: 0.10.0
libtpu: 0.0.40
codegen_flags: <defaults>
</compile_context>

<pallas_src>
import jax
import jax.numpy as jnp
from jax.experimental import pallas as pl
from jax.experimental.pallas import tpu as pltpu

D = 28 * 28          # 784
NUM_CLASSES = 10
NP = 128             # lane-padded logits width
BN_EPS = 1e-5


def _round_up(x, m):
    return ((x + m - 1) // m) * m


def mlp_kernel(x_ref, w1_ref, b1_ref, w2_ref, b2_ref, w3_ref, b3_ref, o_ref):
    # fc1 (+ folded BN1) + ReLU   (dropout1 = identity in eval)
    h = jnp.dot(x_ref[...], w1_ref[...],
                preferred_element_type=jnp.float32) + b1_ref[...]
    h = jnp.maximum(h, 0.0).astype(jnp.bfloat16)

    # fc2 (+ folded BN2) + ReLU   (dropout2 = identity in eval)
    h = jnp.dot(h, w2_ref[...],
                preferred_element_type=jnp.float32) + b2_ref[...]
    h = jnp.maximum(h, 0.0).astype(jnp.bfloat16)

    # fc3 -> lane-padded logits (TM, 128), f32 store
    o_ref[...] = jnp.dot(h, w3_ref[...],
                         preferred_element_type=jnp.float32) + b3_ref[...]


def init_params(key):
    """Deterministic parameter init mirroring the PyTorch module's shapes."""
    ks = jax.random.split(key, 6)

    def linear(kw, kb, fan_in, fan_out):
        bound = 1.0 / jnp.sqrt(fan_in)
        w = jax.random.uniform(kw, (fan_out, fan_in), jnp.float32, -bound, bound)
        b = jax.random.uniform(kb, (fan_out,), jnp.float32, -bound, bound)
        return w, b

    w1, b1 = linear(ks[0], ks[1], D, D)            # fc1: Linear(784, 784)
    w2, b2 = linear(ks[2], ks[3], D, D)            # fc2: Linear(784, 784)
    w3, b3 = linear(ks[4], ks[5], D, NUM_CLASSES)  # fc3: Linear(784, 10)

    bn = lambda n: dict(gamma=jnp.ones((n,), jnp.float32),
                        beta=jnp.zeros((n,), jnp.float32),
                        mean=jnp.zeros((n,), jnp.float32),
                        var=jnp.ones((n,), jnp.float32))
    return dict(w1=w1, b1=b1, bn1=bn(D),
                w2=w2, b2=b2, bn2=bn(D),
                w3=w3, b3=b3)


def _fold_bn(w, b, bn):
    """Fold eval-mode BatchNorm1d + Linear bias into (in,out) weight / bias."""
    s = bn["gamma"] * jax.lax.rsqrt(bn["var"] + BN_EPS)       # (out,)
    w_t = w.T * s[None, :]                                    # (in, out)
    b_f = (b - bn["mean"]) * s + bn["beta"]                   # (out,)
    return w_t, b_f


def mlp_forward(x, p):
    # x.view(-1, 28*28)
    x2 = x.reshape(-1, D).astype(jnp.float32)
    B = x2.shape[0]

    # --- fold BN/bias, pre-transpose, lane-pad fc3 to 128 outputs ---
    w1, b1 = _fold_bn(p["w1"], p["b1"], p["bn1"])
    w2, b2 = _fold_bn(p["w2"], p["b2"], p["bn2"])
    w3 = jnp.zeros((D, NP), jnp.float32).at[:, :NUM_CLASSES].set(p["w3"].T)
    b3 = jnp.zeros((NP,), jnp.float32).at[:NUM_CLASSES].set(p["b3"])

    # bf16 weights/activations, f32 biases (added to f32 accumulators)
    w1b, w2b, w3b = (w.astype(jnp.bfloat16) for w in (w1, w2, w3))
    b1r = b1.reshape(1, D)
    b2r = b2.reshape(1, D)
    b3r = b3.reshape(1, NP)

    # --- batch tiling: row tile TM, pad B up to a multiple of TM ---
    TM = min(256, _round_up(B, 8))
    Bp = _round_up(B, TM)
    xp = jnp.zeros((Bp, D), jnp.bfloat16).at[:B].set(x2.astype(jnp.bfloat16))

    grid = (Bp // TM,)
    out = pl.pallas_call(
        mlp_kernel,
        out_shape=jax.ShapeDtypeStruct((Bp, NP), jnp.float32),
        grid_spec=pltpu.PrefetchScalarGridSpec(
            num_scalar_prefetch=0,
            grid=grid,
            in_specs=[
                pl.BlockSpec((TM, D), lambda i: (i, 0)),    # x tile (pipelined)
                pl.BlockSpec((D, D),  lambda i: (0, 0)),    # w1 (resident)
                pl.BlockSpec((1, D),  lambda i: (0, 0)),    # b1
                pl.BlockSpec((D, D),  lambda i: (0, 0)),    # w2 (resident)
                pl.BlockSpec((1, D),  lambda i: (0, 0)),    # b2
                pl.BlockSpec((D, NP), lambda i: (0, 0)),    # w3 (resident)
                pl.BlockSpec((1, NP), lambda i: (0, 0)),    # b3
            ],
            out_specs=pl.BlockSpec((TM, NP), lambda i: (i, 0)),
        ),
        compiler_params=pltpu.CompilerParams(
            dimension_semantics=("parallel",)),
    )(xp, w1b, b1r, w2b, b2r, w3b, b3r)

    return out[:B, :NUM_CLASSES]


def mlp_reference(x, p):
    """Pure-JAX f32 reference (eval-mode BN, dropout=identity)."""
    h = x.reshape(-1, D).astype(jnp.float32)

    def layer(h, w, b, bn):
        h = h @ w.T + b
        s = bn["gamma"] / jnp.sqrt(bn["var"] + BN_EPS)
        h = (h - bn["mean"]) * s + bn["beta"]
        return jnp.maximum(h, 0.0)

    h = layer(h, p["w1"], p["b1"], p["bn1"])
    h = layer(h, p["w2"], p["b2"], p["bn2"])
    return h @ p["w3"].T + p["b3"]


if __name__ == "__main__":
    key = jax.random.PRNGKey(0)
    k_param, k_x = jax.random.split(key)

    params = init_params(k_param)
    # Small MNIST-like batch: NCHW (B, 1, 28, 28)
    x = jax.random.normal(k_x, (8, 1, 28, 28), dtype=jnp.float32)

    fwd = jax.jit(mlp_forward)
    logits = fwd(x, params)
    jax.block_until_ready(logits)
    assert logits.shape == (8, NUM_CLASSES)

    # Loose tolerance: bf16 weights/activations vs f32 reference.
    ref = mlp_reference(x, params)
    assert jnp.max(jnp.abs(logits - ref)) < 0.2, float(
        jnp.max(jnp.abs(logits - ref)))

    print("KERNEL_OK")
</pallas_src>

<mosaic_0001>
module attributes {stable_mosaic.version = 11 : i64} {
  func.func @mlp_kernel(%arg0: i32, %arg1: memref<8x784xbf16, #tpu.memory_space<vmem>>, %arg2: memref<784x784xbf16, #tpu.memory_space<vmem>>, %arg3: memref<1x784xf32, #tpu.memory_space<vmem>>, %arg4: memref<784x784xbf16, #tpu.memory_space<vmem>>, %arg5: memref<1x784xf32, #tpu.memory_space<vmem>>, %arg6: memref<784x128xbf16, #tpu.memory_space<vmem>>, %arg7: memref<1x128xf32, #tpu.memory_space<vmem>>, %arg8: memref<8x128xf32, #tpu.memory_space<vmem>>) attributes {dimension_semantics = [#tpu.dimension_semantics<parallel>], iteration_bounds = array<i64: 1>, scalar_prefetch = 0 : i64, scratch_operands = 0 : i64, tpu.core_type = #tpu.core_type<tc>, window_params = [{transform_indices = @transform_0, window_bounds = array<i64: 8, 784>}, {pipeline_mode = #tpu.pipeline_mode<synchronous>, transform_indices = @transform_1, window_bounds = array<i64: 784, 784>}, {pipeline_mode = #tpu.pipeline_mode<synchronous>, transform_indices = @transform_2, window_bounds = array<i64: 1, 784>}, {pipeline_mode = #tpu.pipeline_mode<synchronous>, transform_indices = @transform_3, window_bounds = array<i64: 784, 784>}, {pipeline_mode = #tpu.pipeline_mode<synchronous>, transform_indices = @transform_4, window_bounds = array<i64: 1, 784>}, {pipeline_mode = #tpu.pipeline_mode<synchronous>, transform_indices = @transform_5, window_bounds = array<i64: 784, 128>}, {pipeline_mode = #tpu.pipeline_mode<synchronous>, transform_indices = @transform_6, window_bounds = array<i64: 1, 128>}, {transform_indices = @transform_7, window_bounds = array<i64: 8, 128>}]} {
    %c0 = arith.constant 0 : index
    %c0_0 = arith.constant 0 : index
    %0 = vector.load %arg1[%c0, %c0_0] : memref<8x784xbf16, #tpu.memory_space<vmem>>, vector<8x784xbf16>
    %c0_1 = arith.constant 0 : index
    %c0_2 = arith.constant 0 : index
    %1 = vector.load %arg2[%c0_1, %c0_2] : memref<784x784xbf16, #tpu.memory_space<vmem>>, vector<784x784xbf16>
    %cst = arith.constant dense<0.000000e+00> : vector<8x784xf32>
    %2 = tpu.matmul %0, %1, %cst {dimension_numbers = #tpu.dot_dimension_numbers<[1], [0], [0], [1], [0, 0, 1, 1], [], []>} : vector<8x784xbf16>, vector<784x784xbf16>, vector<8x784xf32> -> vector<8x784xf32>
    %c0_3 = arith.constant 0 : index
    %c0_4 = arith.constant 0 : index
    %3 = vector.load %arg3[%c0_3, %c0_4] : memref<1x784xf32, #tpu.memory_space<vmem>>, vector<1x784xf32>
    %4 = vector.broadcast %3 : vector<1x784xf32> to vector<8x784xf32>
    %5 = arith.addf %2, %4 : vector<8x784xf32>
    %cst_5 = arith.constant 0.000000e+00 : f32
    %6 = vector.broadcast %cst_5 : f32 to vector<8x784xf32>
    %7 = arith.maximumf %5, %6 : vector<8x784xf32>
    %8 = arith.truncf %7 : vector<8x784xf32> to vector<8x784xbf16>
    %c0_6 = arith.constant 0 : index
    %c0_7 = arith.constant 0 : index
    %9 = vector.load %arg4[%c0_6, %c0_7] : memref<784x784xbf16, #tpu.memory_space<vmem>>, vector<784x784xbf16>
    %cst_8 = arith.constant dense<0.000000e+00> : vector<8x784xf32>
    %10 = tpu.matmul %8, %9, %cst_8 {dimension_numbers = #tpu.dot_dimension_numbers<[1], [0], [0], [1], [0, 0, 1, 1], [], []>} : vector<8x784xbf16>, vector<784x784xbf16>, vector<8x784xf32> -> vector<8x784xf32>
    %c0_9 = arith.constant 0 : index
    %c0_10 = arith.constant 0 : index
    %11 = vector.load %arg5[%c0_9, %c0_10] : memref<1x784xf32, #tpu.memory_space<vmem>>, vector<1x784xf32>
    %12 = vector.broadcast %11 : vector<1x784xf32> to vector<8x784xf32>
    %13 = arith.addf %10, %12 : vector<8x784xf32>
    %cst_11 = arith.constant 0.000000e+00 : f32
    %14 = vector.broadcast %cst_11 : f32 to vector<8x784xf32>
    %15 = arith.maximumf %13, %14 : vector<8x784xf32>
    %16 = arith.truncf %15 : vector<8x784xf32> to vector<8x784xbf16>
    %c0_12 = arith.constant 0 : index
    %c0_13 = arith.constant 0 : index
    %17 = vector.load %arg6[%c0_12, %c0_13] : memref<784x128xbf16, #tpu.memory_space<vmem>>, vector<784x128xbf16>
    %cst_14 = arith.constant dense<0.000000e+00> : vector<8x128xf32>
    %18 = tpu.matmul %16, %17, %cst_14 {dimension_numbers = #tpu.dot_dimension_numbers<[1], [0], [0], [1], [0, 0, 1, 1], [], []>} : vector<8x784xbf16>, vector<784x128xbf16>, vector<8x128xf32> -> vector<8x128xf32>
    %c0_15 = arith.constant 0 : index
    %c0_16 = arith.constant 0 : index
    %19 = vector.load %arg7[%c0_15, %c0_16] : memref<1x128xf32, #tpu.memory_space<vmem>>, vector<1x128xf32>
    %20 = vector.broadcast %19 : vector<1x128xf32> to vector<8x128xf32>
    %21 = arith.addf %18, %20 : vector<8x128xf32>
    %c0_17 = arith.constant 0 : index
    %c0_18 = arith.constant 0 : index
    %22 = vector.load %arg8[%c0_17, %c0_18] : memref<8x128xf32, #tpu.memory_space<vmem>>, vector<8x128xf32>
    tpu.vector_store %arg8[%c0_17, %c0_18], %21 {strides = array<i32>} : memref<8x128xf32, #tpu.memory_space<vmem>>, vector<8x128xf32>,
    return
  }
  func.func @transform_0(%arg0: i32) -> (i32, i32) {
    %c0_i32 = arith.constant 0 : i32
    %c0_i32_0 = arith.constant 0 : i32
    return %arg0, %c0_i32 : i32, i32
  }
  func.func @transform_1(%arg0: i32) -> (i32, i32) {
    %c0_i32 = arith.constant 0 : i32
    %c0_i32_0 = arith.constant 0 : i32
    %c0_i32_1 = arith.constant 0 : i32
    return %c0_i32, %c0_i32_0 : i32, i32
  }
  func.func @transform_2(%arg0: i32) -> (i32, i32) {
    %c0_i32 = arith.constant 0 : i32
    %c0_i32_0 = arith.constant 0 : i32
    %c0_i32_1 = arith.constant 0 : i32
    return %c0_i32, %c0_i32_0 : i32, i32
  }
  func.func @transform_3(%arg0: i32) -> (i32, i32) {
    %c0_i32 = arith.constant 0 : i32
    %c0_i32_0 = arith.constant 0 : i32
    %c0_i32_1 = arith.constant 0 : i32
    return %c0_i32, %c0_i32_0 : i32, i32
  }
  func.func @transform_4(%arg0: i32) -> (i32, i32) {
    %c0_i32 = arith.constant 0 : i32
    %c0_i32_0 = arith.constant 0 : i32
    %c0_i32_1 = arith.constant 0 : i32
    return %c0_i32, %c0_i32_0 : i32, i32
  }
  func.func @transform_5(%arg0: i32) -> (i32, i32) {
    %c0_i32 = arith.constant 0 : i32
    %c0_i32_0 = arith.constant 0 : i32
    %c0_i32_1 = arith.constant 0 : i32
    return %c0_i32, %c0_i32_0 : i32, i32
  }
  func.func @transform_6(%arg0: i32) -> (i32, i32) {
    %c0_i32 = arith.constant 0 : i32
    %c0_i32_0 = arith.constant 0 : i32
    %c0_i32_1 = arith.constant 0 : i32
    return %c0_i32, %c0_i32_0 : i32, i32
  }
  func.func @transform_7(%arg0: i32) -> (i32, i32) {
    %c0_i32 = arith.constant 0 : i32
    %c0_i32_0 = arith.constant 0 : i32
    return %arg0, %c0_i32 : i32, i32
  }
}

</mosaic_0001>

<llo_original>
// kernel: mlp_forward.1
$region0: #{mlp_forward.1}
  #allocation0 [shape = 'u32[]', space=smem, size = 0x4, offset = 0x4, fixed_abs, tag = 'smem constant byte address 0x4 - core index']
  #allocation1 [shape = 'u32[72,128]{1,0:T(1,128)}', space=vmem, size = 0x9000, scoped, tag = 'internal scratch']
  %s0 = inlined_call_operand.vmem [shape: bf16[8,784], index: 0, kind: input, shape index: {}]
  %s1 = inlined_call_operand.vmem [shape: bf16[784,784], index: 1, kind: input, shape index: {}]
  %s2 = inlined_call_operand.vmem [shape: f32[1,784], index: 2, kind: input, shape index: {}]
  %s3 = inlined_call_operand.vmem [shape: bf16[784,784], index: 3, kind: input, shape index: {}]
  %s4 = inlined_call_operand.vmem [shape: f32[1,784], index: 4, kind: input, shape index: {}]
  %s5 = inlined_call_operand.vmem [shape: bf16[784,128], index: 5, kind: input, shape index: {}]
  %s6 = inlined_call_operand.vmem [shape: f32[1,128], index: 6, kind: input, shape index: {}]
  %s7 = inlined_call_operand.hbm [shape: f32[8,128], index: 7, kind: output, shape index: {}]
  %s8 = sld [smem:[#allocation0]]
  $region38: #{mlp_forward.1} parent=0
    _
  %s10 = ssub.s32 1, %s8
  %s11 = scalar_select 0, %s10, %s8
  $region1: #{mlp_forward.1} parent=0
    #allocation2 [shape = 'u8[4096]{0}', space=vmem, size = 0x1000, scoped, tag = 'output window, operand 0, single buffered']
    #allocation3 [shape = 's32[1]{0}', space=sflag, size = 0x4, scoped, tag = 'scoped memory for mlp_forward.1']
    %12 = vsyncpa [#allocation3], 0
    // Predicated region
    $region2: #{mlp_forward.1} parent=1 // pred_check
      _
    $region3: #{mlp_forward.1} parent=1 // pred_check_branch
      %14 = sbr.rel (0) target = $region5
    $region4: #{mlp_forward.1} parent=1 // pred_region
      _
    $region5: #{mlp_forward.1} parent=1 // pred_fallthru
      _
    // Predicated region
    $region6: #{mlp_forward.1} parent=1 // pred_check
      _
    $region7: #{mlp_forward.1} parent=1 // pred_check_branch
      %16 = sbr.rel (0) target = $region9
    $region8: #{mlp_forward.1} parent=1 // pred_region
      _
    $region9: #{mlp_forward.1} parent=1 // pred_fallthru
      _
    // Predicated region
    $region10: #{mlp_forward.1} parent=1 // pred_check
      _
    $region11: #{mlp_forward.1} parent=1 // pred_check_branch
      %18 = sbr.rel (0) target = $region13
    $region12: #{mlp_forward.1} parent=1 // pred_region
      _
    $region13: #{mlp_forward.1} parent=1 // pred_fallthru
      _
    // Predicated region
    $region14: #{mlp_forward.1} parent=1 // pred_check
      _
    $region15: #{mlp_forward.1} parent=1 // pred_check_branch
      %20 = sbr.rel (0) target = $region17
    $region16: #{mlp_forward.1} parent=1 // pred_region
      _
    $region17: #{mlp_forward.1} parent=1 // pred_fallthru
      _
    // Predicated region
    $region18: #{mlp_forward.1} parent=1 // pred_check
      _
    $region19: #{mlp_forward.1} parent=1 // pred_check_branch
      %22 = sbr.rel (0) target = $region21
    $region20: #{mlp_forward.1} parent=1 // pred_region
      _
    $region21: #{mlp_forward.1} parent=1 // pred_fallthru
      _
    // Predicated region
    $region22: #{mlp_forward.1} parent=1 // pred_check
      _
    $region23: #{mlp_forward.1} parent=1 // pred_check_branch
      %24 = sbr.rel (0) target = $region25
    $region24: #{mlp_forward.1} parent=1 // pred_region
      _
    $region25: #{mlp_forward.1} parent=1 // pred_fallthru
      _
    // Predicated region
    $region26: #{mlp_forward.1} parent=1 // pred_check
      _
    $region27: #{mlp_forward.1} parent=1 // pred_check_branch
      %26 = sbr.rel (0) target = $region29
    $region28: #{mlp_forward.1} parent=1 // pred_region
      _
    $region29: #{mlp_forward.1} parent=1 // pred_fallthru
      _
    %v28 = vld [vmem:[%s0] sm:$0xff]
    %v29 = vld [vmem:[%s0 + $0x8] sm:$0xff]
    %v30 = vld [vmem:[%s0 + $0x10] sm:$0xff]
    %v31 = vld [vmem:[%s0 + $0x18] sm:$0xf]
    %v32 = vld [vmem:[%s1] sm:$0xff]
    %v33 = vld [vmem:[%s1 + $0x8] sm:$0xff]
    %v34 = vld [vmem:[%s1 + $0x10] sm:$0xff]
    %v35 = vld [vmem:[%s1 + $0x18] sm:$0xf]
    %v36 = vld [vmem:[%s1 + $0x1c] sm:$0xff]
    %v37 = vld [vmem:[%s1 + $0x24] sm:$0xff]
    %v38 = vld [vmem:[%s1 + $0x2c] sm:$0xff]
    %v39 = vld [vmem:[%s1 + $0x34] sm:$0xf]
    %v40 = vld [vmem:[%s1 + $0x38] sm:$0xff]
    %v41 = vld [vmem:[%s1 + $0x40] sm:$0xff]
    %v42 = vld [vmem:[%s1 + $0x48] sm:$0xff]
    %v43 = vld [vmem:[%s1 + $0x50] sm:$0xf]
    %v44 = vld [vmem:[%s1 + $0x54] sm:$0xff]
    %v45 = vld [vmem:[%s1 + $0x5c] sm:$0xff]
    %v46 = vld [vmem:[%s1 + $0x64] sm:$0xff]
    %v47 = vld [vmem:[%s1 + $0x6c] sm:$0xf]
    %v48 = vld [vmem:[%s1 + $0x70] sm:$0xff]
    %v49 = vld [vmem:[%s1 + $0x78] sm:$0xff]
    %v50 = vld [vmem:[%s1 + $0x80] sm:$0xff]
    %v51 = vld [vmem:[%s1 + $0x88] sm:$0xf]
    %v52 = vld [vmem:[%s1 + $0x8c] sm:$0xff]
    %v53 = vld [vmem:[%s1 + $0x94] sm:$0xff]
    %v54 = vld [vmem:[%s1 + $0x9c] sm:$0xff]
    %v55 = vld [vmem:[%s1 + $0xa4] sm:$0xf]
    %v56 = vld [vmem:[%s1 + $0xa8] sm:$0xff]
    %v57 = vld [vmem:[%s1 + $0xb0] sm:$0xff]
    %v58 = vld [vmem:[%s1 + $0xb8] sm:$0xff]
    %v59 = vld [vmem:[%s1 + $0xc0] sm:$0xf]
    %v60 = vld [vmem:[%s1 + $0xc4] sm:$0xff]
    %v61 = vld [vmem:[%s1 + $0xcc] sm:$0xff]
    %v62 = vld [vmem:[%s1 + $0xd4] sm:$0xff]
    %v63 = vld [vmem:[%s1 + $0xdc] sm:$0xf]
    %v64 = vld [vmem:[%s1 + $0xe0] sm:$0xff]
    %v65 = vld [vmem:[%s1 + $0xe8] sm:$0xff]
    %v66 = vld [vmem:[%s1 + $0xf0] sm:$0xff]
    %v67 = vld [vmem:[%s1 + $0xf8] sm:$0xf]
    %v68 = vld [vmem:[%s1 + $0xfc] sm:$0xff]
    %v69 = vld [vmem:[%s1 + $0x104] sm:$0xff]
    %v70 = vld [vmem:[%s1 + $0x10c] sm:$0xff]
    %v71 = vld [vmem:[%s1 + $0x114] sm:$0xf]
    %v72 = vld [vmem:[%s1 + $0x118] sm:$0xff]
    %v73 = vld [vmem:[%s1 + $0x120] sm:$0xff]
    %v74 = vld [vmem:[%s1 + $0x128] sm:$0xff]
    %v75 = vld [vmem:[%s1 + $0x130] sm:$0xf]
    %v76 = vld [vmem:[%s1 + $0x134] sm:$0xff]
    %v77 = vld [vmem:[%s1 + $0x13c] sm:$0xff]
    %v78 = vld [vmem:[%s1 + $0x144] sm:$0xff]
    %v79 = vld [vmem:[%s1 + $0x14c] sm:$0xf]
    %v80 = vld [vmem:[%s1 + $0x150] sm:$0xff]
    %v81 = vld [vmem:[%s1 + $0x158] sm:$0xff]
    %v82 = vld [vmem:[%s1 + $0x160] sm:$0xff]
    %v83 = vld [vmem:[%s1 + $0x168] sm:$0xf]
    %v84 = vld [vmem:[%s1 + $0x16c] sm:$0xff]
    %v85 = vld [vmem:[%s1 + $0x174] sm:$0xff]
    %v86 = vld [vmem:[%s1 + $0x17c] sm:$0xff]
    %v87 = vld [vmem:[%s1 + $0x184] sm:$0xf]
    %v88 = vld [vmem:[%s1 + $0x188] sm:$0xff]
    %v89 = vld [vmem:[%s1 + $0x190] sm:$0xff]
    %v90 = vld [vmem:[%s1 + $0x198] sm:$0xff]
    %v91 = vld [vmem:[%s1 + $0x1a0] sm:$0xf]
    %v92 = vld [vmem:[%s1 + $0x1a4] sm:$0xff]
    %v93 = vld [vmem:[%s1 + $0x1ac] sm:$0xff]
    %v94 = vld [vmem:[%s1 + $0x1b4] sm:$0xff]
    %v95 = vld [vmem:[%s1 + $0x1bc] sm:$0xf]
    %v96 = vld [vmem:[%s1 + $0x1c0] sm:$0xff]
    %v97 = vld [vmem:[%s1 + $0x1c8] sm:$0xff]
    %v98 = vld [vmem:[%s1 + $0x1d0] sm:$0xff]
    %v99 = vld [vmem:[%s1 + $0x1d8] sm:$0xf]
    %v100 = vld [vmem:[%s1 + $0x1dc] sm:$0xff]
    %v101 = vld [vmem:[%s1 + $0x1e4] sm:$0xff]
    %v102 = vld [vmem:[%s1 + $0x1ec] sm:$0xff]
    %v103 = vld [vmem:[%s1 + $0x1f4] sm:$0xf]
    %v104 = vld [vmem:[%s1 + $0x1f8] sm:$0xff]
    %v105 = vld [vmem:[%s1 + $0x200] sm:$0xff]
    %v106 = vld [vmem:[%s1 + $0x208] sm:$0xff]
    %v107 = vld [vmem:[%s1 + $0x210] sm:$0xf]
    %v108 = vld [vmem:[%s1 + $0x214] sm:$0xff]
    %v109 = vld [vmem:[%s1 + $0x21c] sm:$0xff]
    %v110 = vld [vmem:[%s1 + $0x224] sm:$0xff]
    %v111 = vld [vmem:[%s1 + $0x22c] sm:$0xf]
    %v112 = vld [vmem:[%s1 + $0x230] sm:$0xff]
    %v113 = vld [vmem:[%s1 + $0x238] sm:$0xff]
    %v114 = vld [vmem:[%s1 + $0x240] sm:$0xff]
    %v115 = vld [vmem:[%s1 + $0x248] sm:$0xf]
    %v116 = vld [vmem:[%s1 + $0x24c] sm:$0xff]
    %v117 = vld [vmem:[%s1 + $0x254] sm:$0xff]
    %v118 = vld [vmem:[%s1 + $0x25c] sm:$0xff]
    %v119 = vld [vmem:[%s1 + $0x264] sm:$0xf]
    %v120 = vld [vmem:[%s1 + $0x268] sm:$0xff]
    %v121 = vld [vmem:[%s1 + $0x270] sm:$0xff]
    %v122 = vld [vmem:[%s1 + $0x278] sm:$0xff]
    %v123 = vld [vmem:[%s1 + $0x280] sm:$0xf]
    %v124 = vld [vmem:[%s1 + $0x284] sm:$0xff]
    %v125 = vld [vmem:[%s1 + $0x28c] sm:$0xff]
    %v126 = vld [vmem:[%s1 + $0x294] sm:$0xff]
    %v127 = vld [vmem:[%s1 + $0x29c] sm:$0xf]
    %v128 = vld [vmem:[%s1 + $0x2a0] sm:$0xff]
    %v129 = vld [vmem:[%s1 + $0x2a8] sm:$0xff]
    %v130 = vld [vmem:[%s1 + $0x2b0] sm:$0xff]
    %v131 = vld [vmem:[%s1 + $0x2b8] sm:$0xf]
    %v132 = vld [vmem:[%s1 + $0x2bc] sm:$0xff]
    %v133 = vld [vmem:[%s1 + $0x2c4] sm:$0xff]
    %v134 = vld [vmem:[%s1 + $0x2cc] sm:$0xff]
    %v135 = vld [vmem:[%s1 + $0x2d4] sm:$0xf]
    %v136 = vld [vmem:[%s1 + $0x2d8] sm:$0xff]
    %v137 = vld [vmem:[%s1 + $0x2e0] sm:$0xff]
    %v138 = vld [vmem:[%s1 + $0x2e8] sm:$0xff]
    %v139 = vld [vmem:[%s1 + $0x2f0] sm:$0xf]
    %v140 = vld [vmem:[%s1 + $0x2f4] sm:$0xff]
    %v141 = vld [vmem:[%s1 + $0x2fc] sm:$0xff]
    %v142 = vld [vmem:[%s1 + $0x304] sm:$0xff]
    %v143 = vld [vmem:[%s1 + $0x30c] sm:$0xf]
    %v144 = vld [vmem:[%s1 + $0x310] sm:$0xff]
    %v145 = vld [vmem:[%s1 + $0x318] sm:$0xff]
    %v146 = vld [vmem:[%s1 + $0x320] sm:$0xff]
    %v147 = vld [vmem:[%s1 + $0x328] sm:$0xf]
    %v148 = vld [vmem:[%s1 + $0x32c] sm:$0xff]
    %v149 = vld [vmem:[%s1 + $0x334] sm:$0xff]
    %v150 = vld [vmem:[%s1 + $0x33c] sm:$0xff]
    %v151 = vld [vmem:[%s1 + $0x344] sm:$0xf]
    %v152 = vld [vmem:[%s1 + $0x348] sm:$0xff]
    %v153 = vld [vmem:[%s1 + $0x350] sm:$0xff]
    %v154 = vld [vmem:[%s1 + $0x358] sm:$0xff]
    %v155 = vld [vmem:[%s1 + $0x360] sm:$0xf]
    %v156 = vld [vmem:[%s1 + $0x364] sm:$0xff]
    %v157 = vld [vmem:[%s1 + $0x36c] sm:$0xff]
    %v158 = vld [vmem:[%s1 + $0x374] sm:$0xff]
    %v159 = vld [vmem:[%s1 + $0x37c] sm:$0xf]
    %v160 = vld [vmem:[%s1 + $0x380] sm:$0xff]
    %v161 = vld [vmem:[%s1 + $0x388] sm:$0xff]
    %v162 = vld [vmem:[%s1 + $0x390] sm:$0xff]
    %v163 = vld [vmem:[%s1 + $0x398] sm:$0xf]
    %v164 = vld [vmem:[%s1 + $0x39c] sm:$0xff]
    %v165 = vld [vmem:[%s1 + $0x3a4] sm:$0xff]
    %v166 = vld [vmem:[%s1 + $0x3ac] sm:$0xff]
    %v167 = vld [vmem:[%s1 + $0x3b4] sm:$0xf]
    %v168 = vld [vmem:[%s1 + $0x3b8] sm:$0xff]
    %v169 = vld [vmem:[%s1 + $0x3c0] sm:$0xff]
    %v170 = vld [vmem:[%s1 + $0x3c8] sm:$0xff]
    %v171 = vld [vmem:[%s1 + $0x3d0] sm:$0xf]
    %v172 = vld [vmem:[%s1 + $0x3d4] sm:$0xff]
    %v173 = vld [vmem:[%s1 + $0x3dc] sm:$0xff]
    %v174 = vld [vmem:[%s1 + $0x3e4] sm:$0xff]
    %v175 = vld [vmem:[%s1 + $0x3ec] sm:$0xf]
    %v176 = vld [vmem:[%s1 + $0x3f0] sm:$0xff]
    %v177 = vld [vmem:[%s1 + $0x3f8] sm:$0xff]
    %v178 = vld [vmem:[%s1 + $0x400] sm:$0xff]
    %v179 = vld [vmem:[%s1 + $0x408] sm:$0xf]
    %v180 = vld [vmem:[%s1 + $0x40c] sm:$0xff]
    %v181 = vld [vmem:[%s1 + $0x414] sm:$0xff]
    %v182 = vld [vmem:[%s1 + $0x41c] sm:$0xff]
    %v183 = vld [vmem:[%s1 + $0x424] sm:$0xf]
    %v184 = vld [vmem:[%s1 + $0x428] sm:$0xff]
    %v185 = vld [vmem:[%s1 + $0x430] sm:$0xff]
    %v186 = vld [vmem:[%s1 + $0x438] sm:$0xff]
    %v187 = vld [vmem:[%s1 + $0x440] sm:$0xf]
    %v188 = vld [vmem:[%s1 + $0x444] sm:$0xff]
    %v189 = vld [vmem:[%s1 + $0x44c] sm:$0xff]
    %v190 = vld [vmem:[%s1 + $0x454] sm:$0xff]
    %v191 = vld [vmem:[%s1 + $0x45c] sm:$0xf]
    %v192 = vld [vmem:[%s1 + $0x460] sm:$0xff]
    %v193 = vld [vmem:[%s1 + $0x468] sm:$0xff]
    %v194 = vld [vmem:[%s1 + $0x470] sm:$0xff]
    %v195 = vld [vmem:[%s1 + $0x478] sm:$0xf]
    %v196 = vld [vmem:[%s1 + $0x47c] sm:$0xff]
    %v197 = vld [vmem:[%s1 + $0x484] sm:$0xff]
    %v198 = vld [vmem:[%s1 + $0x48c] sm:$0xff]
    %v199 = vld [vmem:[%s1 + $0x494] sm:$0xf]
    %v200 = vld [vmem:[%s1 + $0x498] sm:$0xff]
    %v201 = vld [vmem:[%s1 + $0x4a0] sm:$0xff]
    %v202 = vld [vmem:[%s1 + $0x4a8] sm:$0xff]
    %v203 = vld [vmem:[%s1 + $0x4b0] sm:$0xf]
    %v204 = vld [vmem:[%s1 + $0x4b4] sm:$0xff]
    %v205 = vld [vmem:[%s1 + $0x4bc] sm:$0xff]
    %v206 = vld [vmem:[%s1 + $0x4c4] sm:$0xff]
    %v207 = vld [vmem:[%s1 + $0x4cc] sm:$0xf]
    %v208 = vld [vmem:[%s1 + $0x4d0] sm:$0xff]
    %v209 = vld [vmem:[%s1 + $0x4d8] sm:$0xff]
    %v210 = vld [vmem:[%s1 + $0x4e0] sm:$0xff]
    %v211 = vld [vmem:[%s1 + $0x4e8] sm:$0xf]
    %v212 = vld [vmem:[%s1 + $0x4ec] sm:$0xff]
    %v213 = vld [vmem:[%s1 + $0x4f4] sm:$0xff]
    %v214 = vld [vmem:[%s1 + $0x4fc] sm:$0xff]
    %v215 = vld [vmem:[%s1 + $0x504] sm:$0xf]
    %v216 = vld [vmem:[%s1 + $0x508] sm:$0xff]
    %v217 = vld [vmem:[%s1 + $0x510] sm:$0xff]
    %v218 = vld [vmem:[%s1 + $0x518] sm:$0xff]
    %v219 = vld [vmem:[%s1 + $0x520] sm:$0xf]
    %v220 = vld [vmem:[%s1 + $0x524] sm:$0xff]
    %v221 = vld [vmem:[%s1 + $0x52c] sm:$0xff]
    %v222 = vld [vmem:[%s1 + $0x534] sm:$0xff]
    %v223 = vld [vmem:[%s1 + $0x53c] sm:$0xf]
    %v224 = vld [vmem:[%s1 + $0x540] sm:$0xff]
    %v225 = vld [vmem:[%s1 + $0x548] sm:$0xff]
    %v226 = vld [vmem:[%s1 + $0x550] sm:$0xff]
    %v227 = vld [vmem:[%s1 + $0x558] sm:$0xf]
    %v228 = vld [vmem:[%s1 + $0x55c] sm:$0xff]
    %v229 = vld [vmem:[%s1 + $0x564] sm:$0xff]
    %v230 = vld [vmem:[%s1 + $0x56c] sm:$0xff]
    %v231 = vld [vmem:[%s1 + $0x574] sm:$0xf]
    %v232 = vld [vmem:[%s1 + $0x578] sm:$0xff]
    %v233 = vld [vmem:[%s1 + $0x580] sm:$0xff]
    %v234 = vld [vmem:[%s1 + $0x588] sm:$0xff]
    %v235 = vld [vmem:[%s1 + $0x590] sm:$0xf]
    %v236 = vld [vmem:[%s1 + $0x594] sm:$0xff]
    %v237 = vld [vmem:[%s1 + $0x59c] sm:$0xff]
    %v238 = vld [vmem:[%s1 + $0x5a4] sm:$0xff]
    %v239 = vld [vmem:[%s1 + $0x5ac] sm:$0xf]
    %v240 = vld [vmem:[%s1 + $0x5b0] sm:$0xff]
    %v241 = vld [vmem:[%s1 + $0x5b8] sm:$0xff]
    %v242 = vld [vmem:[%s1 + $0x5c0] sm:$0xff]
    %v243 = vld [vmem:[%s1 + $0x5c8] sm:$0xf]
    %v244 = vld [vmem:[%s1 + $0x5cc] sm:$0xff]
    %v245 = vld [vmem:[%s1 + $0x5d4] sm:$0xff]
    %v246 = vld [vmem:[%s1 + $0x5dc] sm:$0xff]
    %v247 = vld [vmem:[%s1 + $0x5e4] sm:$0xf]
    %v248 = vld [vmem:[%s1 + $0x5e8] sm:$0xff]
    %v249 = vld [vmem:[%s1 + $0x5f0] sm:$0xff]
    %v250 = vld [vmem:[%s1 + $0x5f8] sm:$0xff]
    %v251 = vld [vmem:[%s1 + $0x600] sm:$0xf]
    %v252 = vld [vmem:[%s1 + $0x604] sm:$0xff]
    %v253 = vld [vmem:[%s1 + $0x60c] sm:$0xff]
    %v254 = vld [vmem:[%s1 + $0x614] sm:$0xff]
    %v255 = vld [vmem:[%s1 + $0x61c] sm:$0xf]
    %v256 = vld [vmem:[%s1 + $0x620] sm:$0xff]
    %v257 = vld [vmem:[%s1 + $0x628] sm:$0xff]
    %v258 = vld [vmem:[%s1 + $0x630] sm:$0xff]
    %v259 = vld [vmem:[%s1 + $0x638] sm:$0xf]
    %v260 = vld [vmem:[%s1 + $0x63c] sm:$0xff]
    %v261 = vld [vmem:[%s1 + $0x644] sm:$0xff]
    %v262 = vld [vmem:[%s1 + $0x64c] sm:$0xff]
    %v263 = vld [vmem:[%s1 + $0x654] sm:$0xf]
    %v264 = vld [vmem:[%s1 + $0x658] sm:$0xff]
    %v265 = vld [vmem:[%s1 + $0x660] sm:$0xff]
    %v266 = vld [vmem:[%s1 + $0x668] sm:$0xff]
    %v267 = vld [vmem:[%s1 + $0x670] sm:$0xf]
    %v268 = vld [vmem:[%s1 + $0x674] sm:$0xff]
    %v269 = vld [vmem:[%s1 + $0x67c] sm:$0xff]
    %v270 = vld [vmem:[%s1 + $0x684] sm:$0xff]
    %v271 = vld [vmem:[%s1 + $0x68c] sm:$0xf]
    %v272 = vld [vmem:[%s1 + $0x690] sm:$0xff]
    %v273 = vld [vmem:[%s1 + $0x698] sm:$0xff]
    %v274 = vld [vmem:[%s1 + $0x6a0] sm:$0xff]
    %v275 = vld [vmem:[%s1 + $0x6a8] sm:$0xf]
    %v276 = vld [vmem:[%s1 + $0x6ac] sm:$0xff]
    %v277 = vld [vmem:[%s1 + $0x6b4] sm:$0xff]
    %v278 = vld [vmem:[%s1 + $0x6bc] sm:$0xff]
    %v279 = vld [vmem:[%s1 + $0x6c4] sm:$0xf]
    %v280 = vld [vmem:[%s1 + $0x6c8] sm:$0xff]
    %v281 = vld [vmem:[%s1 + $0x6d0] sm:$0xff]
    %v282 = vld [vmem:[%s1 + $0x6d8] sm:$0xff]
    %v283 = vld [vmem:[%s1 + $0x6e0] sm:$0xf]
    %v284 = vld [vmem:[%s1 + $0x6e4] sm:$0xff]
    %v285 = vld [vmem:[%s1 + $0x6ec] sm:$0xff]
    %v286 = vld [vmem:[%s1 + $0x6f4] sm:$0xff]
    %v287 = vld [vmem:[%s1 + $0x6fc] sm:$0xf]
    %v288 = vld [vmem:[%s1 + $0x700] sm:$0xff]
    %v289 = vld [vmem:[%s1 + $0x708] sm:$0xff]
    %v290 = vld [vmem:[%s1 + $0x710] sm:$0xff]
    %v291 = vld [vmem:[%s1 + $0x718] sm:$0xf]
    %v292 = vld [vmem:[%s1 + $0x71c] sm:$0xff]
    %v293 = vld [vmem:[%s1 + $0x724] sm:$0xff]
    %v294 = vld [vmem:[%s1 + $0x72c] sm:$0xff]
    %v295 = vld [vmem:[%s1 + $0x734] sm:$0xf]
    %v296 = vld [vmem:[%s1 + $0x738] sm:$0xff]
    %v297 = vld [vmem:[%s1 + $0x740] sm:$0xff]
    %v298 = vld [vmem:[%s1 + $0x748] sm:$0xff]
    %v299 = vld [vmem:[%s1 + $0x750] sm:$0xf]
    %v300 = vld [vmem:[%s1 + $0x754] sm:$0xff]
    %v301 = vld [vmem:[%s1 + $0x75c] sm:$0xff]
    %v302 = vld [vmem:[%s1 + $0x764] sm:$0xff]
    %v303 = vld [vmem:[%s1 + $0x76c] sm:$0xf]
    %v304 = vld [vmem:[%s1 + $0x770] sm:$0xff]
    %v305 = vld [vmem:[%s1 + $0x778] sm:$0xff]
    %v306 = vld [vmem:[%s1 + $0x780] sm:$0xff]
    %v307 = vld [vmem:[%s1 + $0x788] sm:$0xf]
    %v308 = vld [vmem:[%s1 + $0x78c] sm:$0xff]
    %v309 = vld [vmem:[%s1 + $0x794] sm:$0xff]
    %v310 = vld [vmem:[%s1 + $0x79c] sm:$0xff]
    %v311 = vld [vmem:[%s1 + $0x7a4] sm:$0xf]
    %v312 = vld [vmem:[%s1 + $0x7a8] sm:$0xff]
    %v313 = vld [vmem:[%s1 + $0x7b0] sm:$0xff]
    %v314 = vld [vmem:[%s1 + $0x7b8] sm:$0xff]
    %v315 = vld [vmem:[%s1 + $0x7c0] sm:$0xf]
    %v316 = vld [vmem:[%s1 + $0x7c4] sm:$0xff]
    %v317 = vld [vmem:[%s1 + $0x7cc] sm:$0xff]
    %v318 = vld [vmem:[%s1 + $0x7d4] sm:$0xff]
    %v319 = vld [vmem:[%s1 + $0x7dc] sm:$0xf]
    %v320 = vld [vmem:[%s1 + $0x7e0] sm:$0xff]
    %v321 = vld [vmem:[%s1 + $0x7e8] sm:$0xff]
    %v322 = vld [vmem:[%s1 + $0x7f0] sm:$0xff]
    %v323 = vld [vmem:[%s1 + $0x7f8] sm:$0xf]
    %v324 = vld [vmem:[%s1 + $0x7fc] sm:$0xff]
    %v325 = vld [vmem:[%s1 + $0x804] sm:$0xff]
    %v326 = vld [vmem:[%s1 + $0x80c] sm:$0xff]
    %v327 = vld [vmem:[%s1 + $0x814] sm:$0xf]
    %v328 = vld [vmem:[%s1 + $0x818] sm:$0xff]
    %v329 = vld [vmem:[%s1 + $0x820] sm:$0xff]
    %v330 = vld [vmem:[%s1 + $0x828] sm:$0xff]
    %v331 = vld [vmem:[%s1 + $0x830] sm:$0xf]
    %v332 = vld [vmem:[%s1 + $0x834] sm:$0xff]
    %v333 = vld [vmem:[%s1 + $0x83c] sm:$0xff]
    %v334 = vld [vmem:[%s1 + $0x844] sm:$0xff]
    %v335 = vld [vmem:[%s1 + $0x84c] sm:$0xf]
    %v336 = vld [vmem:[%s1 + $0x850] sm:$0xff]
    %v337 = vld [vmem:[%s1 + $0x858] sm:$0xff]
    %v338 = vld [vmem:[%s1 + $0x860] sm:$0xff]
    %v339 = vld [vmem:[%s1 + $0x868] sm:$0xf]
    %v340 = vld [vmem:[%s1 + $0x86c] sm:$0xff]
    %v341 = vld [vmem:[%s1 + $0x874] sm:$0xff]
    %v342 = vld [vmem:[%s1 + $0x87c] sm:$0xff]
    %v343 = vld [vmem:[%s1 + $0x884] sm:$0xf]
    %v344 = vld [vmem:[%s1 + $0x888] sm:$0xff]
    %v345 = vld [vmem:[%s1 + $0x890] sm:$0xff]
    %v346 = vld [vmem:[%s1 + $0x898] sm:$0xff]
    %v347 = vld [vmem:[%s1 + $0x8a0] sm:$0xf]
    %v348 = vld [vmem:[%s1 + $0x8a4] sm:$0xff]
    %v349 = vld [vmem:[%s1 + $0x8ac] sm:$0xff]
    %v350 = vld [vmem:[%s1 + $0x8b4] sm:$0xff]
    %v351 = vld [vmem:[%s1 + $0x8bc] sm:$0xf]
    %v352 = vld [vmem:[%s1 + $0x8c0] sm:$0xff]
    %v353 = vld [vmem:[%s1 + $0x8c8] sm:$0xff]
    %v354 = vld [vmem:[%s1 + $0x8d0] sm:$0xff]
    %v355 = vld [vmem:[%s1 + $0x8d8] sm:$0xf]
    %v356 = vld [vmem:[%s1 + $0x8dc] sm:$0xff]
    %v357 = vld [vmem:[%s1 + $0x8e4] sm:$0xff]
    %v358 = vld [vmem:[%s1 + $0x8ec] sm:$0xff]
    %v359 = vld [vmem:[%s1 + $0x8f4] sm:$0xf]
    %v360 = vld [vmem:[%s1 + $0x8f8] sm:$0xff]
    %v361 = vld [vmem:[%s1 + $0x900] sm:$0xff]
    %v362 = vld [vmem:[%s1 + $0x908] sm:$0xff]
    %v363 = vld [vmem:[%s1 + $0x910] sm:$0xf]
    %v364 = vld [vmem:[%s1 + $0x914] sm:$0xff]
    %v365 = vld [vmem:[%s1 + $0x91c] sm:$0xff]
    %v366 = vld [vmem:[%s1 + $0x924] sm:$0xff]
    %v367 = vld [vmem:[%s1 + $0x92c] sm:$0xf]
    %v368 = vld [vmem:[%s1 + $0x930] sm:$0xff]
    %v369 = vld [vmem:[%s1 + $0x938] sm:$0xff]
    %v370 = vld [vmem:[%s1 + $0x940] sm:$0xff]
    %v371 = vld [vmem:[%s1 + $0x948] sm:$0xf]
    %v372 = vld [vmem:[%s1 + $0x94c] sm:$0xff]
    %v373 = vld [vmem:[%s1 + $0x954] sm:$0xff]
    %v374 = vld [vmem:[%s1 + $0x95c] sm:$0xff]
    %v375 = vld [vmem:[%s1 + $0x964] sm:$0xf]
    %v376 = vld [vmem:[%s1 + $0x968] sm:$0xff]
    %v377 = vld [vmem:[%s1 + $0x970] sm:$0xff]
    %v378 = vld [vmem:[%s1 + $0x978] sm:$0xff]
    %v379 = vld [vmem:[%s1 + $0x980] sm:$0xf]
    %v380 = vld [vmem:[%s1 + $0x984] sm:$0xff]
    %v381 = vld [vmem:[%s1 + $0x98c] sm:$0xff]
    %v382 = vld [vmem:[%s1 + $0x994] sm:$0xff]
    %v383 = vld [vmem:[%s1 + $0x99c] sm:$0xf]
    %v384 = vld [vmem:[%s1 + $0x9a0] sm:$0xff]
    %v385 = vld [vmem:[%s1 + $0x9a8] sm:$0xff]
    %v386 = vld [vmem:[%s1 + $0x9b0] sm:$0xff]
    %v387 = vld [vmem:[%s1 + $0x9b8] sm:$0xf]
    %v388 = vld [vmem:[%s1 + $0x9bc] sm:$0xff]
    %v389 = vld [vmem:[%s1 + $0x9c4] sm:$0xff]
    %v390 = vld [vmem:[%s1 + $0x9cc] sm:$0xff]
    %v391 = vld [vmem:[%s1 + $0x9d4] sm:$0xf]
    %v392 = vld [vmem:[%s1 + $0x9d8] sm:$0xff]
    %v393 = vld [vmem:[%s1 + $0x9e0] sm:$0xff]
    %v394 = vld [vmem:[%s1 + $0x9e8] sm:$0xff]
    %v395 = vld [vmem:[%s1 + $0x9f0] sm:$0xf]
    %v396 = vld [vmem:[%s1 + $0x9f4] sm:$0xff]
    %v397 = vld [vmem:[%s1 + $0x9fc] sm:$0xff]
    %v398 = vld [vmem:[%s1 + $0xa04] sm:$0xff]
    %v399 = vld [vmem:[%s1 + $0xa0c] sm:$0xf]
    %v400 = vld [vmem:[%s1 + $0xa10] sm:$0xff]
    %v401 = vld [vmem:[%s1 + $0xa18] sm:$0xff]
    %v402 = vld [vmem:[%s1 + $0xa20] sm:$0xff]
    %v403 = vld [vmem:[%s1 + $0xa28] sm:$0xf]
    %v404 = vld [vmem:[%s1 + $0xa2c] sm:$0xff]
    %v405 = vld [vmem:[%s1 + $0xa34] sm:$0xff]
    %v406 = vld [vmem:[%s1 + $0xa3c] sm:$0xff]
    %v407 = vld [vmem:[%s1 + $0xa44] sm:$0xf]
    %v408 = vld [vmem:[%s1 + $0xa48] sm:$0xff]
    %v409 = vld [vmem:[%s1 + $0xa50] sm:$0xff]
    %v410 = vld [vmem:[%s1 + $0xa58] sm:$0xff]
    %v411 = vld [vmem:[%s1 + $0xa60] sm:$0xf]
    %v412 = vld [vmem:[%s1 + $0xa64] sm:$0xff]
    %v413 = vld [vmem:[%s1 + $0xa6c] sm:$0xff]
    %v414 = vld [vmem:[%s1 + $0xa74] sm:$0xff]
    %v415 = vld [vmem:[%s1 + $0xa7c] sm:$0xf]
    %v416 = vld [vmem:[%s1 + $0xa80] sm:$0xff]
    %v417 = vld [vmem:[%s1 + $0xa88] sm:$0xff]
    %v418 = vld [vmem:[%s1 + $0xa90] sm:$0xff]
    %v419 = vld [vmem:[%s1 + $0xa98] sm:$0xf]
    %v420 = vld [vmem:[%s1 + $0xa9c] sm:$0xff]
    %v421 = vld [vmem:[%s1 + $0xaa4] sm:$0xff]
    %v422 = vld [vmem:[%s1 + $0xaac] sm:$0xff]
    %v423 = vld [vmem:[%s1 + $0xab4] sm:$0xf]
    %v424 = vld [vmem:[%s2] sm:$0x7f]
    %v426 = vperm.slane %v424, 0
    %v427 = vperm.slane %v424, 1
    %v428 = vperm.slane %v424, 2
    %v429 = vperm.slane %v424, 3
    %v430 = vperm.slane %v424, 4
    %v431 = vperm.slane %v424, 5
    %v432 = vperm.slane %v424, 6
    %v444 = vunpack.c.l.b16 %v28
    %v445 = vunpack.c.h.b16 %v28
    %v446 = vunpack.c.l.b16 %v29
    %v447 = vunpack.c.h.b16 %v29
    %v448 = vunpack.c.l.b16 %v30
    %v449 = vunpack.c.h.b16 %v30
    %v450 = vunpack.c.l.b16 %v31
    %v451 = vpack.c.b16 %v444, %v444
    %v452 = vpack.c.b16 %v445, %v445
    %v453 = vpack.c.b16 %v446, %v446
    %v454 = vpack.c.b16 %v447, %v447
    %v455 = vpack.c.b16 %v448, %v448
    %v456 = vpack.c.b16 %v449, %v449
    %v457 = vpack.c.b16 %v450, %v450
    %v856 = vunpack.c.l.b16 %v32
    %v857 = vunpack.c.h.b16 %v32
    %v858 = vunpack.c.l.b16 %v33
    %v859 = vunpack.c.h.b16 %v33
    %v860 = vunpack.c.l.b16 %v34
    %v861 = vunpack.c.h.b16 %v34
    %v862 = vunpack.c.l.b16 %v35
    %v863 = vunpack.c.l.b16 %v36
    %v864 = vunpack.c.h.b16 %v36
    %v865 = vunpack.c.l.b16 %v37
    %v866 = vunpack.c.h.b16 %v37
    %v867 = vunpack.c.l.b16 %v38
    %v868 = vunpack.c.h.b16 %v38
    %v869 = vunpack.c.l.b16 %v39
    %v870 = vunpack.c.l.b16 %v40
    %v871 = vunpack.c.h.b16 %v40
    %v872 = vunpack.c.l.b16 %v41
    %v873 = vunpack.c.h.b16 %v41
    %v874 = vunpack.c.l.b16 %v42
    %v875 = vunpack.c.h.b16 %v42
    %v876 = vunpack.c.l.b16 %v43
    %v877 = vunpack.c.l.b16 %v44
    %v878 = vunpack.c.h.b16 %v44
    %v879 = vunpack.c.l.b16 %v45
    %v880 = vunpack.c.h.b16 %v45
    %v881 = vunpack.c.l.b16 %v46
    %v882 = vunpack.c.h.b16 %v46
    %v883 = vunpack.c.l.b16 %v47
    %v884 = vunpack.c.l.b16 %v48
    %v885 = vunpack.c.h.b16 %v48
    %v886 = vunpack.c.l.b16 %v49
    %v887 = vunpack.c.h.b16 %v49
    %v888 = vunpack.c.l.b16 %v50
    %v889 = vunpack.c.h.b16 %v50
    %v890 = vunpack.c.l.b16 %v51
    %v891 = vunpack.c.l.b16 %v52
    %v892 = vunpack.c.h.b16 %v52
    %v893 = vunpack.c.l.b16 %v53
    %v894 = vunpack.c.h.b16 %v53
    %v895 = vunpack.c.l.b16 %v54
    %v896 = vunpack.c.h.b16 %v54
    %v897 = vunpack.c.l.b16 %v55
    %v898 = vunpack.c.l.b16 %v56
    %v899 = vunpack.c.h.b16 %v56
    %v900 = vunpack.c.l.b16 %v57
    %v901 = vunpack.c.h.b16 %v57
    %v902 = vunpack.c.l.b16 %v58
    %v903 = vunpack.c.h.b16 %v58
    %v904 = vunpack.c.l.b16 %v59
    %v905 = vunpack.c.l.b16 %v60
    %v906 = vunpack.c.h.b16 %v60
    %v907 = vunpack.c.l.b16 %v61
    %v908 = vunpack.c.h.b16 %v61
    %v909 = vunpack.c.l.b16 %v62
    %v910 = vunpack.c.h.b16 %v62
    %v911 = vunpack.c.l.b16 %v63
    %v912 = vunpack.c.l.b16 %v64
    %v913 = vunpack.c.h.b16 %v64
    %v914 = vunpack.c.l.b16 %v65
    %v915 = vunpack.c.h.b16 %v65
    %v916 = vunpack.c.l.b16 %v66
    %v917 = vunpack.c.h.b16 %v66
    %v918 = vunpack.c.l.b16 %v67
    %v919 = vunpack.c.l.b16 %v68
    %v920 = vunpack.c.h.b16 %v68
    %v921 = vunpack.c.l.b16 %v69
    %v922 = vunpack.c.h.b16 %v69
    %v923 = vunpack.c.l.b16 %v70
    %v924 = vunpack.c.h.b16 %v70
    %v925 = vunpack.c.l.b16 %v71
    %v926 = vunpack.c.l.b16 %v72
    %v927 = vunpack.c.h.b16 %v72
    %v928 = vunpack.c.l.b16 %v73
    %v929 = vunpack.c.h.b16 %v73
    %v930 = vunpack.c.l.b16 %v74
    %v931 = vunpack.c.h.b16 %v74
    %v932 = vunpack.c.l.b16 %v75
    %v933 = vunpack.c.l.b16 %v76
    %v934 = vunpack.c.h.b16 %v76
    %v935 = vunpack.c.l.b16 %v77
    %v936 = vunpack.c.h.b16 %v77
    %v937 = vunpack.c.l.b16 %v78
    %v938 = vunpack.c.h.b16 %v78
    %v939 = vunpack.c.l.b16 %v79
    %v940 = vunpack.c.l.b16 %v80
    %v941 = vunpack.c.h.b16 %v80
    %v942 = vunpack.c.l.b16 %v81
    %v943 = vunpack.c.h.b16 %v81
    %v944 = vunpack.c.l.b16 %v82
    %v945 = vunpack.c.h.b16 %v82
    %v946 = vunpack.c.l.b16 %v83
    %v947 = vunpack.c.l.b16 %v84
    %v948 = vunpack.c.h.b16 %v84
    %v949 = vunpack.c.l.b16 %v85
    %v950 = vunpack.c.h.b16 %v85
    %v951 = vunpack.c.l.b16 %v86
    %v952 = vunpack.c.h.b16 %v86
    %v953 = vunpack.c.l.b16 %v87
    %v954 = vunpack.c.l.b16 %v88
    %v955 = vunpack.c.h.b16 %v88
    %v956 = vunpack.c.l.b16 %v89
    %v957 = vunpack.c.h.b16 %v89
    %v958 = vunpack.c.l.b16 %v90
    %v959 = vunpack.c.h.b16 %v90
    %v960 = vunpack.c.l.b16 %v91
    %v961 = vunpack.c.l.b16 %v92
    %v962 = vunpack.c.h.b16 %v92
    %v963 = vunpack.c.l.b16 %v93
    %v964 = vunpack.c.h.b16 %v93
    %v965 = vunpack.c.l.b16 %v94
    %v966 = vunpack.c.h.b16 %v94
    %v967 = vunpack.c.l.b16 %v95
    %v968 = vunpack.c.l.b16 %v96
    %v969 = vunpack.c.h.b16 %v96
    %v970 = vunpack.c.l.b16 %v97
    %v971 = vunpack.c.h.b16 %v97
    %v972 = vunpack.c.l.b16 %v98
    %v973 = vunpack.c.h.b16 %v98
    %v974 = vunpack.c.l.b16 %v99
    %v975 = vunpack.c.l.b16 %v100
    %v976 = vunpack.c.h.b16 %v100
    %v977 = vunpack.c.l.b16 %v101
    %v978 = vunpack.c.h.b16 %v101
    %v979 = vunpack.c.l.b16 %v102
    %v980 = vunpack.c.h.b16 %v102
    %v981 = vunpack.c.l.b16 %v103
    %v982 = vunpack.c.l.b16 %v104
    %v983 = vunpack.c.h.b16 %v104
    %v984 = vunpack.c.l.b16 %v105
    %v985 = vunpack.c.h.b16 %v105
    %v986 = vunpack.c.l.b16 %v106
    %v987 = vunpack.c.h.b16 %v106
    %v988 = vunpack.c.l.b16 %v107
    %v989 = vunpack.c.l.b16 %v108
    %v990 = vunpack.c.h.b16 %v108
    %v991 = vunpack.c.l.b16 %v109
    %v992 = vunpack.c.h.b16 %v109
    %v993 = vunpack.c.l.b16 %v110
    %v994 = vunpack.c.h.b16 %v110
    %v995 = vunpack.c.l.b16 %v111
    %v996 = vunpack.c.l.b16 %v112
    %v997 = vunpack.c.h.b16 %v112
    %v998 = vunpack.c.l.b16 %v113
    %v999 = vunpack.c.h.b16 %v113
    %v1000 = vunpack.c.l.b16 %v114
    %v1001 = vunpack.c.h.b16 %v114
    %v1002 = vunpack.c.l.b16 %v115
    %v1003 = vunpack.c.l.b16 %v116
    %v1004 = vunpack.c.h.b16 %v116
    %v1005 = vunpack.c.l.b16 %v117
    %v1006 = vunpack.c.h.b16 %v117
    %v1007 = vunpack.c.l.b16 %v118
    %v1008 = vunpack.c.h.b16 %v118
    %v1009 = vunpack.c.l.b16 %v119
    %v1010 = vunpack.c.l.b16 %v120
    %v1011 = vunpack.c.h.b16 %v120
    %v1012 = vunpack.c.l.b16 %v121
    %v1013 = vunpack.c.h.b16 %v121
    %v1014 = vunpack.c.l.b16 %v122
    %v1015 = vunpack.c.h.b16 %v122
    %v1016 = vunpack.c.l.b16 %v123
    %v1017 = vunpack.c.l.b16 %v124
    %v1018 = vunpack.c.h.b16 %v124
    %v1019 = vunpack.c.l.b16 %v125
    %v1020 = vunpack.c.h.b16 %v125
    %v1021 = vunpack.c.l.b16 %v126
    %v1022 = vunpack.c.h.b16 %v126
    %v1023 = vunpack.c.l.b16 %v127
    %v1024 = vunpack.c.l.b16 %v128
    %v1025 = vunpack.c.h.b16 %v128
    %v1026 = vunpack.c.l.b16 %v129
    %v1027 = vunpack.c.h.b16 %v129
    %v1028 = vunpack.c.l.b16 %v130
    %v1029 = vunpack.c.h.b16 %v130
    %v1030 = vunpack.c.l.b16 %v131
    %v1031 = vunpack.c.l.b16 %v132
    %v1032 = vunpack.c.h.b16 %v132
    %v1033 = vunpack.c.l.b16 %v133
    %v1034 = vunpack.c.h.b16 %v133
    %v1035 = vunpack.c.l.b16 %v134
    %v1036 = vunpack.c.h.b16 %v134
    %v1037 = vunpack.c.l.b16 %v135
    %v1038 = vunpack.c.l.b16 %v136
    %v1039 = vunpack.c.h.b16 %v136
    %v1040 = vunpack.c.l.b16 %v137
    %v1041 = vunpack.c.h.b16 %v137
    %v1042 = vunpack.c.l.b16 %v138
    %v1043 = vunpack.c.h.b16 %v138
    %v1044 = vunpack.c.l.b16 %v139
    %v1045 = vunpack.c.l.b16 %v140
    %v1046 = vunpack.c.h.b16 %v140
    %v1047 = vunpack.c.l.b16 %v141
    %v1048 = vunpack.c.h.b16 %v141
    %v1049 = vunpack.c.l.b16 %v142
    %v1050 = vunpack.c.h.b16 %v142
    %v1051 = vunpack.c.l.b16 %v143
    %v1052 = vunpack.c.l.b16 %v144
    %v1053 = vunpack.c.h.b16 %v144
    %v1054 = vunpack.c.l.b16 %v145
    %v1055 = vunpack.c.h.b16 %v145
    %v1056 = vunpack.c.l.b16 %v146
    %v1057 = vunpack.c.h.b16 %v146
    %v1058 = vunpack.c.l.b16 %v147
    %v1059 = vunpack.c.l.b16 %v148
    %v1060 = vunpack.c.h.b16 %v148
    %v1061 = vunpack.c.l.b16 %v149
    %v1062 = vunpack.c.h.b16 %v149
    %v1063 = vunpack.c.l.b16 %v150
    %v1064 = vunpack.c.h.b16 %v150
    %v1065 = vunpack.c.l.b16 %v151
    %v1066 = vunpack.c.l.b16 %v152
    %v1067 = vunpack.c.h.b16 %v152
    %v1068 = vunpack.c.l.b16 %v153
    %v1069 = vunpack.c.h.b16 %v153
    %v1070 = vunpack.c.l.b16 %v154
    %v1071 = vunpack.c.h.b16 %v154
    %v1072 = vunpack.c.l.b16 %v155
    %v1073 = vunpack.c.l.b16 %v156
    %v1074 = vunpack.c.h.b16 %v156
    %v1075 = vunpack.c.l.b16 %v157
    %v1076 = vunpack.c.h.b16 %v157
    %v1077 = vunpack.c.l.b16 %v158
    %v1078 = vunpack.c.h.b16 %v158
    %v1079 = vunpack.c.l.b16 %v159
    %v1080 = vunpack.c.l.b16 %v160
    %v1081 = vunpack.c.h.b16 %v160
    %v1082 = vunpack.c.l.b16 %v161
    %v1083 = vunpack.c.h.b16 %v161
    %v1084 = vunpack.c.l.b16 %v162
    %v1085 = vunpack.c.h.b16 %v162
    %v1086 = vunpack.c.l.b16 %v163
    %v1087 = vunpack.c.l.b16 %v164
    %v1088 = vunpack.c.h.b16 %v164
    %v1089 = vunpack.c.l.b16 %v165
    %v1090 = vunpack.c.h.b16 %v165
    %v1091 = vunpack.c.l.b16 %v166
    %v1092 = vunpack.c.h.b16 %v166
    %v1093 = vunpack.c.l.b16 %v167
    %v1094 = vunpack.c.l.b16 %v168
    %v1095 = vunpack.c.h.b16 %v168
    %v1096 = vunpack.c.l.b16 %v169
    %v1097 = vunpack.c.h.b16 %v169
    %v1098 = vunpack.c.l.b16 %v170
    %v1099 = vunpack.c.h.b16 %v170
    %v1100 = vunpack.c.l.b16 %v171
    %v1101 = vunpack.c.l.b16 %v172
    %v1102 = vunpack.c.h.b16 %v172
    %v1103 = vunpack.c.l.b16 %v173
    %v1104 = vunpack.c.h.b16 %v173
    %v1105 = vunpack.c.l.b16 %v174
    %v1106 = vunpack.c.h.b16 %v174
    %v1107 = vunpack.c.l.b16 %v175
    %v1108 = vunpack.c.l.b16 %v176
    %v1109 = vunpack.c.h.b16 %v176
    %v1110 = vunpack.c.l.b16 %v177
    %v1111 = vunpack.c.h.b16 %v177
    %v1112 = vunpack.c.l.b16 %v178
    %v1113 = vunpack.c.h.b16 %v178
    %v1114 = vunpack.c.l.b16 %v179
    %v1115 = vunpack.c.l.b16 %v180
    %v1116 = vunpack.c.h.b16 %v180
    %v1117 = vunpack.c.l.b16 %v181
    %v1118 = vunpack.c.h.b16 %v181
    %v1119 = vunpack.c.l.b16 %v182
    %v1120 = vunpack.c.h.b16 %v182
    %v1121 = vunpack.c.l.b16 %v183
    %v1122 = vunpack.c.l.b16 %v184
    %v1123 = vunpack.c.h.b16 %v184
    %v1124 = vunpack.c.l.b16 %v185
    %v1125 = vunpack.c.h.b16 %v185
    %v1126 = vunpack.c.l.b16 %v186
    %v1127 = vunpack.c.h.b16 %v186
    %v1128 = vunpack.c.l.b16 %v187
    %v1129 = vunpack.c.l.b16 %v188
    %v1130 = vunpack.c.h.b16 %v188
    %v1131 = vunpack.c.l.b16 %v189
    %v1132 = vunpack.c.h.b16 %v189
    %v1133 = vunpack.c.l.b16 %v190
    %v1134 = vunpack.c.h.b16 %v190
    %v1135 = vunpack.c.l.b16 %v191
    %v1136 = vunpack.c.l.b16 %v192
    %v1137 = vunpack.c.h.b16 %v192
    %v1138 = vunpack.c.l.b16 %v193
    %v1139 = vunpack.c.h.b16 %v193
    %v1140 = vunpack.c.l.b16 %v194
    %v1141 = vunpack.c.h.b16 %v194
    %v1142 = vunpack.c.l.b16 %v195
    %v1143 = vunpack.c.l.b16 %v196
    %v1144 = vunpack.c.h.b16 %v196
    %v1145 = vunpack.c.l.b16 %v197
    %v1146 = vunpack.c.h.b16 %v197
    %v1147 = vunpack.c.l.b16 %v198
    %v1148 = vunpack.c.h.b16 %v198
    %v1149 = vunpack.c.l.b16 %v199
    %v1150 = vunpack.c.l.b16 %v200
    %v1151 = vunpack.c.h.b16 %v200
    %v1152 = vunpack.c.l.b16 %v201
    %v1153 = vunpack.c.h.b16 %v201
    %v1154 = vunpack.c.l.b16 %v202
    %v1155 = vunpack.c.h.b16 %v202
    %v1156 = vunpack.c.l.b16 %v203
    %v1157 = vunpack.c.l.b16 %v204
    %v1158 = vunpack.c.h.b16 %v204
    %v1159 = vunpack.c.l.b16 %v205
    %v1160 = vunpack.c.h.b16 %v205
    %v1161 = vunpack.c.l.b16 %v206
    %v1162 = vunpack.c.h.b16 %v206
    %v1163 = vunpack.c.l.b16 %v207
    %v1164 = vunpack.c.l.b16 %v208
    %v1165 = vunpack.c.h.b16 %v208
    %v1166 = vunpack.c.l.b16 %v209
    %v1167 = vunpack.c.h.b16 %v209
    %v1168 = vunpack.c.l.b16 %v210
    %v1169 = vunpack.c.h.b16 %v210
    %v1170 = vunpack.c.l.b16 %v211
    %v1171 = vunpack.c.l.b16 %v212
    %v1172 = vunpack.c.h.b16 %v212
    %v1173 = vunpack.c.l.b16 %v213
    %v1174 = vunpack.c.h.b16 %v213
    %v1175 = vunpack.c.l.b16 %v214
    %v1176 = vunpack.c.h.b16 %v214
    %v1177 = vunpack.c.l.b16 %v215
    %v1178 = vunpack.c.l.b16 %v216
    %v1179 = vunpack.c.h.b16 %v216
    %v1180 = vunpack.c.l.b16 %v217
    %v1181 = vunpack.c.h.b16 %v217
    %v1182 = vunpack.c.l.b16 %v218
    %v1183 = vunpack.c.h.b16 %v218
    %v1184 = vunpack.c.l.b16 %v219
    %v1185 = vunpack.c.l.b16 %v220
    %v1186 = vunpack.c.h.b16 %v220
    %v1187 = vunpack.c.l.b16 %v221
    %v1188 = vunpack.c.h.b16 %v221
    %v1189 = vunpack.c.l.b16 %v222
    %v1190 = vunpack.c.h.b16 %v222
    %v1191 = vunpack.c.l.b16 %v223
    %v1192 = vunpack.c.l.b16 %v224
    %v1193 = vunpack.c.h.b16 %v224
    %v1194 = vunpack.c.l.b16 %v225
    %v1195 = vunpack.c.h.b16 %v225
    %v1196 = vunpack.c.l.b16 %v226
    %v1197 = vunpack.c.h.b16 %v226
    %v1198 = vunpack.c.l.b16 %v227
    %v1199 = vunpack.c.l.b16 %v228
    %v1200 = vunpack.c.h.b16 %v228
    %v1201 = vunpack.c.l.b16 %v229
    %v1202 = vunpack.c.h.b16 %v229
    %v1203 = vunpack.c.l.b16 %v230
    %v1204 = vunpack.c.h.b16 %v230
    %v1205 = vunpack.c.l.b16 %v231
    %v1206 = vunpack.c.l.b16 %v232
    %v1207 = vunpack.c.h.b16 %v232
    %v1208 = vunpack.c.l.b16 %v233
    %v1209 = vunpack.c.h.b16 %v233
    %v1210 = vunpack.c.l.b16 %v234
    %v1211 = vunpack.c.h.b16 %v234
    %v1212 = vunpack.c.l.b16 %v235
    %v1213 = vunpack.c.l.b16 %v236
    %v1214 = vunpack.c.h.b16 %v236
    %v1215 = vunpack.c.l.b16 %v237
    %v1216 = vunpack.c.h.b16 %v237
    %v1217 = vunpack.c.l.b16 %v238
    %v1218 = vunpack.c.h.b16 %v238
    %v1219 = vunpack.c.l.b16 %v239
    %v1220 = vunpack.c.l.b16 %v240
    %v1221 = vunpack.c.h.b16 %v240
    %v1222 = vunpack.c.l.b16 %v241
    %v1223 = vunpack.c.h.b16 %v241
    %v1224 = vunpack.c.l.b16 %v242
    %v1225 = vunpack.c.h.b16 %v242
    %v1226 = vunpack.c.l.b16 %v243
    %v1227 = vunpack.c.l.b16 %v244
    %v1228 = vunpack.c.h.b16 %v244
    %v1229 = vunpack.c.l.b16 %v245
    %v1230 = vunpack.c.h.b16 %v245
    %v1231 = vunpack.c.l.b16 %v246
    %v1232 = vunpack.c.h.b16 %v246
    %v1233 = vunpack.c.l.b16 %v247
    %v1234 = vunpack.c.l.b16 %v248
    %v1235 = vunpack.c.h.b16 %v248
    %v1236 = vunpack.c.l.b16 %v249
    %v1237 = vunpack.c.h.b16 %v249
    %v1238 = vunpack.c.l.b16 %v250
    %v1239 = vunpack.c.h.b16 %v250
    %v1240 = vunpack.c.l.b16 %v251
    %v1241 = vunpack.c.l.b16 %v252
    %v1242 = vunpack.c.h.b16 %v252
    %v1243 = vunpack.c.l.b16 %v253
    %v1244 = vunpack.c.h.b16 %v253
    %v1245 = vunpack.c.l.b16 %v254
    %v1246 = vunpack.c.h.b16 %v254
    %v1247 = vunpack.c.l.b16 %v255
    %v1248 = vunpack.c.l.b16 %v256
    %v1249 = vunpack.c.h.b16 %v256
    %v1250 = vunpack.c.l.b16 %v257
    %v1251 = vunpack.c.h.b16 %v257
    %v1252 = vunpack.c.l.b16 %v258
    %v1253 = vunpack.c.h.b16 %v258
    %v1254 = vunpack.c.l.b16 %v259
    %v1255 = vunpack.c.l.b16 %v260
    %v1256 = vunpack.c.h.b16 %v260
    %v1257 = vunpack.c.l.b16 %v261
    %v1258 = vunpack.c.h.b16 %v261
    %v1259 = vunpack.c.l.b16 %v262
    %v1260 = vunpack.c.h.b16 %v262
    %v1261 = vunpack.c.l.b16 %v263
    %v1262 = vunpack.c.l.b16 %v264
    %v1263 = vunpack.c.h.b16 %v264
    %v1264 = vunpack.c.l.b16 %v265
    %v1265 = vunpack.c.h.b16 %v265
    %v1266 = vunpack.c.l.b16 %v266
    %v1267 = vunpack.c.h.b16 %v266
    %v1268 = vunpack.c.l.b16 %v267
    %v1269 = vunpack.c.l.b16 %v268
    %v1270 = vunpack.c.h.b16 %v268
    %v1271 = vunpack.c.l.b16 %v269
    %v1272 = vunpack.c.h.b16 %v269
    %v1273 = vunpack.c.l.b16 %v270
    %v1274 = vunpack.c.h.b16 %v270
    %v1275 = vunpack.c.l.b16 %v271
    %v1276 = vunpack.c.l.b16 %v272
    %v1277 = vunpack.c.h.b16 %v272
    %v1278 = vunpack.c.l.b16 %v273
    %v1279 = vunpack.c.h.b16 %v273
    %v1280 = vunpack.c.l.b16 %v274
    %v1281 = vunpack.c.h.b16 %v274
    %v1282 = vunpack.c.l.b16 %v275
    %v1283 = vunpack.c.l.b16 %v276
    %v1284 = vunpack.c.h.b16 %v276
    %v1285 = vunpack.c.l.b16 %v277
    %v1286 = vunpack.c.h.b16 %v277
    %v1287 = vunpack.c.l.b16 %v278
    %v1288 = vunpack.c.h.b16 %v278
    %v1289 = vunpack.c.l.b16 %v279
    %v1290 = vunpack.c.l.b16 %v280
    %v1291 = vunpack.c.h.b16 %v280
    %v1292 = vunpack.c.l.b16 %v281
    %v1293 = vunpack.c.h.b16 %v281
    %v1294 = vunpack.c.l.b16 %v282
    %v1295 = vunpack.c.h.b16 %v282
    %v1296 = vunpack.c.l.b16 %v283
    %v1297 = vunpack.c.l.b16 %v284
    %v1298 = vunpack.c.h.b16 %v284
    %v1299 = vunpack.c.l.b16 %v285
    %v1300 = vunpack.c.h.b16 %v285
    %v1301 = vunpack.c.l.b16 %v286
    %v1302 = vunpack.c.h.b16 %v286
    %v1303 = vunpack.c.l.b16 %v287
    %v1304 = vunpack.c.l.b16 %v288
    %v1305 = vunpack.c.h.b16 %v288
    %v1306 = vunpack.c.l.b16 %v289
    %v1307 = vunpack.c.h.b16 %v289
    %v1308 = vunpack.c.l.b16 %v290
    %v1309 = vunpack.c.h.b16 %v290
    %v1310 = vunpack.c.l.b16 %v291
    %v1311 = vunpack.c.l.b16 %v292
    %v1312 = vunpack.c.h.b16 %v292
    %v1313 = vunpack.c.l.b16 %v293
    %v1314 = vunpack.c.h.b16 %v293
    %v1315 = vunpack.c.l.b16 %v294
    %v1316 = vunpack.c.h.b16 %v294
    %v1317 = vunpack.c.l.b16 %v295
    %v1318 = vunpack.c.l.b16 %v296
    %v1319 = vunpack.c.h.b16 %v296
    %v1320 = vunpack.c.l.b16 %v297
    %v1321 = vunpack.c.h.b16 %v297
    %v1322 = vunpack.c.l.b16 %v298
    %v1323 = vunpack.c.h.b16 %v298
    %v1324 = vunpack.c.l.b16 %v299
    %v1325 = vunpack.c.l.b16 %v300
    %v1326 = vunpack.c.h.b16 %v300
    %v1327 = vunpack.c.l.b16 %v301
    %v1328 = vunpack.c.h.b16 %v301
    %v1329 = vunpack.c.l.b16 %v302
    %v1330 = vunpack.c.h.b16 %v302
    %v1331 = vunpack.c.l.b16 %v303
    %v1332 = vunpack.c.l.b16 %v304
    %v1333 = vunpack.c.h.b16 %v304
    %v1334 = vunpack.c.l.b16 %v305
    %v1335 = vunpack.c.h.b16 %v305
    %v1336 = vunpack.c.l.b16 %v306
    %v1337 = vunpack.c.h.b16 %v306
    %v1338 = vunpack.c.l.b16 %v307
    %v1339 = vunpack.c.l.b16 %v308
    %v1340 = vunpack.c.h.b16 %v308
    %v1341 = vunpack.c.l.b16 %v309
    %v1342 = vunpack.c.h.b16 %v309
    %v1343 = vunpack.c.l.b16 %v310
    %v1344 = vunpack.c.h.b16 %v310
    %v1345 = vunpack.c.l.b16 %v311
    %v1346 = vunpack.c.l.b16 %v312
    %v1347 = vunpack.c.h.b16 %v312
    %v1348 = vunpack.c.l.b16 %v313
    %v1349 = vunpack.c.h.b16 %v313
    %v1350 = vunpack.c.l.b16 %v314
    %v1351 = vunpack.c.h.b16 %v314
    %v1352 = vunpack.c.l.b16 %v315
    %v1353 = vunpack.c.l.b16 %v316
    %v1354 = vunpack.c.h.b16 %v316
    %v1355 = vunpack.c.l.b16 %v317
    %v1356 = vunpack.c.h.b16 %v317
    %v1357 = vunpack.c.l.b16 %v318
    %v1358 = vunpack.c.h.b16 %v318
    %v1359 = vunpack.c.l.b16 %v319
    %v1360 = vunpack.c.l.b16 %v320
    %v1361 = vunpack.c.h.b16 %v320
    %v1362 = vunpack.c.l.b16 %v321
    %v1363 = vunpack.c.h.b16 %v321
    %v1364 = vunpack.c.l.b16 %v322
    %v1365 = vunpack.c.h.b16 %v322
    %v1366 = vunpack.c.l.b16 %v323
    %v1367 = vunpack.c.l.b16 %v324
    %v1368 = vunpack.c.h.b16 %v324
    %v1369 = vunpack.c.l.b16 %v325
    %v1370 = vunpack.c.h.b16 %v325
    %v1371 = vunpack.c.l.b16 %v326
    %v1372 = vunpack.c.h.b16 %v326
    %v1373 = vunpack.c.l.b16 %v327
    %v1374 = vunpack.c.l.b16 %v328
    %v1375 = vunpack.c.h.b16 %v328
    %v1376 = vunpack.c.l.b16 %v329
    %v1377 = vunpack.c.h.b16 %v329
    %v1378 = vunpack.c.l.b16 %v330
    %v1379 = vunpack.c.h.b16 %v330
    %v1380 = vunpack.c.l.b16 %v331
    %v1381 = vunpack.c.l.b16 %v332
    %v1382 = vunpack.c.h.b16 %v332
    %v1383 = vunpack.c.l.b16 %v333
    %v1384 = vunpack.c.h.b16 %v333
    %v1385 = vunpack.c.l.b16 %v334
    %v1386 = vunpack.c.h.b16 %v334
    %v1387 = vunpack.c.l.b16 %v335
    %v1388 = vunpack.c.l.b16 %v336
    %v1389 = vunpack.c.h.b16 %v336
    %v1390 = vunpack.c.l.b16 %v337
    %v1391 = vunpack.c.h.b16 %v337
    %v1392 = vunpack.c.l.b16 %v338
    %v1393 = vunpack.c.h.b16 %v338
    %v1394 = vunpack.c.l.b16 %v339
    %v1395 = vunpack.c.l.b16 %v340
    %v1396 = vunpack.c.h.b16 %v340
    %v1397 = vunpack.c.l.b16 %v341
    %v1398 = vunpack.c.h.b16 %v341
    %v1399 = vunpack.c.l.b16 %v342
    %v1400 = vunpack.c.h.b16 %v342
    %v1401 = vunpack.c.l.b16 %v343
    %v1402 = vunpack.c.l.b16 %v344
    %v1403 = vunpack.c.h.b16 %v344
    %v1404 = vunpack.c.l.b16 %v345
    %v1405 = vunpack.c.h.b16 %v345
    %v1406 = vunpack.c.l.b16 %v346
    %v1407 = vunpack.c.h.b16 %v346
    %v1408 = vunpack.c.l.b16 %v347
    %v1409 = vunpack.c.l.b16 %v348
    %v1410 = vunpack.c.h.b16 %v348
    %v1411 = vunpack.c.l.b16 %v349
    %v1412 = vunpack.c.h.b16 %v349
    %v1413 = vunpack.c.l.b16 %v350
    %v1414 = vunpack.c.h.b16 %v350
    %v1415 = vunpack.c.l.b16 %v351
    %v1416 = vunpack.c.l.b16 %v352
    %v1417 = vunpack.c.h.b16 %v352
    %v1418 = vunpack.c.l.b16 %v353
    %v1419 = vunpack.c.h.b16 %v353
    %v1420 = vunpack.c.l.b16 %v354
    %v1421 = vunpack.c.h.b16 %v354
    %v1422 = vunpack.c.l.b16 %v355
    %v1423 = vunpack.c.l.b16 %v356
    %v1424 = vunpack.c.h.b16 %v356
    %v1425 = vunpack.c.l.b16 %v357
    %v1426 = vunpack.c.h.b16 %v357
    %v1427 = vunpack.c.l.b16 %v358
    %v1428 = vunpack.c.h.b16 %v358
    %v1429 = vunpack.c.l.b16 %v359
    %v1430 = vunpack.c.l.b16 %v360
    %v1431 = vunpack.c.h.b16 %v360
    %v1432 = vunpack.c.l.b16 %v361
    %v1433 = vunpack.c.h.b16 %v361
    %v1434 = vunpack.c.l.b16 %v362
    %v1435 = vunpack.c.h.b16 %v362
    %v1436 = vunpack.c.l.b16 %v363
    %v1437 = vunpack.c.l.b16 %v364
    %v1438 = vunpack.c.h.b16 %v364
    %v1439 = vunpack.c.l.b16 %v365
    %v1440 = vunpack.c.h.b16 %v365
    %v1441 = vunpack.c.l.b16 %v366
    %v1442 = vunpack.c.h.b16 %v366
    %v1443 = vunpack.c.l.b16 %v367
    %v1444 = vunpack.c.l.b16 %v368
    %v1445 = vunpack.c.h.b16 %v368
    %v1446 = vunpack.c.l.b16 %v369
    %v1447 = vunpack.c.h.b16 %v369
    %v1448 = vunpack.c.l.b16 %v370
    %v1449 = vunpack.c.h.b16 %v370
    %v1450 = vunpack.c.l.b16 %v371
    %v1451 = vunpack.c.l.b16 %v372
    %v1452 = vunpack.c.h.b16 %v372
    %v1453 = vunpack.c.l.b16 %v373
    %v1454 = vunpack.c.h.b16 %v373
    %v1455 = vunpack.c.l.b16 %v374
    %v1456 = vunpack.c.h.b16 %v374
    %v1457 = vunpack.c.l.b16 %v375
    %v1458 = vunpack.c.l.b16 %v376
    %v1459 = vunpack.c.h.b16 %v376
    %v1460 = vunpack.c.l.b16 %v377
    %v1461 = vunpack.c.h.b16 %v377
    %v1462 = vunpack.c.l.b16 %v378
    %v1463 = vunpack.c.h.b16 %v378
    %v1464 = vunpack.c.l.b16 %v379
    %v1465 = vunpack.c.l.b16 %v380
    %v1466 = vunpack.c.h.b16 %v380
    %v1467 = vunpack.c.l.b16 %v381
    %v1468 = vunpack.c.h.b16 %v381
    %v1469 = vunpack.c.l.b16 %v382
    %v1470 = vunpack.c.h.b16 %v382
    %v1471 = vunpack.c.l.b16 %v383
    %v1472 = vunpack.c.l.b16 %v384
    %v1473 = vunpack.c.h.b16 %v384
    %v1474 = vunpack.c.l.b16 %v385
    %v1475 = vunpack.c.h.b16 %v385
    %v1476 = vunpack.c.l.b16 %v386
    %v1477 = vunpack.c.h.b16 %v386
    %v1478 = vunpack.c.l.b16 %v387
    %v1479 = vunpack.c.l.b16 %v388
    %v1480 = vunpack.c.h.b16 %v388
    %v1481 = vunpack.c.l.b16 %v389
    %v1482 = vunpack.c.h.b16 %v389
    %v1483 = vunpack.c.l.b16 %v390
    %v1484 = vunpack.c.h.b16 %v390
    %v1485 = vunpack.c.l.b16 %v391
    %v1486 = vunpack.c.l.b16 %v392
    %v1487 = vunpack.c.h.b16 %v392
    %v1488 = vunpack.c.l.b16 %v393
    %v1489 = vunpack.c.h.b16 %v393
    %v1490 = vunpack.c.l.b16 %v394
    %v1491 = vunpack.c.h.b16 %v394
    %v1492 = vunpack.c.l.b16 %v395
    %v1493 = vunpack.c.l.b16 %v396
    %v1494 = vunpack.c.h.b16 %v396
    %v1495 = vunpack.c.l.b16 %v397
    %v1496 = vunpack.c.h.b16 %v397
    %v1497 = vunpack.c.l.b16 %v398
    %v1498 = vunpack.c.h.b16 %v398
    %v1499 = vunpack.c.l.b16 %v399
    %v1500 = vunpack.c.l.b16 %v400
    %v1501 = vunpack.c.h.b16 %v400
    %v1502 = vunpack.c.l.b16 %v401
    %v1503 = vunpack.c.h.b16 %v401
    %v1504 = vunpack.c.l.b16 %v402
    %v1505 = vunpack.c.h.b16 %v402
    %v1506 = vunpack.c.l.b16 %v403
    %v1507 = vunpack.c.l.b16 %v404
    %v1508 = vunpack.c.h.b16 %v404
    %v1509 = vunpack.c.l.b16 %v405
    %v1510 = vunpack.c.h.b16 %v405
    %v1511 = vunpack.c.l.b16 %v406
    %v1512 = vunpack.c.h.b16 %v406
    %v1513 = vunpack.c.l.b16 %v407
    %v1514 = vunpack.c.l.b16 %v408
    %v1515 = vunpack.c.h.b16 %v408
    %v1516 = vunpack.c.l.b16 %v409
    %v1517 = vunpack.c.h.b16 %v409
    %v1518 = vunpack.c.l.b16 %v410
    %v1519 = vunpack.c.h.b16 %v410
    %v1520 = vunpack.c.l.b16 %v411
    %v1521 = vunpack.c.l.b16 %v412
    %v1522 = vunpack.c.h.b16 %v412
    %v1523 = vunpack.c.l.b16 %v413
    %v1524 = vunpack.c.h.b16 %v413
    %v1525 = vunpack.c.l.b16 %v414
    %v1526 = vunpack.c.h.b16 %v414
    %v1527 = vunpack.c.l.b16 %v415
    %v1528 = vunpack.c.l.b16 %v416
    %v1529 = vunpack.c.h.b16 %v416
    %v1530 = vunpack.c.l.b16 %v417
    %v1531 = vunpack.c.h.b16 %v417
    %v1532 = vunpack.c.l.b16 %v418
    %v1533 = vunpack.c.h.b16 %v418
    %v1534 = vunpack.c.l.b16 %v419
    %v1535 = vunpack.c.l.b16 %v420
    %v1536 = vunpack.c.h.b16 %v420
    %v1537 = vunpack.c.l.b16 %v421
    %v1538 = vunpack.c.h.b16 %v421
    %v1539 = vunpack.c.l.b16 %v422
    %v1540 = vunpack.c.h.b16 %v422
    %v1541 = vunpack.c.l.b16 %v423
    %v1542 = vpack.c.b16 %v863, %v856
    %v1543 = vpack.c.b16 %v864, %v857
    %v1544 = vpack.c.b16 %v865, %v858
    %v1545 = vpack.c.b16 %v866, %v859
    %v1546 = vpack.c.b16 %v867, %v860
    %v1547 = vpack.c.b16 %v868, %v861
    %v1548 = vpack.c.b16 %v869, %v862
    %v1549 = vpack.c.b16 %v877, %v870
    %v1550 = vpack.c.b16 %v878, %v871
    %v1551 = vpack.c.b16 %v879, %v872
    %v1552 = vpack.c.b16 %v880, %v873
    %v1553 = vpack.c.b16 %v881, %v874
    %v1554 = vpack.c.b16 %v882, %v875
    %v1555 = vpack.c.b16 %v883, %v876
    %v1556 = vpack.c.b16 %v891, %v884
    %v1557 = vpack.c.b16 %v892, %v885
    %v1558 = vpack.c.b16 %v893, %v886
    %v1559 = vpack.c.b16 %v894, %v887
    %v1560 = vpack.c.b16 %v895, %v888
    %v1561 = vpack.c.b16 %v896, %v889
    %v1562 = vpack.c.b16 %v897, %v890
    %v1563 = vpack.c.b16 %v905, %v898
    %v1564 = vpack.c.b16 %v906, %v899
    %v1565 = vpack.c.b16 %v907, %v900
    %v1566 = vpack.c.b16 %v908, %v901
    %v1567 = vpack.c.b16 %v909, %v902
    %v1568 = vpack.c.b16 %v910, %v903
    %v1569 = vpack.c.b16 %v911, %v904
    %v1570 = vpack.c.b16 %v919, %v912
    %v1571 = vpack.c.b16 %v920, %v913
    %v1572 = vpack.c.b16 %v921, %v914
    %v1573 = vpack.c.b16 %v922, %v915
    %v1574 = vpack.c.b16 %v923, %v916
    %v1575 = vpack.c.b16 %v924, %v917
    %v1576 = vpack.c.b16 %v925, %v918
    %v1577 = vpack.c.b16 %v933, %v926
    %v1578 = vpack.c.b16 %v934, %v927
    %v1579 = vpack.c.b16 %v935, %v928
    %v1580 = vpack.c.b16 %v936, %v929
    %v1581 = vpack.c.b16 %v937, %v930
    %v1582 = vpack.c.b16 %v938, %v931
    %v1583 = vpack.c.b16 %v939, %v932
    %v1584 = vpack.c.b16 %v947, %v940
    %v1585 = vpack.c.b16 %v948, %v941
    %v1586 = vpack.c.b16 %v949, %v942
    %v1587 = vpack.c.b16 %v950, %v943
    %v1588 = vpack.c.b16 %v951, %v944
    %v1589 = vpack.c.b16 %v952, %v945
    %v1590 = vpack.c.b16 %v953, %v946
    %v1591 = vpack.c.b16 %v961, %v954
    %v1592 = vpack.c.b16 %v962, %v955
    %v1593 = vpack.c.b16 %v963, %v956
    %v1594 = vpack.c.b16 %v964, %v957
    %v1595 = vpack.c.b16 %v965, %v958
    %v1596 = vpack.c.b16 %v966, %v959
    %v1597 = vpack.c.b16 %v967, %v960
    %v1598 = vpack.c.b16 %v975, %v968
    %v1599 = vpack.c.b16 %v976, %v969
    %v1600 = vpack.c.b16 %v977, %v970
    %v1601 = vpack.c.b16 %v978, %v971
    %v1602 = vpack.c.b16 %v979, %v972
    %v1603 = vpack.c.b16 %v980, %v973
    %v1604 = vpack.c.b16 %v981, %v974
    %v1605 = vpack.c.b16 %v989, %v982
    %v1606 = vpack.c.b16 %v990, %v983
    %v1607 = vpack.c.b16 %v991, %v984
    %v1608 = vpack.c.b16 %v992, %v985
    %v1609 = vpack.c.b16 %v993, %v986
    %v1610 = vpack.c.b16 %v994, %v987
    %v1611 = vpack.c.b16 %v995, %v988
    %v1612 = vpack.c.b16 %v1003, %v996
    %v1613 = vpack.c.b16 %v1004, %v997
    %v1614 = vpack.c.b16 %v1005, %v998
    %v1615 = vpack.c.b16 %v1006, %v999
    %v1616 = vpack.c.b16 %v1007, %v1000
    %v1617 = vpack.c.b16 %v1008, %v1001
    %v1618 = vpack.c.b16 %v1009, %v1002
    %v1619 = vpack.c.b16 %v1017, %v1010
    %v1620 = vpack.c.b16 %v1018, %v1011
    %v1621 = vpack.c.b16 %v1019, %v1012
    %v1622 = vpack.c.b16 %v1020, %v1013
    %v1623 = vpack.c.b16 %v1021, %v1014
    %v1624 = vpack.c.b16 %v1022, %v1015
    %v1625 = vpack.c.b16 %v1023, %v1016
    %v1626 = vpack.c.b16 %v1031, %v1024
    %v1627 = vpack.c.b16 %v1032, %v1025
    %v1628 = vpack.c.b16 %v1033, %v1026
    %v1629 = vpack.c.b16 %v1034, %v1027
    %v1630 = vpack.c.b16 %v1035, %v1028
    %v1631 = vpack.c.b16 %v1036, %v1029
    %v1632 = vpack.c.b16 %v1037, %v1030
    %v1633 = vpack.c.b16 %v1045, %v1038
    %v1634 = vpack.c.b16 %v1046, %v1039
    %v1635 = vpack.c.b16 %v1047, %v1040
    %v1636 = vpack.c.b16 %v1048, %v1041
    %v1637 = vpack.c.b16 %v1049, %v1042
    %v1638 = vpack.c.b16 %v1050, %v1043
    %v1639 = vpack.c.b16 %v1051, %v1044
    %v1640 = vpack.c.b16 %v1059, %v1052
    %v1641 = vpack.c.b16 %v1060, %v1053
    %v1642 = vpack.c.b16 %v1061, %v1054
    %v1643 = vpack.c.b16 %v1062, %v1055
    %v1644 = vpack.c.b16 %v1063, %v1056
    %v1645 = vpack.c.b16 %v1064, %v1057
    %v1646 = vpack.c.b16 %v1065, %v1058
    %v1647 = vpack.c.b16 %v1073, %v1066
    %v1648 = vpack.c.b16 %v1074, %v1067
    %v1649 = vpack.c.b16 %v1075, %v1068
    %v1650 = vpack.c.b16 %v1076, %v1069
    %v1651 = vpack.c.b16 %v1077, %v1070
    %v1652 = vpack.c.b16 %v1078, %v1071
    %v1653 = vpack.c.b16 %v1079, %v1072
    %v1654 = vpack.c.b16 %v1087, %v1080
    %v1655 = vpack.c.b16 %v1088, %v1081
    %v1656 = vpack.c.b16 %v1089, %v1082
    %v1657 = vpack.c.b16 %v1090, %v1083
    %v1658 = vpack.c.b16 %v1091, %v1084
    %v1659 = vpack.c.b16 %v1092, %v1085
    %v1660 = vpack.c.b16 %v1093, %v1086
    %v1661 = vpack.c.b16 %v1101, %v1094
    %v1662 = vpack.c.b16 %v1102, %v1095
    %v1663 = vpack.c.b16 %v1103, %v1096
    %v1664 = vpack.c.b16 %v1104, %v1097
    %v1665 = vpack.c.b16 %v1105, %v1098
    %v1666 = vpack.c.b16 %v1106, %v1099
    %v1667 = vpack.c.b16 %v1107, %v1100
    %v1668 = vpack.c.b16 %v1115, %v1108
    %v1669 = vpack.c.b16 %v1116, %v1109
    %v1670 = vpack.c.b16 %v1117, %v1110
    %v1671 = vpack.c.b16 %v1118, %v1111
    %v1672 = vpack.c.b16 %v1119, %v1112
    %v1673 = vpack.c.b16 %v1120, %v1113
    %v1674 = vpack.c.b16 %v1121, %v1114
    %v1675 = vpack.c.b16 %v1129, %v1122
    %v1676 = vpack.c.b16 %v1130, %v1123
    %v1677 = vpack.c.b16 %v1131, %v1124
    %v1678 = vpack.c.b16 %v1132, %v1125
    %v1679 = vpack.c.b16 %v1133, %v1126
    %v1680 = vpack.c.b16 %v1134, %v1127
    %v1681 = vpack.c.b16 %v1135, %v1128
    %v1682 = vpack.c.b16 %v1143, %v1136
    %v1683 = vpack.c.b16 %v1144, %v1137
    %v1684 = vpack.c.b16 %v1145, %v1138
    %v1685 = vpack.c.b16 %v1146, %v1139
    %v1686 = vpack.c.b16 %v1147, %v1140
    %v1687 = vpack.c.b16 %v1148, %v1141
    %v1688 = vpack.c.b16 %v1149, %v1142
    %v1689 = vpack.c.b16 %v1157, %v1150
    %v1690 = vpack.c.b16 %v1158, %v1151
    %v1691 = vpack.c.b16 %v1159, %v1152
    %v1692 = vpack.c.b16 %v1160, %v1153
    %v1693 = vpack.c.b16 %v1161, %v1154
    %v1694 = vpack.c.b16 %v1162, %v1155
    %v1695 = vpack.c.b16 %v1163, %v1156
    %v1696 = vpack.c.b16 %v1171, %v1164
    %v1697 = vpack.c.b16 %v1172, %v1165
    %v1698 = vpack.c.b16 %v1173, %v1166
    %v1699 = vpack.c.b16 %v1174, %v1167
    %v1700 = vpack.c.b16 %v1175, %v1168
    %v1701 = vpack.c.b16 %v1176, %v1169
    %v1702 = vpack.c.b16 %v1177, %v1170
    %v1703 = vpack.c.b16 %v1185, %v1178
    %v1704 = vpack.c.b16 %v1186, %v1179
    %v1705 = vpack.c.b16 %v1187, %v1180
    %v1706 = vpack.c.b16 %v1188, %v1181
    %v1707 = vpack.c.b16 %v1189, %v1182
    %v1708 = vpack.c.b16 %v1190, %v1183
    %v1709 = vpack.c.b16 %v1191, %v1184
    %v1710 = vpack.c.b16 %v1199, %v1192
    %v1711 = vpack.c.b16 %v1200, %v1193
    %v1712 = vpack.c.b16 %v1201, %v1194
    %v1713 = vpack.c.b16 %v1202, %v1195
    %v1714 = vpack.c.b16 %v1203, %v1196
    %v1715 = vpack.c.b16 %v1204, %v1197
    %v1716 = vpack.c.b16 %v1205, %v1198
    %v1717 = vpack.c.b16 %v1213, %v1206
    %v1718 = vpack.c.b16 %v1214, %v1207
    %v1719 = vpack.c.b16 %v1215, %v1208
    %v1720 = vpack.c.b16 %v1216, %v1209
    %v1721 = vpack.c.b16 %v1217, %v1210
    %v1722 = vpack.c.b16 %v1218, %v1211
    %v1723 = vpack.c.b16 %v1219, %v1212
    %v1724 = vpack.c.b16 %v1227, %v1220
    %v1725 = vpack.c.b16 %v1228, %v1221
    %v1726 = vpack.c.b16 %v1229, %v1222
    %v1727 = vpack.c.b16 %v1230, %v1223
    %v1728 = vpack.c.b16 %v1231, %v1224
    %v1729 = vpack.c.b16 %v1232, %v1225
    %v1730 = vpack.c.b16 %v1233, %v1226
    %v1731 = vpack.c.b16 %v1241, %v1234
    %v1732 = vpack.c.b16 %v1242, %v1235
    %v1733 = vpack.c.b16 %v1243, %v1236
    %v1734 = vpack.c.b16 %v1244, %v1237
    %v1735 = vpack.c.b16 %v1245, %v1238
    %v1736 = vpack.c.b16 %v1246, %v1239
    %v1737 = vpack.c.b16 %v1247, %v1240
    %v1738 = vpack.c.b16 %v1255, %v1248
    %v1739 = vpack.c.b16 %v1256, %v1249
    %v1740 = vpack.c.b16 %v1257, %v1250
    %v1741 = vpack.c.b16 %v1258, %v1251
    %v1742 = vpack.c.b16 %v1259, %v1252
    %v1743 = vpack.c.b16 %v1260, %v1253
    %v1744 = vpack.c.b16 %v1261, %v1254
    %v1745 = vpack.c.b16 %v1269, %v1262
    %v1746 = vpack.c.b16 %v1270, %v1263
    %v1747 = vpack.c.b16 %v1271, %v1264
    %v1748 = vpack.c.b16 %v1272, %v1265
    %v1749 = vpack.c.b16 %v1273, %v1266
    %v1750 = vpack.c.b16 %v1274, %v1267
    %v1751 = vpack.c.b16 %v1275, %v1268
    %v1752 = vpack.c.b16 %v1283, %v1276
    %v1753 = vpack.c.b16 %v1284, %v1277
    %v1754 = vpack.c.b16 %v1285, %v1278
    %v1755 = vpack.c.b16 %v1286, %v1279
    %v1756 = vpack.c.b16 %v1287, %v1280
    %v1757 = vpack.c.b16 %v1288, %v1281
    %v1758 = vpack.c.b16 %v1289, %v1282
    %v1759 = vpack.c.b16 %v1297, %v1290
    %v1760 = vpack.c.b16 %v1298, %v1291
    %v1761 = vpack.c.b16 %v1299, %v1292
    %v1762 = vpack.c.b16 %v1300, %v1293
    %v1763 = vpack.c.b16 %v1301, %v1294
    %v1764 = vpack.c.b16 %v1302, %v1295
    %v1765 = vpack.c.b16 %v1303, %v1296
    %v1766 = vpack.c.b16 %v1311, %v1304
    %v1767 = vpack.c.b16 %v1312, %v1305
    %v1768 = vpack.c.b16 %v1313, %v1306
    %v1769 = vpack.c.b16 %v1314, %v1307
    %v1770 = vpack.c.b16 %v1315, %v1308
    %v1771 = vpack.c.b16 %v1316, %v1309
    %v1772 = vpack.c.b16 %v1317, %v1310
    %v1773 = vpack.c.b16 %v1325, %v1318
    %v1774 = vpack.c.b16 %v1326, %v1319
    %v1775 = vpack.c.b16 %v1327, %v1320
    %v1776 = vpack.c.b16 %v1328, %v1321
    %v1777 = vpack.c.b16 %v1329, %v1322
    %v1778 = vpack.c.b16 %v1330, %v1323
    %v1779 = vpack.c.b16 %v1331, %v1324
    %v1780 = vpack.c.b16 %v1339, %v1332
    %v1781 = vpack.c.b16 %v1340, %v1333
    %v1782 = vpack.c.b16 %v1341, %v1334
    %v1783 = vpack.c.b16 %v1342, %v1335
    %v1784 = vpack.c.b16 %v1343, %v1336
    %v1785 = vpack.c.b16 %v1344, %v1337
    %v1786 = vpack.c.b16 %v1345, %v1338
    %v1787 = vpack.c.b16 %v1353, %v1346
    %v1788 = vpack.c.b16 %v1354, %v1347
    %v1789 = vpack.c.b16 %v1355, %v1348
    %v1790 = vpack.c.b16 %v1356, %v1349
    %v1791 = vpack.c.b16 %v1357, %v1350
    %v1792 = vpack.c.b16 %v1358, %v1351
    %v1793 = vpack.c.b16 %v1359, %v1352
    %v1794 = vpack.c.b16 %v1367, %v1360
    %v1795 = vpack.c.b16 %v1368, %v1361
    %v1796 = vpack.c.b16 %v1369, %v1362
    %v1797 = vpack.c.b16 %v1370, %v1363
    %v1798 = vpack.c.b16 %v1371, %v1364
    %v1799 = vpack.c.b16 %v1372, %v1365
    %v1800 = vpack.c.b16 %v1373, %v1366
    %v1801 = vpack.c.b16 %v1381, %v1374
    %v1802 = vpack.c.b16 %v1382, %v1375
    %v1803 = vpack.c.b16 %v1383, %v1376
    %v1804 = vpack.c.b16 %v1384, %v1377
    %v1805 = vpack.c.b16 %v1385, %v1378
    %v1806 = vpack.c.b16 %v1386, %v1379
    %v1807 = vpack.c.b16 %v1387, %v1380
    %v1808 = vpack.c.b16 %v1395, %v1388
    %v1809 = vpack.c.b16 %v1396, %v1389
    %v1810 = vpack.c.b16 %v1397, %v1390
    %v1811 = vpack.c.b16 %v1398, %v1391
    %v1812 = vpack.c.b16 %v1399, %v1392
    %v1813 = vpack.c.b16 %v1400, %v1393
    %v1814 = vpack.c.b16 %v1401, %v1394
    %v1815 = vpack.c.b16 %v1409, %v1402
    %v1816 = vpack.c.b16 %v1410, %v1403
    %v1817 = vpack.c.b16 %v1411, %v1404
    %v1818 = vpack.c.b16 %v1412, %v1405
    %v1819 = vpack.c.b16 %v1413, %v1406
    %v1820 = vpack.c.b16 %v1414, %v1407
    %v1821 = vpack.c.b16 %v1415, %v1408
    %v1822 = vpack.c.b16 %v1423, %v1416
    %v1823 = vpack.c.b16 %v1424, %v1417
    %v1824 = vpack.c.b16 %v1425, %v1418
    %v1825 = vpack.c.b16 %v1426, %v1419
    %v1826 = vpack.c.b16 %v1427, %v1420
    %v1827 = vpack.c.b16 %v1428, %v1421
    %v1828 = vpack.c.b16 %v1429, %v1422
    %v1829 = vpack.c.b16 %v1437, %v1430
    %v1830 = vpack.c.b16 %v1438, %v1431
    %v1831 = vpack.c.b16 %v1439, %v1432
    %v1832 = vpack.c.b16 %v1440, %v1433
    %v1833 = vpack.c.b16 %v1441, %v1434
    %v1834 = vpack.c.b16 %v1442, %v1435
    %v1835 = vpack.c.b16 %v1443, %v1436
    %v1836 = vpack.c.b16 %v1451, %v1444
    %v1837 = vpack.c.b16 %v1452, %v1445
    %v1838 = vpack.c.b16 %v1453, %v1446
    %v1839 = vpack.c.b16 %v1454, %v1447
    %v1840 = vpack.c.b16 %v1455, %v1448
    %v1841 = vpack.c.b16 %v1456, %v1449
    %v1842 = vpack.c.b16 %v1457, %v1450
    %v1843 = vpack.c.b16 %v1465, %v1458
    %v1844 = vpack.c.b16 %v1466, %v1459
    %v1845 = vpack.c.b16 %v1467, %v1460
    %v1846 = vpack.c.b16 %v1468, %v1461
    %v1847 = vpack.c.b16 %v1469, %v1462
    %v1848 = vpack.c.b16 %v1470, %v1463
    %v1849 = vpack.c.b16 %v1471, %v1464
    %v1850 = vpack.c.b16 %v1479, %v1472
    %v1851 = vpack.c.b16 %v1480, %v1473
    %v1852 = vpack.c.b16 %v1481, %v1474
    %v1853 = vpack.c.b16 %v1482, %v1475
    %v1854 = vpack.c.b16 %v1483, %v1476
    %v1855 = vpack.c.b16 %v1484, %v1477
    %v1856 = vpack.c.b16 %v1485, %v1478
    %v1857 = vpack.c.b16 %v1493, %v1486
    %v1858 = vpack.c.b16 %v1494, %v1487
    %v1859 = vpack.c.b16 %v1495, %v1488
    %v1860 = vpack.c.b16 %v1496, %v1489
    %v1861 = vpack.c.b16 %v1497, %v1490
    %v1862 = vpack.c.b16 %v1498, %v1491
    %v1863 = vpack.c.b16 %v1499, %v1492
    %v1864 = vpack.c.b16 %v1507, %v1500
    %v1865 = vpack.c.b16 %v1508, %v1501
    %v1866 = vpack.c.b16 %v1509, %v1502
    %v1867 = vpack.c.b16 %v1510, %v1503
    %v1868 = vpack.c.b16 %v1511, %v1504
    %v1869 = vpack.c.b16 %v1512, %v1505
    %v1870 = vpack.c.b16 %v1513, %v1506
    %v1871 = vpack.c.b16 %v1521, %v1514
    %v1872 = vpack.c.b16 %v1522, %v1515
    %v1873 = vpack.c.b16 %v1523, %v1516
    %v1874 = vpack.c.b16 %v1524, %v1517
    %v1875 = vpack.c.b16 %v1525, %v1518
    %v1876 = vpack.c.b16 %v1526, %v1519
    %v1877 = vpack.c.b16 %v1527, %v1520
    %v1878 = vpack.c.b16 %v1535, %v1528
    %v1879 = vpack.c.b16 %v1536, %v1529
    %v1880 = vpack.c.b16 %v1537, %v1530
    %v1881 = vpack.c.b16 %v1538, %v1531
    %v1882 = vpack.c.b16 %v1539, %v1532
    %v1883 = vpack.c.b16 %v1540, %v1533
    %v1884 = vpack.c.b16 %v1541, %v1534
    %vm2228 = vcmask 130048
    %v2230 = vsel %vm2228, %v457, 0
    %2232 = vmatpush.bf16.msra.mxu0 %v1591
    %2233 = vmatpush.bf16.msra.mxu0 %v1584
    %2234 = vmatpush.bf16.msra.mxu0 %v1577
    %2235 = vmatpush.bf16.msra.mxu0 %v1570
    %2236 = vmatpush.bf16.msra.mxu0 %v1563
    %2237 = vmatpush.bf16.msra.mxu0 %v1556
    %2238 = vmatpush.bf16.msra.mxu0 %v1549
    %2239 = vmatpush.bf16.msra.mxu0 %v1542
    %2240 = vmatmul.bf16.gmra.mxu0 %v451
    %v2241 = vpop.f32.mrf.mxu0
    %v2242 = vadd.f32 %v426, %v2241
    %v2243 = vpop.f32.mrf.mxu0
    %2244 = vdwg.mxu0
    %2245 = vmatpush.bf16.msra.mxu0 %v1647
    %2246 = vmatpush.bf16.msra.mxu0 %v1640
    %2247 = vmatpush.bf16.msra.mxu0 %v1633
    %2248 = vmatpush.bf16.msra.mxu0 %v1626
    %2249 = vmatpush.bf16.msra.mxu0 %v1619
    %2250 = vmatpush.bf16.msra.mxu0 %v1612
    %2251 = vmatpush.bf16.msra.mxu0 %v1605
    %2252 = vmatpush.bf16.msra.mxu0 %v1598
    %2253 = vmatmul.bf16.gmra.mxu0 %v452
    %v2254 = vpop.f32.mrf.mxu0
    %v2255 = vadd.f32 %v2242, %v2254
    %v2256 = vpop.f32.mrf.mxu0
    %2257 = vdwg.mxu0
    %2258 = vmatpush.bf16.msra.mxu0 %v1703
    %2259 = vmatpush.bf16.msra.mxu0 %v1696
    %2260 = vmatpush.bf16.msra.mxu0 %v1689
    %2261 = vmatpush.bf16.msra.mxu0 %v1682
    %2262 = vmatpush.bf16.msra.mxu0 %v1675
    %2263 = vmatpush.bf16.msra.mxu0 %v1668
    %2264 = vmatpush.bf16.msra.mxu0 %v1661
    %2265 = vmatpush.bf16.msra.mxu0 %v1654
    %2266 = vmatmul.bf16.gmra.mxu0 %v453
    %v2267 = vpop.f32.mrf.mxu0
    %v2268 = vadd.f32 %v2255, %v2267
    %v2269 = vpop.f32.mrf.mxu0
    %2270 = vdwg.mxu0
    %2271 = vmatpush.bf16.msra.mxu0 %v1759
    %2272 = vmatpush.bf16.msra.mxu0 %v1752
    %2273 = vmatpush.bf16.msra.mxu0 %v1745
    %2274 = vmatpush.bf16.msra.mxu0 %v1738
    %2275 = vmatpush.bf16.msra.mxu0 %v1731
    %2276 = vmatpush.bf16.msra.mxu0 %v1724
    %2277 = vmatpush.bf16.msra.mxu0 %v1717
    %2278 = vmatpush.bf16.msra.mxu0 %v1710
    %2279 = vmatmul.bf16.gmra.mxu0 %v454
    %v2280 = vpop.f32.mrf.mxu0
    %v2281 = vadd.f32 %v2268, %v2280
    %v2282 = vpop.f32.mrf.mxu0
    %2283 = vdwg.mxu0
    %2284 = vmatpush.bf16.msra.mxu0 %v1815
    %2285 = vmatpush.bf16.msra.mxu0 %v1808
    %2286 = vmatpush.bf16.msra.mxu0 %v1801
    %2287 = vmatpush.bf16.msra.mxu0 %v1794
    %2288 = vmatpush.bf16.msra.mxu0 %v1787
    %2289 = vmatpush.bf16.msra.mxu0 %v1780
    %2290 = vmatpush.bf16.msra.mxu0 %v1773
    %2291 = vmatpush.bf16.msra.mxu0 %v1766
    %2292 = vmatmul.bf16.gmra.mxu0 %v455
    %v2293 = vpop.f32.mrf.mxu0
    %v2294 = vadd.f32 %v2281, %v2293
    %v2295 = vpop.f32.mrf.mxu0
    %2296 = vdwg.mxu0
    %2297 = vmatpush.bf16.msra.mxu0 %v1871
    %2298 = vmatpush.bf16.msra.mxu0 %v1864
    %2299 = vmatpush.bf16.msra.mxu0 %v1857
    %2300 = vmatpush.bf16.msra.mxu0 %v1850
    %2301 = vmatpush.bf16.msra.mxu0 %v1843
    %2302 = vmatpush.bf16.msra.mxu0 %v1836
    %2303 = vmatpush.bf16.msra.mxu0 %v1829
    %2304 = vmatpush.bf16.msra.mxu0 %v1822
    %2305 = vmatmul.bf16.gmra.mxu0 %v456
    %v2306 = vpop.f32.mrf.mxu0
    %v2307 = vadd.f32 %v2294, %v2306
    %v2308 = vpop.f32.mrf.mxu0
    %2309 = vdwg.mxu0
    %2310 = vmatpush.bf16.msra.mxu0 0
    %2311 = vmatpush.bf16.msra.mxu0 0
    %2312 = vmatpush.bf16.msra.mxu0 0
    %2313 = vmatpush.bf16.msra.mxu0 0
    %2314 = vmatpush.bf16.msra.mxu0 0
    %2315 = vmatpush.bf16.msra.mxu0 0
    %2316 = vmatpush.bf16.msra.mxu0 0
    %2317 = vmatpush.bf16.msra.mxu0 %v1878
    %2318 = vmatmul.bf16.gmra.mxu0 %v2230
    %v2319 = vpop.f32.mrf.mxu0
    %v2320 = vadd.f32 %v2307, %v2319
    %v2321 = vpop.f32.mrf.mxu0
    %2322 = vdwg.mxu0
    %2323 = vmatpush.bf16.msra.mxu0 %v1592
    %2324 = vmatpush.bf16.msra.mxu0 %v1585
    %2325 = vmatpush.bf16.msra.mxu0 %v1578
    %2326 = vmatpush.bf16.msra.mxu0 %v1571
    %2327 = vmatpush.bf16.msra.mxu0 %v1564
    %2328 = vmatpush.bf16.msra.mxu0 %v1557
    %2329 = vmatpush.bf16.msra.mxu0 %v1550
    %2330 = vmatpush.bf16.msra.mxu0 %v1543
    %2331 = vmatmul.bf16.gmra.mxu0 %v451
    %v2332 = vpop.f32.mrf.mxu0
    %v2333 = vadd.f32 %v427, %v2332
    %v2334 = vpop.f32.mrf.mxu0
    %2335 = vdwg.mxu0
    %2336 = vmatpush.bf16.msra.mxu0 %v1648
    %2337 = vmatpush.bf16.msra.mxu0 %v1641
    %2338 = vmatpush.bf16.msra.mxu0 %v1634
    %2339 = vmatpush.bf16.msra.mxu0 %v1627
    %2340 = vmatpush.bf16.msra.mxu0 %v1620
    %2341 = vmatpush.bf16.msra.mxu0 %v1613
    %2342 = vmatpush.bf16.msra.mxu0 %v1606
    %2343 = vmatpush.bf16.msra.mxu0 %v1599
    %2344 = vmatmul.bf16.gmra.mxu0 %v452
    %v2345 = vpop.f32.mrf.mxu0
    %v2346 = vadd.f32 %v2333, %v2345
    %v2347 = vpop.f32.mrf.mxu0
    %2348 = vdwg.mxu0
    %2349 = vmatpush.bf16.msra.mxu0 %v1704
    %2350 = vmatpush.bf16.msra.mxu0 %v1697
    %2351 = vmatpush.bf16.msra.mxu0 %v1690
    %2352 = vmatpush.bf16.msra.mxu0 %v1683
    %2353 = vmatpush.bf16.msra.mxu0 %v1676
    %2354 = vmatpush.bf16.msra.mxu0 %v1669
    %2355 = vmatpush.bf16.msra.mxu0 %v1662
    %2356 = vmatpush.bf16.msra.mxu0 %v1655
    %2357 = vmatmul.bf16.gmra.mxu0 %v453
    %v2358 = vpop.f32.mrf.mxu0
    %v2359 = vadd.f32 %v2346, %v2358
    %v2360 = vpop.f32.mrf.mxu0
    %2361 = vdwg.mxu0
    %2362 = vmatpush.bf16.msra.mxu0 %v1760
    %2363 = vmatpush.bf16.msra.mxu0 %v1753
    %2364 = vmatpush.bf16.msra.mxu0 %v1746
    %2365 = vmatpush.bf16.msra.mxu0 %v1739
    %2366 = vmatpush.bf16.msra.mxu0 %v1732
    %2367 = vmatpush.bf16.msra.mxu0 %v1725
    %2368 = vmatpush.bf16.msra.mxu0 %v1718
    %2369 = vmatpush.bf16.msra.mxu0 %v1711
    %2370 = vmatmul.bf16.gmra.mxu0 %v454
    %v2371 = vpop.f32.mrf.mxu0
    %v2372 = vadd.f32 %v2359, %v2371
    %v2373 = vpop.f32.mrf.mxu0
    %2374 = vdwg.mxu0
    %2375 = vmatpush.bf16.msra.mxu0 %v1816
    %2376 = vmatpush.bf16.msra.mxu0 %v1809
    %2377 = vmatpush.bf16.msra.mxu0 %v1802
    %2378 = vmatpush.bf16.msra.mxu0 %v1795
    %2379 = vmatpush.bf16.msra.mxu0 %v1788
    %2380 = vmatpush.bf16.msra.mxu0 %v1781
    %2381 = vmatpush.bf16.msra.mxu0 %v1774
    %2382 = vmatpush.bf16.msra.mxu0 %v1767
    %2383 = vmatmul.bf16.gmra.mxu0 %v455
    %v2384 = vpop.f32.mrf.mxu0
    %v2385 = vadd.f32 %v2372, %v2384
    %v2386 = vpop.f32.mrf.mxu0
    %2387 = vdwg.mxu0
    %2388 = vmatpush.bf16.msra.mxu0 %v1872
    %2389 = vmatpush.bf16.msra.mxu0 %v1865
    %2390 = vmatpush.bf16.msra.mxu0 %v1858
    %2391 = vmatpush.bf16.msra.mxu0 %v1851
    %2392 = vmatpush.bf16.msra.mxu0 %v1844
    %2393 = vmatpush.bf16.msra.mxu0 %v1837
    %2394 = vmatpush.bf16.msra.mxu0 %v1830
    %2395 = vmatpush.bf16.msra.mxu0 %v1823
    %2396 = vmatmul.bf16.gmra.mxu0 %v456
    %v2397 = vpop.f32.mrf.mxu0
    %v2398 = vadd.f32 %v2385, %v2397
    %v2399 = vpop.f32.mrf.mxu0
    %2400 = vdwg.mxu0
    %2401 = vmatpush.bf16.msra.mxu0 0
    %2402 = vmatpush.bf16.msra.mxu0 0
    %2403 = vmatpush.bf16.msra.mxu0 0
    %2404 = vmatpush.bf16.msra.mxu0 0
    %2405 = vmatpush.bf16.msra.mxu0 0
    %2406 = vmatpush.bf16.msra.mxu0 0
    %2407 = vmatpush.bf16.msra.mxu0 0
    %2408 = vmatpush.bf16.msra.mxu0 %v1879
    %2409 = vmatmul.bf16.gmra.mxu0 %v2230
    %v2410 = vpop.f32.mrf.mxu0
    %v2411 = vadd.f32 %v2398, %v2410
    %v2412 = vpop.f32.mrf.mxu0
    %2413 = vdwg.mxu0
    %2414 = vmatpush.bf16.msra.mxu0 %v1593
    %2415 = vmatpush.bf16.msra.mxu0 %v1586
    %2416 = vmatpush.bf16.msra.mxu0 %v1579
    %2417 = vmatpush.bf16.msra.mxu0 %v1572
    %2418 = vmatpush.bf16.msra.mxu0 %v1565
    %2419 = vmatpush.bf16.msra.mxu0 %v1558
    %2420 = vmatpush.bf16.msra.mxu0 %v1551
    %2421 = vmatpush.bf16.msra.mxu0 %v1544
    %2422 = vmatmul.bf16.gmra.mxu0 %v451
    %v2423 = vpop.f32.mrf.mxu0
    %v2424 = vadd.f32 %v428, %v2423
    %v2425 = vpop.f32.mrf.mxu0
    %2426 = vdwg.mxu0
    %2427 = vmatpush.bf16.msra.mxu0 %v1649
    %2428 = vmatpush.bf16.msra.mxu0 %v1642
    %2429 = vmatpush.bf16.msra.mxu0 %v1635
    %2430 = vmatpush.bf16.msra.mxu0 %v1628
    %2431 = vmatpush.bf16.msra.mxu0 %v1621
    %2432 = vmatpush.bf16.msra.mxu0 %v1614
    %2433 = vmatpush.bf16.msra.mxu0 %v1607
    %2434 = vmatpush.bf16.msra.mxu0 %v1600
    %2435 = vmatmul.bf16.gmra.mxu0 %v452
    %v2436 = vpop.f32.mrf.mxu0
    %v2437 = vadd.f32 %v2424, %v2436
    %v2438 = vpop.f32.mrf.mxu0
    %2439 = vdwg.mxu0
    %2440 = vmatpush.bf16.msra.mxu0 %v1705
    %2441 = vmatpush.bf16.msra.mxu0 %v1698
    %2442 = vmatpush.bf16.msra.mxu0 %v1691
    %2443 = vmatpush.bf16.msra.mxu0 %v1684
    %2444 = vmatpush.bf16.msra.mxu0 %v1677
    %2445 = vmatpush.bf16.msra.mxu0 %v1670
    %2446 = vmatpush.bf16.msra.mxu0 %v1663
    %2447 = vmatpush.bf16.msra.mxu0 %v1656
    %2448 = vmatmul.bf16.gmra.mxu0 %v453
    %v2449 = vpop.f32.mrf.mxu0
    %v2450 = vadd.f32 %v2437, %v2449
    %v2451 = vpop.f32.mrf.mxu0
    %2452 = vdwg.mxu0
    %2453 = vmatpush.bf16.msra.mxu0 %v1761
    %2454 = vmatpush.bf16.msra.mxu0 %v1754
    %2455 = vmatpush.bf16.msra.mxu0 %v1747
    %2456 = vmatpush.bf16.msra.mxu0 %v1740
    %2457 = vmatpush.bf16.msra.mxu0 %v1733
    %2458 = vmatpush.bf16.msra.mxu0 %v1726
    %2459 = vmatpush.bf16.msra.mxu0 %v1719
    %2460 = vmatpush.bf16.msra.mxu0 %v1712
    %2461 = vmatmul.bf16.gmra.mxu0 %v454
    %v2462 = vpop.f32.mrf.mxu0
    %v2463 = vadd.f32 %v2450, %v2462
    %v2464 = vpop.f32.mrf.mxu0
    %2465 = vdwg.mxu0
    %2466 = vmatpush.bf16.msra.mxu0 %v1817
    %2467 = vmatpush.bf16.msra.mxu0 %v1810
    %2468 = vmatpush.bf16.msra.mxu0 %v1803
    %2469 = vmatpush.bf16.msra.mxu0 %v1796
    %2470 = vmatpush.bf16.msra.mxu0 %v1789
    %2471 = vmatpush.bf16.msra.mxu0 %v1782
    %2472 = vmatpush.bf16.msra.mxu0 %v1775
    %2473 = vmatpush.bf16.msra.mxu0 %v1768
    %2474 = vmatmul.bf16.gmra.mxu0 %v455
    %v2475 = vpop.f32.mrf.mxu0
    %v2476 = vadd.f32 %v2463, %v2475
    %v2477 = vpop.f32.mrf.mxu0
    %2478 = vdwg.mxu0
    %2479 = vmatpush.bf16.msra.mxu0 %v1873
    %2480 = vmatpush.bf16.msra.mxu0 %v1866
    %2481 = vmatpush.bf16.msra.mxu0 %v1859
    %2482 = vmatpush.bf16.msra.mxu0 %v1852
    %2483 = vmatpush.bf16.msra.mxu0 %v1845
    %2484 = vmatpush.bf16.msra.mxu0 %v1838
    %2485 = vmatpush.bf16.msra.mxu0 %v1831
    %2486 = vmatpush.bf16.msra.mxu0 %v1824
    %2487 = vmatmul.bf16.gmra.mxu0 %v456
    %v2488 = vpop.f32.mrf.mxu0
    %v2489 = vadd.f32 %v2476, %v2488
    %v2490 = vpop.f32.mrf.mxu0
    %2491 = vdwg.mxu0
    %2492 = vmatpush.bf16.msra.mxu0 0
    %2493 = vmatpush.bf16.msra.mxu0 0
    %2494 = vmatpush.bf16.msra.mxu0 0
    %2495 = vmatpush.bf16.msra.mxu0 0
    %2496 = vmatpush.bf16.msra.mxu0 0
    %2497 = vmatpush.bf16.msra.mxu0 0
    %2498 = vmatpush.bf16.msra.mxu0 0
    %2499 = vmatpush.bf16.msra.mxu0 %v1880
    %2500 = vmatmul.bf16.gmra.mxu0 %v2230
    %v2501 = vpop.f32.mrf.mxu0
    %v2502 = vadd.f32 %v2489, %v2501
    %v2503 = vpop.f32.mrf.mxu0
    %2504 = vdwg.mxu0
    %2505 = vmatpush.bf16.msra.mxu0 %v1594
    %2506 = vmatpush.bf16.msra.mxu0 %v1587
    %2507 = vmatpush.bf16.msra.mxu0 %v1580
    %2508 = vmatpush.bf16.msra.mxu0 %v1573
    %2509 = vmatpush.bf16.msra.mxu0 %v1566
    %2510 = vmatpush.bf16.msra.mxu0 %v1559
    %2511 = vmatpush.bf16.msra.mxu0 %v1552
    %2512 = vmatpush.bf16.msra.mxu0 %v1545
    %2513 = vmatmul.bf16.gmra.mxu0 %v451
    %v2514 = vpop.f32.mrf.mxu0
    %v2515 = vadd.f32 %v429, %v2514
    %v2516 = vpop.f32.mrf.mxu0
    %2517 = vdwg.mxu0
    %2518 = vmatpush.bf16.msra.mxu0 %v1650
    %2519 = vmatpush.bf16.msra.mxu0 %v1643
    %2520 = vmatpush.bf16.msra.mxu0 %v1636
    %2521 = vmatpush.bf16.msra.mxu0 %v1629
    %2522 = vmatpush.bf16.msra.mxu0 %v1622
    %2523 = vmatpush.bf16.msra.mxu0 %v1615
    %2524 = vmatpush.bf16.msra.mxu0 %v1608
    %2525 = vmatpush.bf16.msra.mxu0 %v1601
    %2526 = vmatmul.bf16.gmra.mxu0 %v452
    %v2527 = vpop.f32.mrf.mxu0
    %v2528 = vadd.f32 %v2515, %v2527
    %v2529 = vpop.f32.mrf.mxu0
    %2530 = vdwg.mxu0
    %2531 = vmatpush.bf16.msra.mxu0 %v1706
    %2532 = vmatpush.bf16.msra.mxu0 %v1699
    %2533 = vmatpush.bf16.msra.mxu0 %v1692
    %2534 = vmatpush.bf16.msra.mxu0 %v1685
    %2535 = vmatpush.bf16.msra.mxu0 %v1678
    %2536 = vmatpush.bf16.msra.mxu0 %v1671
    %2537 = vmatpush.bf16.msra.mxu0 %v1664
    %2538 = vmatpush.bf16.msra.mxu0 %v1657
    %2539 = vmatmul.bf16.gmra.mxu0 %v453
    %v2540 = vpop.f32.mrf.mxu0
    %v2541 = vadd.f32 %v2528, %v2540
    %v2542 = vpop.f32.mrf.mxu0
    %2543 = vdwg.mxu0
    %2544 = vmatpush.bf16.msra.mxu0 %v1762
    %2545 = vmatpush.bf16.msra.mxu0 %v1755
    %2546 = vmatpush.bf16.msra.mxu0 %v1748
    %2547 = vmatpush.bf16.msra.mxu0 %v1741
    %2548 = vmatpush.bf16.msra.mxu0 %v1734
    %2549 = vmatpush.bf16.msra.mxu0 %v1727
    %2550 = vmatpush.bf16.msra.mxu0 %v1720
    %2551 = vmatpush.bf16.msra.mxu0 %v1713
    %2552 = vmatmul.bf16.gmra.mxu0 %v454
    %v2553 = vpop.f32.mrf.mxu0
    %v2554 = vadd.f32 %v2541, %v2553
    %v2555 = vpop.f32.mrf.mxu0
    %2556 = vdwg.mxu0
    %2557 = vmatpush.bf16.msra.mxu0 %v1818
    %2558 = vmatpush.bf16.msra.mxu0 %v1811
    %2559 = vmatpush.bf16.msra.mxu0 %v1804
    %2560 = vmatpush.bf16.msra.mxu0 %v1797
    %2561 = vmatpush.bf16.msra.mxu0 %v1790
    %2562 = vmatpush.bf16.msra.mxu0 %v1783
    %2563 = vmatpush.bf16.msra.mxu0 %v1776
    %2564 = vmatpush.bf16.msra.mxu0 %v1769
    %2565 = vmatmul.bf16.gmra.mxu0 %v455
    %v2566 = vpop.f32.mrf.mxu0
    %v2567 = vadd.f32 %v2554, %v2566
    %v2568 = vpop.f32.mrf.mxu0
    %2569 = vdwg.mxu0
    %2570 = vmatpush.bf16.msra.mxu0 %v1874
    %2571 = vmatpush.bf16.msra.mxu0 %v1867
    %2572 = vmatpush.bf16.msra.mxu0 %v1860
    %2573 = vmatpush.bf16.msra.mxu0 %v1853
    %2574 = vmatpush.bf16.msra.mxu0 %v1846
    %2575 = vmatpush.bf16.msra.mxu0 %v1839
    %2576 = vmatpush.bf16.msra.mxu0 %v1832
    %2577 = vmatpush.bf16.msra.mxu0 %v1825
    %2578 = vmatmul.bf16.gmra.mxu0 %v456
    %v2579 = vpop.f32.mrf.mxu0
    %v2580 = vadd.f32 %v2567, %v2579
    %v2581 = vpop.f32.mrf.mxu0
    %2582 = vdwg.mxu0
    %2583 = vmatpush.bf16.msra.mxu0 0
    %2584 = vmatpush.bf16.msra.mxu0 0
    %2585 = vmatpush.bf16.msra.mxu0 0
    %2586 = vmatpush.bf16.msra.mxu0 0
    %2587 = vmatpush.bf16.msra.mxu0 0
    %2588 = vmatpush.bf16.msra.mxu0 0
    %2589 = vmatpush.bf16.msra.mxu0 0
    %2590 = vmatpush.bf16.msra.mxu0 %v1881
    %2591 = vmatmul.bf16.gmra.mxu0 %v2230
    %v2592 = vpop.f32.mrf.mxu0
    %v2593 = vadd.f32 %v2580, %v2592
    %v2594 = vpop.f32.mrf.mxu0
    %2595 = vdwg.mxu0
    %2596 = vmatpush.bf16.msra.mxu0 %v1595
    %2597 = vmatpush.bf16.msra.mxu0 %v1588
    %2598 = vmatpush.bf16.msra.mxu0 %v1581
    %2599 = vmatpush.bf16.msra.mxu0 %v1574
    %2600 = vmatpush.bf16.msra.mxu0 %v1567
    %2601 = vmatpush.bf16.msra.mxu0 %v1560
    %2602 = vmatpush.bf16.msra.mxu0 %v1553
    %2603 = vmatpush.bf16.msra.mxu0 %v1546
    %2604 = vmatmul.bf16.gmra.mxu0 %v451
    %v2605 = vpop.f32.mrf.mxu0
    %v2606 = vadd.f32 %v430, %v2605
    %v2607 = vpop.f32.mrf.mxu0
    %2608 = vdwg.mxu0
    %2609 = vmatpush.bf16.msra.mxu0 %v1651
    %2610 = vmatpush.bf16.msra.mxu0 %v1644
    %2611 = vmatpush.bf16.msra.mxu0 %v1637
    %2612 = vmatpush.bf16.msra.mxu0 %v1630
    %2613 = vmatpush.bf16.msra.mxu0 %v1623
    %2614 = vmatpush.bf16.msra.mxu0 %v1616
    %2615 = vmatpush.bf16.msra.mxu0 %v1609
    %2616 = vmatpush.bf16.msra.mxu0 %v1602
    %2617 = vmatmul.bf16.gmra.mxu0 %v452
    %v2618 = vpop.f32.mrf.mxu0
    %v2619 = vadd.f32 %v2606, %v2618
    %v2620 = vpop.f32.mrf.mxu0
    %2621 = vdwg.mxu0
    %2622 = vmatpush.bf16.msra.mxu0 %v1707
    %2623 = vmatpush.bf16.msra.mxu0 %v1700
    %2624 = vmatpush.bf16.msra.mxu0 %v1693
    %2625 = vmatpush.bf16.msra.mxu0 %v1686
    %2626 = vmatpush.bf16.msra.mxu0 %v1679
    %2627 = vmatpush.bf16.msra.mxu0 %v1672
    %2628 = vmatpush.bf16.msra.mxu0 %v1665
    %2629 = vmatpush.bf16.msra.mxu0 %v1658
    %2630 = vmatmul.bf16.gmra.mxu0 %v453
    %v2631 = vpop.f32.mrf.mxu0
    %v2632 = vadd.f32 %v2619, %v2631
    %v2633 = vpop.f32.mrf.mxu0
    %2634 = vdwg.mxu0
    %2635 = vmatpush.bf16.msra.mxu0 %v1763
    %2636 = vmatpush.bf16.msra.mxu0 %v1756
    %2637 = vmatpush.bf16.msra.mxu0 %v1749
    %2638 = vmatpush.bf16.msra.mxu0 %v1742
    %2639 = vmatpush.bf16.msra.mxu0 %v1735
    %2640 = vmatpush.bf16.msra.mxu0 %v1728
    %2641 = vmatpush.bf16.msra.mxu0 %v1721
    %2642 = vmatpush.bf16.msra.mxu0 %v1714
    %2643 = vmatmul.bf16.gmra.mxu0 %v454
    %v2644 = vpop.f32.mrf.mxu0
    %v2645 = vadd.f32 %v2632, %v2644
    %v2646 = vpop.f32.mrf.mxu0
    %2647 = vdwg.mxu0
    %2648 = vmatpush.bf16.msra.mxu0 %v1819
    %2649 = vmatpush.bf16.msra.mxu0 %v1812
    %2650 = vmatpush.bf16.msra.mxu0 %v1805
    %2651 = vmatpush.bf16.msra.mxu0 %v1798
    %2652 = vmatpush.bf16.msra.mxu0 %v1791
    %2653 = vmatpush.bf16.msra.mxu0 %v1784
    %2654 = vmatpush.bf16.msra.mxu0 %v1777
    %2655 = vmatpush.bf16.msra.mxu0 %v1770
    %2656 = vmatmul.bf16.gmra.mxu0 %v455
    %v2657 = vpop.f32.mrf.mxu0
    %v2658 = vadd.f32 %v2645, %v2657
    %v2659 = vpop.f32.mrf.mxu0
    %2660 = vdwg.mxu0
    %2661 = vmatpush.bf16.msra.mxu0 %v1875
    %2662 = vmatpush.bf16.msra.mxu0 %v1868
    %2663 = vmatpush.bf16.msra.mxu0 %v1861
    %2664 = vmatpush.bf16.msra.mxu0 %v1854
    %2665 = vmatpush.bf16.msra.mxu0 %v1847
    %2666 = vmatpush.bf16.msra.mxu0 %v1840
    %2667 = vmatpush.bf16.msra.mxu0 %v1833
    %2668 = vmatpush.bf16.msra.mxu0 %v1826
    %2669 = vmatmul.bf16.gmra.mxu0 %v456
    %v2670 = vpop.f32.mrf.mxu0
    %v2671 = vadd.f32 %v2658, %v2670
    %v2672 = vpop.f32.mrf.mxu0
    %2673 = vdwg.mxu0
    %2674 = vmatpush.bf16.msra.mxu0 0
    %2675 = vmatpush.bf16.msra.mxu0 0
    %2676 = vmatpush.bf16.msra.mxu0 0
    %2677 = vmatpush.bf16.msra.mxu0 0
    %2678 = vmatpush.bf16.msra.mxu0 0
    %2679 = vmatpush.bf16.msra.mxu0 0
    %2680 = vmatpush.bf16.msra.mxu0 0
    %2681 = vmatpush.bf16.msra.mxu0 %v1882
    %2682 = vmatmul.bf16.gmra.mxu0 %v2230
    %v2683 = vpop.f32.mrf.mxu0
    %v2684 = vadd.f32 %v2671, %v2683
    %v2685 = vpop.f32.mrf.mxu0
    %2686 = vdwg.mxu0
    %2687 = vmatpush.bf16.msra.mxu0 %v1596
    %2688 = vmatpush.bf16.msra.mxu0 %v1589
    %2689 = vmatpush.bf16.msra.mxu0 %v1582
    %2690 = vmatpush.bf16.msra.mxu0 %v1575
    %2691 = vmatpush.bf16.msra.mxu0 %v1568
    %2692 = vmatpush.bf16.msra.mxu0 %v1561
    %2693 = vmatpush.bf16.msra.mxu0 %v1554
    %2694 = vmatpush.bf16.msra.mxu0 %v1547
    %2695 = vmatmul.bf16.gmra.mxu0 %v451
    %v2696 = vpop.f32.mrf.mxu0
    %v2697 = vadd.f32 %v431, %v2696
    %v2698 = vpop.f32.mrf.mxu0
    %2699 = vdwg.mxu0
    %2700 = vmatpush.bf16.msra.mxu0 %v1652
    %2701 = vmatpush.bf16.msra.mxu0 %v1645
    %2702 = vmatpush.bf16.msra.mxu0 %v1638
    %2703 = vmatpush.bf16.msra.mxu0 %v1631
    %2704 = vmatpush.bf16.msra.mxu0 %v1624
    %2705 = vmatpush.bf16.msra.mxu0 %v1617
    %2706 = vmatpush.bf16.msra.mxu0 %v1610
    %2707 = vmatpush.bf16.msra.mxu0 %v1603
    %2708 = vmatmul.bf16.gmra.mxu0 %v452
    %v2709 = vpop.f32.mrf.mxu0
    %v2710 = vadd.f32 %v2697, %v2709
    %v2711 = vpop.f32.mrf.mxu0
    %2712 = vdwg.mxu0
    %2713 = vmatpush.bf16.msra.mxu0 %v1708
    %2714 = vmatpush.bf16.msra.mxu0 %v1701
    %2715 = vmatpush.bf16.msra.mxu0 %v1694
    %2716 = vmatpush.bf16.msra.mxu0 %v1687
    %2717 = vmatpush.bf16.msra.mxu0 %v1680
    %2718 = vmatpush.bf16.msra.mxu0 %v1673
    %2719 = vmatpush.bf16.msra.mxu0 %v1666
    %2720 = vmatpush.bf16.msra.mxu0 %v1659
    %2721 = vmatmul.bf16.gmra.mxu0 %v453
    %v2722 = vpop.f32.mrf.mxu0
    %v2723 = vadd.f32 %v2710, %v2722
    %v2724 = vpop.f32.mrf.mxu0
    %2725 = vdwg.mxu0
    %2726 = vmatpush.bf16.msra.mxu0 %v1764
    %2727 = vmatpush.bf16.msra.mxu0 %v1757
    %2728 = vmatpush.bf16.msra.mxu0 %v1750
    %2729 = vmatpush.bf16.msra.mxu0 %v1743
    %2730 = vmatpush.bf16.msra.mxu0 %v1736
    %2731 = vmatpush.bf16.msra.mxu0 %v1729
    %2732 = vmatpush.bf16.msra.mxu0 %v1722
    %2733 = vmatpush.bf16.msra.mxu0 %v1715
    %2734 = vmatmul.bf16.gmra.mxu0 %v454
    %v2735 = vpop.f32.mrf.mxu0
    %v2736 = vadd.f32 %v2723, %v2735
    %v2737 = vpop.f32.mrf.mxu0
    %2738 = vdwg.mxu0
    %2739 = vmatpush.bf16.msra.mxu0 %v1820
    %2740 = vmatpush.bf16.msra.mxu0 %v1813
    %2741 = vmatpush.bf16.msra.mxu0 %v1806
    %2742 = vmatpush.bf16.msra.mxu0 %v1799
    %2743 = vmatpush.bf16.msra.mxu0 %v1792
    %2744 = vmatpush.bf16.msra.mxu0 %v1785
    %2745 = vmatpush.bf16.msra.mxu0 %v1778
    %2746 = vmatpush.bf16.msra.mxu0 %v1771
    %2747 = vmatmul.bf16.gmra.mxu0 %v455
    %v2748 = vpop.f32.mrf.mxu0
    %v2749 = vadd.f32 %v2736, %v2748
    %v2750 = vpop.f32.mrf.mxu0
    %2751 = vdwg.mxu0
    %2752 = vmatpush.bf16.msra.mxu0 %v1876
    %2753 = vmatpush.bf16.msra.mxu0 %v1869
    %2754 = vmatpush.bf16.msra.mxu0 %v1862
    %2755 = vmatpush.bf16.msra.mxu0 %v1855
    %2756 = vmatpush.bf16.msra.mxu0 %v1848
    %2757 = vmatpush.bf16.msra.mxu0 %v1841
    %2758 = vmatpush.bf16.msra.mxu0 %v1834
    %2759 = vmatpush.bf16.msra.mxu0 %v1827
    %2760 = vmatmul.bf16.gmra.mxu0 %v456
    %v2761 = vpop.f32.mrf.mxu0
    %v2762 = vadd.f32 %v2749, %v2761
    %v2763 = vpop.f32.mrf.mxu0
    %2764 = vdwg.mxu0
    %2765 = vmatpush.bf16.msra.mxu0 0
    %2766 = vmatpush.bf16.msra.mxu0 0
    %2767 = vmatpush.bf16.msra.mxu0 0
    %2768 = vmatpush.bf16.msra.mxu0 0
    %2769 = vmatpush.bf16.msra.mxu0 0
    %2770 = vmatpush.bf16.msra.mxu0 0
    %2771 = vmatpush.bf16.msra.mxu0 0
    %2772 = vmatpush.bf16.msra.mxu0 %v1883
    %2773 = vmatmul.bf16.gmra.mxu0 %v2230
    %v2774 = vpop.f32.mrf.mxu0
    %v2775 = vadd.f32 %v2762, %v2774
    %v2776 = vpop.f32.mrf.mxu0
    %2777 = vdwg.mxu0
    %2778 = vmatpush.bf16.msra.mxu0 %v1597
    %2779 = vmatpush.bf16.msra.mxu0 %v1590
    %2780 = vmatpush.bf16.msra.mxu0 %v1583
    %2781 = vmatpush.bf16.msra.mxu0 %v1576
    %2782 = vmatpush.bf16.msra.mxu0 %v1569
    %2783 = vmatpush.bf16.msra.mxu0 %v1562
    %2784 = vmatpush.bf16.msra.mxu0 %v1555
    %2785 = vmatpush.bf16.msra.mxu0 %v1548
    %2786 = vmatmul.bf16.gmra.mxu0 %v451
    %v2787 = vpop.f32.mrf.mxu0
    %v2788 = vadd.f32 %v432, %v2787
    %v2789 = vpop.f32.mrf.mxu0
    %2790 = vdwg.mxu0
    %2791 = vmatpush.bf16.msra.mxu0 %v1653
    %2792 = vmatpush.bf16.msra.mxu0 %v1646
    %2793 = vmatpush.bf16.msra.mxu0 %v1639
    %2794 = vmatpush.bf16.msra.mxu0 %v1632
    %2795 = vmatpush.bf16.msra.mxu0 %v1625
    %2796 = vmatpush.bf16.msra.mxu0 %v1618
    %2797 = vmatpush.bf16.msra.mxu0 %v1611
    %2798 = vmatpush.bf16.msra.mxu0 %v1604
    %2799 = vmatmul.bf16.gmra.mxu0 %v452
    %v2800 = vpop.f32.mrf.mxu0
    %v2801 = vadd.f32 %v2788, %v2800
    %v2802 = vpop.f32.mrf.mxu0
    %2803 = vdwg.mxu0
    %2804 = vmatpush.bf16.msra.mxu0 %v1709
    %2805 = vmatpush.bf16.msra.mxu0 %v1702
    %2806 = vmatpush.bf16.msra.mxu0 %v1695
    %2807 = vmatpush.bf16.msra.mxu0 %v1688
    %2808 = vmatpush.bf16.msra.mxu0 %v1681
    %2809 = vmatpush.bf16.msra.mxu0 %v1674
    %2810 = vmatpush.bf16.msra.mxu0 %v1667
    %2811 = vmatpush.bf16.msra.mxu0 %v1660
    %2812 = vmatmul.bf16.gmra.mxu0 %v453
    %v2813 = vpop.f32.mrf.mxu0
    %v2814 = vadd.f32 %v2801, %v2813
    %v2815 = vpop.f32.mrf.mxu0
    %2816 = vdwg.mxu0
    %2817 = vmatpush.bf16.msra.mxu0 %v1765
    %2818 = vmatpush.bf16.msra.mxu0 %v1758
    %2819 = vmatpush.bf16.msra.mxu0 %v1751
    %2820 = vmatpush.bf16.msra.mxu0 %v1744
    %2821 = vmatpush.bf16.msra.mxu0 %v1737
    %2822 = vmatpush.bf16.msra.mxu0 %v1730
    %2823 = vmatpush.bf16.msra.mxu0 %v1723
    %2824 = vmatpush.bf16.msra.mxu0 %v1716
    %2825 = vmatmul.bf16.gmra.mxu0 %v454
    %v2826 = vpop.f32.mrf.mxu0
    %v2827 = vadd.f32 %v2814, %v2826
    %v2828 = vpop.f32.mrf.mxu0
    %2829 = vdwg.mxu0
    %2830 = vmatpush.bf16.msra.mxu0 %v1821
    %2831 = vmatpush.bf16.msra.mxu0 %v1814
    %2832 = vmatpush.bf16.msra.mxu0 %v1807
    %2833 = vmatpush.bf16.msra.mxu0 %v1800
    %2834 = vmatpush.bf16.msra.mxu0 %v1793
    %2835 = vmatpush.bf16.msra.mxu0 %v1786
    %2836 = vmatpush.bf16.msra.mxu0 %v1779
    %2837 = vmatpush.bf16.msra.mxu0 %v1772
    %2838 = vmatmul.bf16.gmra.mxu0 %v455
    %v2839 = vpop.f32.mrf.mxu0
    %v2840 = vadd.f32 %v2827, %v2839
    %v2841 = vpop.f32.mrf.mxu0
    %2842 = vdwg.mxu0
    %2843 = vmatpush.bf16.msra.mxu0 %v1877
    %2844 = vmatpush.bf16.msra.mxu0 %v1870
    %2845 = vmatpush.bf16.msra.mxu0 %v1863
    %2846 = vmatpush.bf16.msra.mxu0 %v1856
    %2847 = vmatpush.bf16.msra.mxu0 %v1849
    %2848 = vmatpush.bf16.msra.mxu0 %v1842
    %2849 = vmatpush.bf16.msra.mxu0 %v1835
    %2850 = vmatpush.bf16.msra.mxu0 %v1828
    %2851 = vmatmul.bf16.gmra.mxu0 %v456
    %v2852 = vpop.f32.mrf.mxu0
    %v2853 = vadd.f32 %v2840, %v2852
    %v2854 = vpop.f32.mrf.mxu0
    %2855 = vdwg.mxu0
    %2856 = vmatpush.bf16.msra.mxu0 0
    %2857 = vmatpush.bf16.msra.mxu0 0
    %2858 = vmatpush.bf16.msra.mxu0 0
    %2859 = vmatpush.bf16.msra.mxu0 0
    %2860 = vmatpush.bf16.msra.mxu0 0
    %2861 = vmatpush.bf16.msra.mxu0 0
    %2862 = vmatpush.bf16.msra.mxu0 0
    %2863 = vmatpush.bf16.msra.mxu0 %v1884
    %2864 = vmatmul.bf16.gmra.mxu0 %v2230
    %v2865 = vpop.f32.mrf.mxu0
    %v2866 = vadd.f32 %v2853, %v2865
    %v2867 = vpop.f32.mrf.mxu0
    %2868 = vdwg.mxu0
    %v2869 = vmax.f32 %v2320, 0.0
    %v2870 = vmax.f32 %v2411, 0.0
    %v2871 = vmax.f32 %v2502, 0.0
    %v2872 = vmax.f32 %v2593, 0.0
    %v2873 = vmax.f32 %v2684, 0.0
    %v2874 = vmax.f32 %v2775, 0.0
    %v2875 = vmax.f32 %v2866, 0.0
    %v2876 = vpack.c.bf16 %v2869, %v2869
    %v2877 = vpack.c.bf16 %v2870, %v2870
    %v2878 = vpack.c.bf16 %v2871, %v2871
    %v2879 = vpack.c.bf16 %v2872, %v2872
    %v2880 = vpack.c.bf16 %v2873, %v2873
    %v2881 = vpack.c.bf16 %v2874, %v2874
    %v2882 = vpack.c.bf16 %v2875, %v2875
    %v2883 = vld [vmem:[%s3] sm:$0xff]
    %v2884 = vld [vmem:[%s3 + $0x8] sm:$0xff]
    %v2885 = vld [vmem:[%s3 + $0x10] sm:$0xff]
    %v2886 = vld [vmem:[%s3 + $0x18] sm:$0xf]
    %v2887 = vld [vmem:[%s3 + $0x1c] sm:$0xff]
    %v2888 = vld [vmem:[%s3 + $0x24] sm:$0xff]
    %v2889 = vld [vmem:[%s3 + $0x2c] sm:$0xff]
    %v2890 = vld [vmem:[%s3 + $0x34] sm:$0xf]
    %v2891 = vld [vmem:[%s3 + $0x38] sm:$0xff]
    %v2892 = vld [vmem:[%s3 + $0x40] sm:$0xff]
    %v2893 = vld [vmem:[%s3 + $0x48] sm:$0xff]
    %v2894 = vld [vmem:[%s3 + $0x50] sm:$0xf]
    %v2895 = vld [vmem:[%s3 + $0x54] sm:$0xff]
    %v2896 = vld [vmem:[%s3 + $0x5c] sm:$0xff]
    %v2897 = vld [vmem:[%s3 + $0x64] sm:$0xff]
    %v2898 = vld [vmem:[%s3 + $0x6c] sm:$0xf]
    %v2899 = vld [vmem:[%s3 + $0x70] sm:$0xff]
    %v2900 = vld [vmem:[%s3 + $0x78] sm:$0xff]
    %v2901 = vld [vmem:[%s3 + $0x80] sm:$0xff]
    %v2902 = vld [vmem:[%s3 + $0x88] sm:$0xf]
    %v2903 = vld [vmem:[%s3 + $0x8c] sm:$0xff]
    %v2904 = vld [vmem:[%s3 + $0x94] sm:$0xff]
    %v2905 = vld [vmem:[%s3 + $0x9c] sm:$0xff]
    %v2906 = vld [vmem:[%s3 + $0xa4] sm:$0xf]
    %v2907 = vld [vmem:[%s3 + $0xa8] sm:$0xff]
    %v2908 = vld [vmem:[%s3 + $0xb0] sm:$0xff]
    %v2909 = vld [vmem:[%s3 + $0xb8] sm:$0xff]
    %v2910 = vld [vmem:[%s3 + $0xc0] sm:$0xf]
    %v2911 = vld [vmem:[%s3 + $0xc4] sm:$0xff]
    %v2912 = vld [vmem:[%s3 + $0xcc] sm:$0xff]
    %v2913 = vld [vmem:[%s3 + $0xd4] sm:$0xff]
    %v2914 = vld [vmem:[%s3 + $0xdc] sm:$0xf]
    %v2915 = vld [vmem:[%s3 + $0xe0] sm:$0xff]
    %v2916 = vld [vmem:[%s3 + $0xe8] sm:$0xff]
    %v2917 = vld [vmem:[%s3 + $0xf0] sm:$0xff]
    %v2918 = vld [vmem:[%s3 + $0xf8] sm:$0xf]
    %v2919 = vld [vmem:[%s3 + $0xfc] sm:$0xff]
    %v2920 = vld [vmem:[%s3 + $0x104] sm:$0xff]
    %v2921 = vld [vmem:[%s3 + $0x10c] sm:$0xff]
    %v2922 = vld [vmem:[%s3 + $0x114] sm:$0xf]
    %v2923 = vld [vmem:[%s3 + $0x118] sm:$0xff]
    %v2924 = vld [vmem:[%s3 + $0x120] sm:$0xff]
    %v2925 = vld [vmem:[%s3 + $0x128] sm:$0xff]
    %v2926 = vld [vmem:[%s3 + $0x130] sm:$0xf]
    %v2927 = vld [vmem:[%s3 + $0x134] sm:$0xff]
    %v2928 = vld [vmem:[%s3 + $0x13c] sm:$0xff]
    %v2929 = vld [vmem:[%s3 + $0x144] sm:$0xff]
    %v2930 = vld [vmem:[%s3 + $0x14c] sm:$0xf]
    %v2931 = vld [vmem:[%s3 + $0x150] sm:$0xff]
    %v2932 = vld [vmem:[%s3 + $0x158] sm:$0xff]
    %v2933 = vld [vmem:[%s3 + $0x160] sm:$0xff]
    %v2934 = vld [vmem:[%s3 + $0x168] sm:$0xf]
    %v2935 = vld [vmem:[%s3 + $0x16c] sm:$0xff]
    %v2936 = vld [vmem:[%s3 + $0x174] sm:$0xff]
    %v2937 = vld [vmem:[%s3 + $0x17c] sm:$0xff]
    %v2938 = vld [vmem:[%s3 + $0x184] sm:$0xf]
    %v2939 = vld [vmem:[%s3 + $0x188] sm:$0xff]
    %v2940 = vld [vmem:[%s3 + $0x190] sm:$0xff]
    %v2941 = vld [vmem:[%s3 + $0x198] sm:$0xff]
    %v2942 = vld [vmem:[%s3 + $0x1a0] sm:$0xf]
    %v2943 = vld [vmem:[%s3 + $0x1a4] sm:$0xff]
    %v2944 = vld [vmem:[%s3 + $0x1ac] sm:$0xff]
    %v2945 = vld [vmem:[%s3 + $0x1b4] sm:$0xff]
    %v2946 = vld [vmem:[%s3 + $0x1bc] sm:$0xf]
    %v2947 = vld [vmem:[%s3 + $0x1c0] sm:$0xff]
    %v2948 = vld [vmem:[%s3 + $0x1c8] sm:$0xff]
    %v2949 = vld [vmem:[%s3 + $0x1d0] sm:$0xff]
    %v2950 = vld [vmem:[%s3 + $0x1d8] sm:$0xf]
    %v2951 = vld [vmem:[%s3 + $0x1dc] sm:$0xff]
    %v2952 = vld [vmem:[%s3 + $0x1e4] sm:$0xff]
    %v2953 = vld [vmem:[%s3 + $0x1ec] sm:$0xff]
    %v2954 = vld [vmem:[%s3 + $0x1f4] sm:$0xf]
    %v2955 = vld [vmem:[%s3 + $0x1f8] sm:$0xff]
    %v2956 = vld [vmem:[%s3 + $0x200] sm:$0xff]
    %v2957 = vld [vmem:[%s3 + $0x208] sm:$0xff]
    %v2958 = vld [vmem:[%s3 + $0x210] sm:$0xf]
    %v2959 = vld [vmem:[%s3 + $0x214] sm:$0xff]
    %v2960 = vld [vmem:[%s3 + $0x21c] sm:$0xff]
    %v2961 = vld [vmem:[%s3 + $0x224] sm:$0xff]
    %v2962 = vld [vmem:[%s3 + $0x22c] sm:$0xf]
    %v2963 = vld [vmem:[%s3 + $0x230] sm:$0xff]
    %v2964 = vld [vmem:[%s3 + $0x238] sm:$0xff]
    %v2965 = vld [vmem:[%s3 + $0x240] sm:$0xff]
    %v2966 = vld [vmem:[%s3 + $0x248] sm:$0xf]
    %v2967 = vld [vmem:[%s3 + $0x24c] sm:$0xff]
    %v2968 = vld [vmem:[%s3 + $0x254] sm:$0xff]
    %v2969 = vld [vmem:[%s3 + $0x25c] sm:$0xff]
    %v2970 = vld [vmem:[%s3 + $0x264] sm:$0xf]
    %v2971 = vld [vmem:[%s3 + $0x268] sm:$0xff]
    %v2972 = vld [vmem:[%s3 + $0x270] sm:$0xff]
    %v2973 = vld [vmem:[%s3 + $0x278] sm:$0xff]
    %v2974 = vld [vmem:[%s3 + $0x280] sm:$0xf]
    %v2975 = vld [vmem:[%s3 + $0x284] sm:$0xff]
    %v2976 = vld [vmem:[%s3 + $0x28c] sm:$0xff]
    %v2977 = vld [vmem:[%s3 + $0x294] sm:$0xff]
    %v2978 = vld [vmem:[%s3 + $0x29c] sm:$0xf]
    %v2979 = vld [vmem:[%s3 + $0x2a0] sm:$0xff]
    %v2980 = vld [vmem:[%s3 + $0x2a8] sm:$0xff]
    %v2981 = vld [vmem:[%s3 + $0x2b0] sm:$0xff]
    %v2982 = vld [vmem:[%s3 + $0x2b8] sm:$0xf]
    %v2983 = vld [vmem:[%s3 + $0x2bc] sm:$0xff]
    %v2984 = vld [vmem:[%s3 + $0x2c4] sm:$0xff]
    %v2985 = vld [vmem:[%s3 + $0x2cc] sm:$0xff]
    %v2986 = vld [vmem:[%s3 + $0x2d4] sm:$0xf]
    %v2987 = vld [vmem:[%s3 + $0x2d8] sm:$0xff]
    %v2988 = vld [vmem:[%s3 + $0x2e0] sm:$0xff]
    %v2989 = vld [vmem:[%s3 + $0x2e8] sm:$0xff]
    %v2990 = vld [vmem:[%s3 + $0x2f0] sm:$0xf]
    %v2991 = vld [vmem:[%s3 + $0x2f4] sm:$0xff]
    %v2992 = vld [vmem:[%s3 + $0x2fc] sm:$0xff]
    %v2993 = vld [vmem:[%s3 + $0x304] sm:$0xff]
    %v2994 = vld [vmem:[%s3 + $0x30c] sm:$0xf]
    %v2995 = vld [vmem:[%s3 + $0x310] sm:$0xff]
    %v2996 = vld [vmem:[%s3 + $0x318] sm:$0xff]
    %v2997 = vld [vmem:[%s3 + $0x320] sm:$0xff]
    %v2998 = vld [vmem:[%s3 + $0x328] sm:$0xf]
    %v2999 = vld [vmem:[%s3 + $0x32c] sm:$0xff]
    %v3000 = vld [vmem:[%s3 + $0x334] sm:$0xff]
    %v3001 = vld [vmem:[%s3 + $0x33c] sm:$0xff]
    %v3002 = vld [vmem:[%s3 + $0x344] sm:$0xf]
    %v3003 = vld [vmem:[%s3 + $0x348] sm:$0xff]
    %v3004 = vld [vmem:[%s3 + $0x350] sm:$0xff]
    %v3005 = vld [vmem:[%s3 + $0x358] sm:$0xff]
    %v3006 = vld [vmem:[%s3 + $0x360] sm:$0xf]
    %v3007 = vld [vmem:[%s3 + $0x364] sm:$0xff]
    %v3008 = vld [vmem:[%s3 + $0x36c] sm:$0xff]
    %v3009 = vld [vmem:[%s3 + $0x374] sm:$0xff]
    %v3010 = vld [vmem:[%s3 + $0x37c] sm:$0xf]
    %v3011 = vld [vmem:[%s3 + $0x380] sm:$0xff]
    %v3012 = vld [vmem:[%s3 + $0x388] sm:$0xff]
    %v3013 = vld [vmem:[%s3 + $0x390] sm:$0xff]
    %v3014 = vld [vmem:[%s3 + $0x398] sm:$0xf]
    %v3015 = vld [vmem:[%s3 + $0x39c] sm:$0xff]
    %v3016 = vld [vmem:[%s3 + $0x3a4] sm:$0xff]
    %v3017 = vld [vmem:[%s3 + $0x3ac] sm:$0xff]
    %v3018 = vld [vmem:[%s3 + $0x3b4] sm:$0xf]
    %v3019 = vld [vmem:[%s3 + $0x3b8] sm:$0xff]
    %v3020 = vld [vmem:[%s3 + $0x3c0] sm:$0xff]
    %v3021 = vld [vmem:[%s3 + $0x3c8] sm:$0xff]
    %v3022 = vld [vmem:[%s3 + $0x3d0] sm:$0xf]
    %v3023 = vld [vmem:[%s3 + $0x3d4] sm:$0xff]
    %v3024 = vld [vmem:[%s3 + $0x3dc] sm:$0xff]
    %v3025 = vld [vmem:[%s3 + $0x3e4] sm:$0xff]
    %v3026 = vld [vmem:[%s3 + $0x3ec] sm:$0xf]
    %v3027 = vld [vmem:[%s3 + $0x3f0] sm:$0xff]
    %v3028 = vld [vmem:[%s3 + $0x3f8] sm:$0xff]
    %v3029 = vld [vmem:[%s3 + $0x400] sm:$0xff]
    %v3030 = vld [vmem:[%s3 + $0x408] sm:$0xf]
    %v3031 = vld [vmem:[%s3 + $0x40c] sm:$0xff]
    %v3032 = vld [vmem:[%s3 + $0x414] sm:$0xff]
    %v3033 = vld [vmem:[%s3 + $0x41c] sm:$0xff]
    %v3034 = vld [vmem:[%s3 + $0x424] sm:$0xf]
    %v3035 = vld [vmem:[%s3 + $0x428] sm:$0xff]
    %v3036 = vld [vmem:[%s3 + $0x430] sm:$0xff]
    %v3037 = vld [vmem:[%s3 + $0x438] sm:$0xff]
    %v3038 = vld [vmem:[%s3 + $0x440] sm:$0xf]
    %v3039 = vld [vmem:[%s3 + $0x444] sm:$0xff]
    %v3040 = vld [vmem:[%s3 + $0x44c] sm:$0xff]
    %v3041 = vld [vmem:[%s3 + $0x454] sm:$0xff]
    %v3042 = vld [vmem:[%s3 + $0x45c] sm:$0xf]
    %v3043 = vld [vmem:[%s3 + $0x460] sm:$0xff]
    %v3044 = vld [vmem:[%s3 + $0x468] sm:$0xff]
    %v3045 = vld [vmem:[%s3 + $0x470] sm:$0xff]
    %v3046 = vld [vmem:[%s3 + $0x478] sm:$0xf]
    %v3047 = vld [vmem:[%s3 + $0x47c] sm:$0xff]
    %v3048 = vld [vmem:[%s3 + $0x484] sm:$0xff]
    %v3049 = vld [vmem:[%s3 + $0x48c] sm:$0xff]
    %v3050 = vld [vmem:[%s3 + $0x494] sm:$0xf]
    %v3051 = vld [vmem:[%s3 + $0x498] sm:$0xff]
    %v3052 = vld [vmem:[%s3 + $0x4a0] sm:$0xff]
    %v3053 = vld [vmem:[%s3 + $0x4a8] sm:$0xff]
    %v3054 = vld [vmem:[%s3 + $0x4b0] sm:$0xf]
    %v3055 = vld [vmem:[%s3 + $0x4b4] sm:$0xff]
    %v3056 = vld [vmem:[%s3 + $0x4bc] sm:$0xff]
    %v3057 = vld [vmem:[%s3 + $0x4c4] sm:$0xff]
    %v3058 = vld [vmem:[%s3 + $0x4cc] sm:$0xf]
    %v3059 = vld [vmem:[%s3 + $0x4d0] sm:$0xff]
    %v3060 = vld [vmem:[%s3 + $0x4d8] sm:$0xff]
    %v3061 = vld [vmem:[%s3 + $0x4e0] sm:$0xff]
    %v3062 = vld [vmem:[%s3 + $0x4e8] sm:$0xf]
    %v3063 = vld [vmem:[%s3 + $0x4ec] sm:$0xff]
    %v3064 = vld [vmem:[%s3 + $0x4f4] sm:$0xff]
    %v3065 = vld [vmem:[%s3 + $0x4fc] sm:$0xff]
    %v3066 = vld [vmem:[%s3 + $0x504] sm:$0xf]
    %v3067 = vld [vmem:[%s3 + $0x508] sm:$0xff]
    %v3068 = vld [vmem:[%s3 + $0x510] sm:$0xff]
    %v3069 = vld [vmem:[%s3 + $0x518] sm:$0xff]
    %v3070 = vld [vmem:[%s3 + $0x520] sm:$0xf]
    %v3071 = vld [vmem:[%s3 + $0x524] sm:$0xff]
    %v3072 = vld [vmem:[%s3 + $0x52c] sm:$0xff]
    %v3073 = vld [vmem:[%s3 + $0x534] sm:$0xff]
    %v3074 = vld [vmem:[%s3 + $0x53c] sm:$0xf]
    %v3075 = vld [vmem:[%s3 + $0x540] sm:$0xff]
    %v3076 = vld [vmem:[%s3 + $0x548] sm:$0xff]
    %v3077 = vld [vmem:[%s3 + $0x550] sm:$0xff]
    %v3078 = vld [vmem:[%s3 + $0x558] sm:$0xf]
    %v3079 = vld [vmem:[%s3 + $0x55c] sm:$0xff]
    %v3080 = vld [vmem:[%s3 + $0x564] sm:$0xff]
    %v3081 = vld [vmem:[%s3 + $0x56c] sm:$0xff]
    %v3082 = vld [vmem:[%s3 + $0x574] sm:$0xf]
    %v3083 = vld [vmem:[%s3 + $0x578] sm:$0xff]
    %v3084 = vld [vmem:[%s3 + $0x580] sm:$0xff]
    %v3085 = vld [vmem:[%s3 + $0x588] sm:$0xff]
    %v3086 = vld [vmem:[%s3 + $0x590] sm:$0xf]
    %v3087 = vld [vmem:[%s3 + $0x594] sm:$0xff]
    %v3088 = vld [vmem:[%s3 + $0x59c] sm:$0xff]
    %v3089 = vld [vmem:[%s3 + $0x5a4] sm:$0xff]
    %v3090 = vld [vmem:[%s3 + $0x5ac] sm:$0xf]
    %v3091 = vld [vmem:[%s3 + $0x5b0] sm:$0xff]
    %v3092 = vld [vmem:[%s3 + $0x5b8] sm:$0xff]
    %v3093 = vld [vmem:[%s3 + $0x5c0] sm:$0xff]
    %v3094 = vld [vmem:[%s3 + $0x5c8] sm:$0xf]
    %v3095 = vld [vmem:[%s3 + $0x5cc] sm:$0xff]
    %v3096 = vld [vmem:[%s3 + $0x5d4] sm:$0xff]
    %v3097 = vld [vmem:[%s3 + $0x5dc] sm:$0xff]
    %v3098 = vld [vmem:[%s3 + $0x5e4] sm:$0xf]
    %v3099 = vld [vmem:[%s3 + $0x5e8] sm:$0xff]
    %v3100 = vld [vmem:[%s3 + $0x5f0] sm:$0xff]
    %v3101 = vld [vmem:[%s3 + $0x5f8] sm:$0xff]
    %v3102 = vld [vmem:[%s3 + $0x600] sm:$0xf]
    %v3103 = vld [vmem:[%s3 + $0x604] sm:$0xff]
    %v3104 = vld [vmem:[%s3 + $0x60c] sm:$0xff]
    %v3105 = vld [vmem:[%s3 + $0x614] sm:$0xff]
    %v3106 = vld [vmem:[%s3 + $0x61c] sm:$0xf]
    %v3107 = vld [vmem:[%s3 + $0x620] sm:$0xff]
    %v3108 = vld [vmem:[%s3 + $0x628] sm:$0xff]
    %v3109 = vld [vmem:[%s3 + $0x630] sm:$0xff]
    %v3110 = vld [vmem:[%s3 + $0x638] sm:$0xf]
    %v3111 = vld [vmem:[%s3 + $0x63c] sm:$0xff]
    %v3112 = vld [vmem:[%s3 + $0x644] sm:$0xff]
    %v3113 = vld [vmem:[%s3 + $0x64c] sm:$0xff]
    %v3114 = vld [vmem:[%s3 + $0x654] sm:$0xf]
    %v3115 = vld [vmem:[%s3 + $0x658] sm:$0xff]
    %v3116 = vld [vmem:[%s3 + $0x660] sm:$0xff]
    %v3117 = vld [vmem:[%s3 + $0x668] sm:$0xff]
    %v3118 = vld [vmem:[%s3 + $0x670] sm:$0xf]
    %v3119 = vld [vmem:[%s3 + $0x674] sm:$0xff]
    %v3120 = vld [vmem:[%s3 + $0x67c] sm:$0xff]
    %v3121 = vld [vmem:[%s3 + $0x684] sm:$0xff]
    %v3122 = vld [vmem:[%s3 + $0x68c] sm:$0xf]
    %v3123 = vld [vmem:[%s3 + $0x690] sm:$0xff]
    %v3124 = vld [vmem:[%s3 + $0x698] sm:$0xff]
    %v3125 = vld [vmem:[%s3 + $0x6a0] sm:$0xff]
    %v3126 = vld [vmem:[%s3 + $0x6a8] sm:$0xf]
    %v3127 = vld [vmem:[%s3 + $0x6ac] sm:$0xff]
    %v3128 = vld [vmem:[%s3 + $0x6b4] sm:$0xff]
    %v3129 = vld [vmem:[%s3 + $0x6bc] sm:$0xff]
    %v3130 = vld [vmem:[%s3 + $0x6c4] sm:$0xf]
    %v3131 = vld [vmem:[%s3 + $0x6c8] sm:$0xff]
    %v3132 = vld [vmem:[%s3 + $0x6d0] sm:$0xff]
    %v3133 = vld [vmem:[%s3 + $0x6d8] sm:$0xff]
    %v3134 = vld [vmem:[%s3 + $0x6e0] sm:$0xf]
    %v3135 = vld [vmem:[%s3 + $0x6e4] sm:$0xff]
    %v3136 = vld [vmem:[%s3 + $0x6ec] sm:$0xff]
    %v3137 = vld [vmem:[%s3 + $0x6f4] sm:$0xff]
    %v3138 = vld [vmem:[%s3 + $0x6fc] sm:$0xf]
    %v3139 = vld [vmem:[%s3 + $0x700] sm:$0xff]
    %v3140 = vld [vmem:[%s3 + $0x708] sm:$0xff]
    %v3141 = vld [vmem:[%s3 + $0x710] sm:$0xff]
    %v3142 = vld [vmem:[%s3 + $0x718] sm:$0xf]
    %v3143 = vld [vmem:[%s3 + $0x71c] sm:$0xff]
    %v3144 = vld [vmem:[%s3 + $0x724] sm:$0xff]
    %v3145 = vld [vmem:[%s3 + $0x72c] sm:$0xff]
    %v3146 = vld [vmem:[%s3 + $0x734] sm:$0xf]
    %v3147 = vld [vmem:[%s3 + $0x738] sm:$0xff]
    %v3148 = vld [vmem:[%s3 + $0x740] sm:$0xff]
    %v3149 = vld [vmem:[%s3 + $0x748] sm:$0xff]
    %v3150 = vld [vmem:[%s3 + $0x750] sm:$0xf]
    %v3151 = vld [vmem:[%s3 + $0x754] sm:$0xff]
    %v3152 = vld [vmem:[%s3 + $0x75c] sm:$0xff]
    %v3153 = vld [vmem:[%s3 + $0x764] sm:$0xff]
    %v3154 = vld [vmem:[%s3 + $0x76c] sm:$0xf]
    %v3155 = vld [vmem:[%s3 + $0x770] sm:$0xff]
    %v3156 = vld [vmem:[%s3 + $0x778] sm:$0xff]
    %v3157 = vld [vmem:[%s3 + $0x780] sm:$0xff]
    %v3158 = vld [vmem:[%s3 + $0x788] sm:$0xf]
    %v3159 = vld [vmem:[%s3 + $0x78c] sm:$0xff]
    %v3160 = vld [vmem:[%s3 + $0x794] sm:$0xff]
    %v3161 = vld [vmem:[%s3 + $0x79c] sm:$0xff]
    %v3162 = vld [vmem:[%s3 + $0x7a4] sm:$0xf]
    %v3163 = vld [vmem:[%s3 + $0x7a8] sm:$0xff]
    %v3164 = vld [vmem:[%s3 + $0x7b0] sm:$0xff]
    %v3165 = vld [vmem:[%s3 + $0x7b8] sm:$0xff]
    %v3166 = vld [vmem:[%s3 + $0x7c0] sm:$0xf]
    %v3167 = vld [vmem:[%s3 + $0x7c4] sm:$0xff]
    %v3168 = vld [vmem:[%s3 + $0x7cc] sm:$0xff]
    %v3169 = vld [vmem:[%s3 + $0x7d4] sm:$0xff]
    %v3170 = vld [vmem:[%s3 + $0x7dc] sm:$0xf]
    %v3171 = vld [vmem:[%s3 + $0x7e0] sm:$0xff]
    %v3172 = vld [vmem:[%s3 + $0x7e8] sm:$0xff]
    %v3173 = vld [vmem:[%s3 + $0x7f0] sm:$0xff]
    %v3174 = vld [vmem:[%s3 + $0x7f8] sm:$0xf]
    %v3175 = vld [vmem:[%s3 + $0x7fc] sm:$0xff]
    %v3176 = vld [vmem:[%s3 + $0x804] sm:$0xff]
    %v3177 = vld [vmem:[%s3 + $0x80c] sm:$0xff]
    %v3178 = vld [vmem:[%s3 + $0x814] sm:$0xf]
    %v3179 = vld [vmem:[%s3 + $0x818] sm:$0xff]
    %v3180 = vld [vmem:[%s3 + $0x820] sm:$0xff]
    %v3181 = vld [vmem:[%s3 + $0x828] sm:$0xff]
    %v3182 = vld [vmem:[%s3 + $0x830] sm:$0xf]
    %v3183 = vld [vmem:[%s3 + $0x834] sm:$0xff]
    %v3184 = vld [vmem:[%s3 + $0x83c] sm:$0xff]
    %v3185 = vld [vmem:[%s3 + $0x844] sm:$0xff]
    %v3186 = vld [vmem:[%s3 + $0x84c] sm:$0xf]
    %v3187 = vld [vmem:[%s3 + $0x850] sm:$0xff]
    %v3188 = vld [vmem:[%s3 + $0x858] sm:$0xff]
    %v3189 = vld [vmem:[%s3 + $0x860] sm:$0xff]
    %v3190 = vld [vmem:[%s3 + $0x868] sm:$0xf]
    %v3191 = vld [vmem:[%s3 + $0x86c] sm:$0xff]
    %v3192 = vld [vmem:[%s3 + $0x874] sm:$0xff]
    %v3193 = vld [vmem:[%s3 + $0x87c] sm:$0xff]
    %v3194 = vld [vmem:[%s3 + $0x884] sm:$0xf]
    %v3195 = vld [vmem:[%s3 + $0x888] sm:$0xff]
    %v3196 = vld [vmem:[%s3 + $0x890] sm:$0xff]
    %v3197 = vld [vmem:[%s3 + $0x898] sm:$0xff]
    %v3198 = vld [vmem:[%s3 + $0x8a0] sm:$0xf]
    %v3199 = vld [vmem:[%s3 + $0x8a4] sm:$0xff]
    %v3200 = vld [vmem:[%s3 + $0x8ac] sm:$0xff]
    %v3201 = vld [vmem:[%s3 + $0x8b4] sm:$0xff]
    %v3202 = vld [vmem:[%s3 + $0x8bc] sm:$0xf]
    %v3203 = vld [vmem:[%s3 + $0x8c0] sm:$0xff]
    %v3204 = vld [vmem:[%s3 + $0x8c8] sm:$0xff]
    %v3205 = vld [vmem:[%s3 + $0x8d0] sm:$0xff]
    %v3206 = vld [vmem:[%s3 + $0x8d8] sm:$0xf]
    %v3207 = vld [vmem:[%s3 + $0x8dc] sm:$0xff]
    %v3208 = vld [vmem:[%s3 + $0x8e4] sm:$0xff]
    %v3209 = vld [vmem:[%s3 + $0x8ec] sm:$0xff]
    %v3210 = vld [vmem:[%s3 + $0x8f4] sm:$0xf]
    %v3211 = vld [vmem:[%s3 + $0x8f8] sm:$0xff]
    %v3212 = vld [vmem:[%s3 + $0x900] sm:$0xff]
    %v3213 = vld [vmem:[%s3 + $0x908] sm:$0xff]
    %v3214 = vld [vmem:[%s3 + $0x910] sm:$0xf]
    %v3215 = vld [vmem:[%s3 + $0x914] sm:$0xff]
    %v3216 = vld [vmem:[%s3 + $0x91c] sm:$0xff]
    %v3217 = vld [vmem:[%s3 + $0x924] sm:$0xff]
    %v3218 = vld [vmem:[%s3 + $0x92c] sm:$0xf]
    %v3219 = vld [vmem:[%s3 + $0x930] sm:$0xff]
    %v3220 = vld [vmem:[%s3 + $0x938] sm:$0xff]
    %v3221 = vld [vmem:[%s3 + $0x940] sm:$0xff]
    %v3222 = vld [vmem:[%s3 + $0x948] sm:$0xf]
    %v3223 = vld [vmem:[%s3 + $0x94c] sm:$0xff]
    %v3224 = vld [vmem:[%s3 + $0x954] sm:$0xff]
    %v3225 = vld [vmem:[%s3 + $0x95c] sm:$0xff]
    %v3226 = vld [vmem:[%s3 + $0x964] sm:$0xf]
    %v3227 = vld [vmem:[%s3 + $0x968] sm:$0xff]
    %v3228 = vld [vmem:[%s3 + $0x970] sm:$0xff]
    %v3229 = vld [vmem:[%s3 + $0x978] sm:$0xff]
    %v3230 = vld [vmem:[%s3 + $0x980] sm:$0xf]
    %v3231 = vld [vmem:[%s3 + $0x984] sm:$0xff]
    %v3232 = vld [vmem:[%s3 + $0x98c] sm:$0xff]
    %v3233 = vld [vmem:[%s3 + $0x994] sm:$0xff]
    %v3234 = vld [vmem:[%s3 + $0x99c] sm:$0xf]
    %v3235 = vld [vmem:[%s3 + $0x9a0] sm:$0xff]
    %v3236 = vld [vmem:[%s3 + $0x9a8] sm:$0xff]
    %v3237 = vld [vmem:[%s3 + $0x9b0] sm:$0xff]
    %v3238 = vld [vmem:[%s3 + $0x9b8] sm:$0xf]
    %v3239 = vld [vmem:[%s3 + $0x9bc] sm:$0xff]
    %v3240 = vld [vmem:[%s3 + $0x9c4] sm:$0xff]
    %v3241 = vld [vmem:[%s3 + $0x9cc] sm:$0xff]
    %v3242 = vld [vmem:[%s3 + $0x9d4] sm:$0xf]
    %v3243 = vld [vmem:[%s3 + $0x9d8] sm:$0xff]
    %v3244 = vld [vmem:[%s3 + $0x9e0] sm:$0xff]
    %v3245 = vld [vmem:[%s3 + $0x9e8] sm:$0xff]
    %v3246 = vld [vmem:[%s3 + $0x9f0] sm:$0xf]
    %v3247 = vld [vmem:[%s3 + $0x9f4] sm:$0xff]
    %v3248 = vld [vmem:[%s3 + $0x9fc] sm:$0xff]
    %v3249 = vld [vmem:[%s3 + $0xa04] sm:$0xff]
    %v3250 = vld [vmem:[%s3 + $0xa0c] sm:$0xf]
    %v3251 = vld [vmem:[%s3 + $0xa10] sm:$0xff]
    %v3252 = vld [vmem:[%s3 + $0xa18] sm:$0xff]
    %v3253 = vld [vmem:[%s3 + $0xa20] sm:$0xff]
    %v3254 = vld [vmem:[%s3 + $0xa28] sm:$0xf]
    %v3255 = vld [vmem:[%s3 + $0xa2c] sm:$0xff]
    %v3256 = vld [vmem:[%s3 + $0xa34] sm:$0xff]
    %v3257 = vld [vmem:[%s3 + $0xa3c] sm:$0xff]
    %v3258 = vld [vmem:[%s3 + $0xa44] sm:$0xf]
    %v3259 = vld [vmem:[%s3 + $0xa48] sm:$0xff]
    %v3260 = vld [vmem:[%s3 + $0xa50] sm:$0xff]
    %v3261 = vld [vmem:[%s3 + $0xa58] sm:$0xff]
    %v3262 = vld [vmem:[%s3 + $0xa60] sm:$0xf]
    %v3263 = vld [vmem:[%s3 + $0xa64] sm:$0xff]
    %v3264 = vld [vmem:[%s3 + $0xa6c] sm:$0xff]
    %v3265 = vld [vmem:[%s3 + $0xa74] sm:$0xff]
    %v3266 = vld [vmem:[%s3 + $0xa7c] sm:$0xf]
    %v3267 = vld [vmem:[%s3 + $0xa80] sm:$0xff]
    %v3268 = vld [vmem:[%s3 + $0xa88] sm:$0xff]
    %v3269 = vld [vmem:[%s3 + $0xa90] sm:$0xff]
    %v3270 = vld [vmem:[%s3 + $0xa98] sm:$0xf]
    %v3271 = vld [vmem:[%s3 + $0xa9c] sm:$0xff]
    %v3272 = vld [vmem:[%s3 + $0xaa4] sm:$0xff]
    %v3273 = vld [vmem:[%s3 + $0xaac] sm:$0xff]
    %v3274 = vld [vmem:[%s3 + $0xab4] sm:$0xf]
    %v3275 = vld [vmem:[%s4] sm:$0x7f]
    %v3277 = vperm.slane %v3275, 0
    %v3278 = vperm.slane %v3275, 1
    %v3279 = vperm.slane %v3275, 2
    %v3280 = vperm.slane %v3275, 3
    %v3281 = vperm.slane %v3275, 4
    %v3282 = vperm.slane %v3275, 5
    %v3283 = vperm.slane %v3275, 6
    %v3683 = vunpack.c.l.b16 %v2883
    %v3684 = vunpack.c.h.b16 %v2883
    %v3685 = vunpack.c.l.b16 %v2884
    %v3686 = vunpack.c.h.b16 %v2884
    %v3687 = vunpack.c.l.b16 %v2885
    %v3688 = vunpack.c.h.b16 %v2885
    %v3689 = vunpack.c.l.b16 %v2886
    %v3690 = vunpack.c.l.b16 %v2887
    %v3691 = vunpack.c.h.b16 %v2887
    %v3692 = vunpack.c.l.b16 %v2888
    %v3693 = vunpack.c.h.b16 %v2888
    %v3694 = vunpack.c.l.b16 %v2889
    %v3695 = vunpack.c.h.b16 %v2889
    %v3696 = vunpack.c.l.b16 %v2890
    %v3697 = vunpack.c.l.b16 %v2891
    %v3698 = vunpack.c.h.b16 %v2891
    %v3699 = vunpack.c.l.b16 %v2892
    %v3700 = vunpack.c.h.b16 %v2892
    %v3701 = vunpack.c.l.b16 %v2893
    %v3702 = vunpack.c.h.b16 %v2893
    %v3703 = vunpack.c.l.b16 %v2894
    %v3704 = vunpack.c.l.b16 %v2895
    %v3705 = vunpack.c.h.b16 %v2895
    %v3706 = vunpack.c.l.b16 %v2896
    %v3707 = vunpack.c.h.b16 %v2896
    %v3708 = vunpack.c.l.b16 %v2897
    %v3709 = vunpack.c.h.b16 %v2897
    %v3710 = vunpack.c.l.b16 %v2898
    %v3711 = vunpack.c.l.b16 %v2899
    %v3712 = vunpack.c.h.b16 %v2899
    %v3713 = vunpack.c.l.b16 %v2900
    %v3714 = vunpack.c.h.b16 %v2900
    %v3715 = vunpack.c.l.b16 %v2901
    %v3716 = vunpack.c.h.b16 %v2901
    %v3717 = vunpack.c.l.b16 %v2902
    %v3718 = vunpack.c.l.b16 %v2903
    %v3719 = vunpack.c.h.b16 %v2903
    %v3720 = vunpack.c.l.b16 %v2904
    %v3721 = vunpack.c.h.b16 %v2904
    %v3722 = vunpack.c.l.b16 %v2905
    %v3723 = vunpack.c.h.b16 %v2905
    %v3724 = vunpack.c.l.b16 %v2906
    %v3725 = vunpack.c.l.b16 %v2907
    %v3726 = vunpack.c.h.b16 %v2907
    %v3727 = vunpack.c.l.b16 %v2908
    %v3728 = vunpack.c.h.b16 %v2908
    %v3729 = vunpack.c.l.b16 %v2909
    %v3730 = vunpack.c.h.b16 %v2909
    %v3731 = vunpack.c.l.b16 %v2910
    %v3732 = vunpack.c.l.b16 %v2911
    %v3733 = vunpack.c.h.b16 %v2911
    %v3734 = vunpack.c.l.b16 %v2912
    %v3735 = vunpack.c.h.b16 %v2912
    %v3736 = vunpack.c.l.b16 %v2913
    %v3737 = vunpack.c.h.b16 %v2913
    %v3738 = vunpack.c.l.b16 %v2914
    %v3739 = vunpack.c.l.b16 %v2915
    %v3740 = vunpack.c.h.b16 %v2915
    %v3741 = vunpack.c.l.b16 %v2916
    %v3742 = vunpack.c.h.b16 %v2916
    %v3743 = vunpack.c.l.b16 %v2917
    %v3744 = vunpack.c.h.b16 %v2917
    %v3745 = vunpack.c.l.b16 %v2918
    %v3746 = vunpack.c.l.b16 %v2919
    %v3747 = vunpack.c.h.b16 %v2919
    %v3748 = vunpack.c.l.b16 %v2920
    %v3749 = vunpack.c.h.b16 %v2920
    %v3750 = vunpack.c.l.b16 %v2921
    %v3751 = vunpack.c.h.b16 %v2921
    %v3752 = vunpack.c.l.b16 %v2922
    %v3753 = vunpack.c.l.b16 %v2923
    %v3754 = vunpack.c.h.b16 %v2923
    %v3755 = vunpack.c.l.b16 %v2924
    %v3756 = vunpack.c.h.b16 %v2924
    %v3757 = vunpack.c.l.b16 %v2925
    %v3758 = vunpack.c.h.b16 %v2925
    %v3759 = vunpack.c.l.b16 %v2926
    %v3760 = vunpack.c.l.b16 %v2927
    %v3761 = vunpack.c.h.b16 %v2927
    %v3762 = vunpack.c.l.b16 %v2928
    %v3763 = vunpack.c.h.b16 %v2928
    %v3764 = vunpack.c.l.b16 %v2929
    %v3765 = vunpack.c.h.b16 %v2929
    %v3766 = vunpack.c.l.b16 %v2930
    %v3767 = vunpack.c.l.b16 %v2931
    %v3768 = vunpack.c.h.b16 %v2931
    %v3769 = vunpack.c.l.b16 %v2932
    %v3770 = vunpack.c.h.b16 %v2932
    %v3771 = vunpack.c.l.b16 %v2933
    %v3772 = vunpack.c.h.b16 %v2933
    %v3773 = vunpack.c.l.b16 %v2934
    %v3774 = vunpack.c.l.b16 %v2935
    %v3775 = vunpack.c.h.b16 %v2935
    %v3776 = vunpack.c.l.b16 %v2936
    %v3777 = vunpack.c.h.b16 %v2936
    %v3778 = vunpack.c.l.b16 %v2937
    %v3779 = vunpack.c.h.b16 %v2937
    %v3780 = vunpack.c.l.b16 %v2938
    %v3781 = vunpack.c.l.b16 %v2939
    %v3782 = vunpack.c.h.b16 %v2939
    %v3783 = vunpack.c.l.b16 %v2940
    %v3784 = vunpack.c.h.b16 %v2940
    %v3785 = vunpack.c.l.b16 %v2941
    %v3786 = vunpack.c.h.b16 %v2941
    %v3787 = vunpack.c.l.b16 %v2942
    %v3788 = vunpack.c.l.b16 %v2943
    %v3789 = vunpack.c.h.b16 %v2943
    %v3790 = vunpack.c.l.b16 %v2944
    %v3791 = vunpack.c.h.b16 %v2944
    %v3792 = vunpack.c.l.b16 %v2945
    %v3793 = vunpack.c.h.b16 %v2945
    %v3794 = vunpack.c.l.b16 %v2946
    %v3795 = vunpack.c.l.b16 %v2947
    %v3796 = vunpack.c.h.b16 %v2947
    %v3797 = vunpack.c.l.b16 %v2948
    %v3798 = vunpack.c.h.b16 %v2948
    %v3799 = vunpack.c.l.b16 %v2949
    %v3800 = vunpack.c.h.b16 %v2949
    %v3801 = vunpack.c.l.b16 %v2950
    %v3802 = vunpack.c.l.b16 %v2951
    %v3803 = vunpack.c.h.b16 %v2951
    %v3804 = vunpack.c.l.b16 %v2952
    %v3805 = vunpack.c.h.b16 %v2952
    %v3806 = vunpack.c.l.b16 %v2953
    %v3807 = vunpack.c.h.b16 %v2953
    %v3808 = vunpack.c.l.b16 %v2954
    %v3809 = vunpack.c.l.b16 %v2955
    %v3810 = vunpack.c.h.b16 %v2955
    %v3811 = vunpack.c.l.b16 %v2956
    %v3812 = vunpack.c.h.b16 %v2956
    %v3813 = vunpack.c.l.b16 %v2957
    %v3814 = vunpack.c.h.b16 %v2957
    %v3815 = vunpack.c.l.b16 %v2958
    %v3816 = vunpack.c.l.b16 %v2959
    %v3817 = vunpack.c.h.b16 %v2959
    %v3818 = vunpack.c.l.b16 %v2960
    %v3819 = vunpack.c.h.b16 %v2960
    %v3820 = vunpack.c.l.b16 %v2961
    %v3821 = vunpack.c.h.b16 %v2961
    %v3822 = vunpack.c.l.b16 %v2962
    %v3823 = vunpack.c.l.b16 %v2963
    %v3824 = vunpack.c.h.b16 %v2963
    %v3825 = vunpack.c.l.b16 %v2964
    %v3826 = vunpack.c.h.b16 %v2964
    %v3827 = vunpack.c.l.b16 %v2965
    %v3828 = vunpack.c.h.b16 %v2965
    %v3829 = vunpack.c.l.b16 %v2966
    %v3830 = vunpack.c.l.b16 %v2967
    %v3831 = vunpack.c.h.b16 %v2967
    %v3832 = vunpack.c.l.b16 %v2968
    %v3833 = vunpack.c.h.b16 %v2968
    %v3834 = vunpack.c.l.b16 %v2969
    %v3835 = vunpack.c.h.b16 %v2969
    %v3836 = vunpack.c.l.b16 %v2970
    %v3837 = vunpack.c.l.b16 %v2971
    %v3838 = vunpack.c.h.b16 %v2971
    %v3839 = vunpack.c.l.b16 %v2972
    %v3840 = vunpack.c.h.b16 %v2972
    %v3841 = vunpack.c.l.b16 %v2973
    %v3842 = vunpack.c.h.b16 %v2973
    %v3843 = vunpack.c.l.b16 %v2974
    %v3844 = vunpack.c.l.b16 %v2975
    %v3845 = vunpack.c.h.b16 %v2975
    %v3846 = vunpack.c.l.b16 %v2976
    %v3847 = vunpack.c.h.b16 %v2976
    %v3848 = vunpack.c.l.b16 %v2977
    %v3849 = vunpack.c.h.b16 %v2977
    %v3850 = vunpack.c.l.b16 %v2978
    %v3851 = vunpack.c.l.b16 %v2979
    %v3852 = vunpack.c.h.b16 %v2979
    %v3853 = vunpack.c.l.b16 %v2980
    %v3854 = vunpack.c.h.b16 %v2980
    %v3855 = vunpack.c.l.b16 %v2981
    %v3856 = vunpack.c.h.b16 %v2981
    %v3857 = vunpack.c.l.b16 %v2982
    %v3858 = vunpack.c.l.b16 %v2983
    %v3859 = vunpack.c.h.b16 %v2983
    %v3860 = vunpack.c.l.b16 %v2984
    %v3861 = vunpack.c.h.b16 %v2984
    %v3862 = vunpack.c.l.b16 %v2985
    %v3863 = vunpack.c.h.b16 %v2985
    %v3864 = vunpack.c.l.b16 %v2986
    %v3865 = vunpack.c.l.b16 %v2987
    %v3866 = vunpack.c.h.b16 %v2987
    %v3867 = vunpack.c.l.b16 %v2988
    %v3868 = vunpack.c.h.b16 %v2988
    %v3869 = vunpack.c.l.b16 %v2989
    %v3870 = vunpack.c.h.b16 %v2989
    %v3871 = vunpack.c.l.b16 %v2990
    %v3872 = vunpack.c.l.b16 %v2991
    %v3873 = vunpack.c.h.b16 %v2991
    %v3874 = vunpack.c.l.b16 %v2992
    %v3875 = vunpack.c.h.b16 %v2992
    %v3876 = vunpack.c.l.b16 %v2993
    %v3877 = vunpack.c.h.b16 %v2993
    %v3878 = vunpack.c.l.b16 %v2994
    %v3879 = vunpack.c.l.b16 %v2995
    %v3880 = vunpack.c.h.b16 %v2995
    %v3881 = vunpack.c.l.b16 %v2996
    %v3882 = vunpack.c.h.b16 %v2996
    %v3883 = vunpack.c.l.b16 %v2997
    %v3884 = vunpack.c.h.b16 %v2997
    %v3885 = vunpack.c.l.b16 %v2998
    %v3886 = vunpack.c.l.b16 %v2999
    %v3887 = vunpack.c.h.b16 %v2999
    %v3888 = vunpack.c.l.b16 %v3000
    %v3889 = vunpack.c.h.b16 %v3000
    %v3890 = vunpack.c.l.b16 %v3001
    %v3891 = vunpack.c.h.b16 %v3001
    %v3892 = vunpack.c.l.b16 %v3002
    %v3893 = vunpack.c.l.b16 %v3003
    %v3894 = vunpack.c.h.b16 %v3003
    %v3895 = vunpack.c.l.b16 %v3004
    %v3896 = vunpack.c.h.b16 %v3004
    %v3897 = vunpack.c.l.b16 %v3005
    %v3898 = vunpack.c.h.b16 %v3005
    %v3899 = vunpack.c.l.b16 %v3006
    %v3900 = vunpack.c.l.b16 %v3007
    %v3901 = vunpack.c.h.b16 %v3007
    %v3902 = vunpack.c.l.b16 %v3008
    %v3903 = vunpack.c.h.b16 %v3008
    %v3904 = vunpack.c.l.b16 %v3009
    %v3905 = vunpack.c.h.b16 %v3009
    %v3906 = vunpack.c.l.b16 %v3010
    %v3907 = vunpack.c.l.b16 %v3011
    %v3908 = vunpack.c.h.b16 %v3011
    %v3909 = vunpack.c.l.b16 %v3012
    %v3910 = vunpack.c.h.b16 %v3012
    %v3911 = vunpack.c.l.b16 %v3013
    %v3912 = vunpack.c.h.b16 %v3013
    %v3913 = vunpack.c.l.b16 %v3014
    %v3914 = vunpack.c.l.b16 %v3015
    %v3915 = vunpack.c.h.b16 %v3015
    %v3916 = vunpack.c.l.b16 %v3016
    %v3917 = vunpack.c.h.b16 %v3016
    %v3918 = vunpack.c.l.b16 %v3017
    %v3919 = vunpack.c.h.b16 %v3017
    %v3920 = vunpack.c.l.b16 %v3018
    %v3921 = vunpack.c.l.b16 %v3019
    %v3922 = vunpack.c.h.b16 %v3019
    %v3923 = vunpack.c.l.b16 %v3020
    %v3924 = vunpack.c.h.b16 %v3020
    %v3925 = vunpack.c.l.b16 %v3021
    %v3926 = vunpack.c.h.b16 %v3021
    %v3927 = vunpack.c.l.b16 %v3022
    %v3928 = vunpack.c.l.b16 %v3023
    %v3929 = vunpack.c.h.b16 %v3023
    %v3930 = vunpack.c.l.b16 %v3024
    %v3931 = vunpack.c.h.b16 %v3024
    %v3932 = vunpack.c.l.b16 %v3025
    %v3933 = vunpack.c.h.b16 %v3025
    %v3934 = vunpack.c.l.b16 %v3026
    %v3935 = vunpack.c.l.b16 %v3027
    %v3936 = vunpack.c.h.b16 %v3027
    %v3937 = vunpack.c.l.b16 %v3028
    %v3938 = vunpack.c.h.b16 %v3028
    %v3939 = vunpack.c.l.b16 %v3029
    %v3940 = vunpack.c.h.b16 %v3029
    %v3941 = vunpack.c.l.b16 %v3030
    %v3942 = vunpack.c.l.b16 %v3031
    %v3943 = vunpack.c.h.b16 %v3031
    %v3944 = vunpack.c.l.b16 %v3032
    %v3945 = vunpack.c.h.b16 %v3032
    %v3946 = vunpack.c.l.b16 %v3033
    %v3947 = vunpack.c.h.b16 %v3033
    %v3948 = vunpack.c.l.b16 %v3034
    %v3949 = vunpack.c.l.b16 %v3035
    %v3950 = vunpack.c.h.b16 %v3035
    %v3951 = vunpack.c.l.b16 %v3036
    %v3952 = vunpack.c.h.b16 %v3036
    %v3953 = vunpack.c.l.b16 %v3037
    %v3954 = vunpack.c.h.b16 %v3037
    %v3955 = vunpack.c.l.b16 %v3038
    %v3956 = vunpack.c.l.b16 %v3039
    %v3957 = vunpack.c.h.b16 %v3039
    %v3958 = vunpack.c.l.b16 %v3040
    %v3959 = vunpack.c.h.b16 %v3040
    %v3960 = vunpack.c.l.b16 %v3041
    %v3961 = vunpack.c.h.b16 %v3041
    %v3962 = vunpack.c.l.b16 %v3042
    %v3963 = vunpack.c.l.b16 %v3043
    %v3964 = vunpack.c.h.b16 %v3043
    %v3965 = vunpack.c.l.b16 %v3044
    %v3966 = vunpack.c.h.b16 %v3044
    %v3967 = vunpack.c.l.b16 %v3045
    %v3968 = vunpack.c.h.b16 %v3045
    %v3969 = vunpack.c.l.b16 %v3046
    %v3970 = vunpack.c.l.b16 %v3047
    %v3971 = vunpack.c.h.b16 %v3047
    %v3972 = vunpack.c.l.b16 %v3048
    %v3973 = vunpack.c.h.b16 %v3048
    %v3974 = vunpack.c.l.b16 %v3049
    %v3975 = vunpack.c.h.b16 %v3049
    %v3976 = vunpack.c.l.b16 %v3050
    %v3977 = vunpack.c.l.b16 %v3051
    %v3978 = vunpack.c.h.b16 %v3051
    %v3979 = vunpack.c.l.b16 %v3052
    %v3980 = vunpack.c.h.b16 %v3052
    %v3981 = vunpack.c.l.b16 %v3053
    %v3982 = vunpack.c.h.b16 %v3053
    %v3983 = vunpack.c.l.b16 %v3054
    %v3984 = vunpack.c.l.b16 %v3055
    %v3985 = vunpack.c.h.b16 %v3055
    %v3986 = vunpack.c.l.b16 %v3056
    %v3987 = vunpack.c.h.b16 %v3056
    %v3988 = vunpack.c.l.b16 %v3057
    %v3989 = vunpack.c.h.b16 %v3057
    %v3990 = vunpack.c.l.b16 %v3058
    %v3991 = vunpack.c.l.b16 %v3059
    %v3992 = vunpack.c.h.b16 %v3059
    %v3993 = vunpack.c.l.b16 %v3060
    %v3994 = vunpack.c.h.b16 %v3060
    %v3995 = vunpack.c.l.b16 %v3061
    %v3996 = vunpack.c.h.b16 %v3061
    %v3997 = vunpack.c.l.b16 %v3062
    %v3998 = vunpack.c.l.b16 %v3063
    %v3999 = vunpack.c.h.b16 %v3063
    %v4000 = vunpack.c.l.b16 %v3064
    %v4001 = vunpack.c.h.b16 %v3064
    %v4002 = vunpack.c.l.b16 %v3065
    %v4003 = vunpack.c.h.b16 %v3065
    %v4004 = vunpack.c.l.b16 %v3066
    %v4005 = vunpack.c.l.b16 %v3067
    %v4006 = vunpack.c.h.b16 %v3067
    %v4007 = vunpack.c.l.b16 %v3068
    %v4008 = vunpack.c.h.b16 %v3068
    %v4009 = vunpack.c.l.b16 %v3069
    %v4010 = vunpack.c.h.b16 %v3069
    %v4011 = vunpack.c.l.b16 %v3070
    %v4012 = vunpack.c.l.b16 %v3071
    %v4013 = vunpack.c.h.b16 %v3071
    %v4014 = vunpack.c.l.b16 %v3072
    %v4015 = vunpack.c.h.b16 %v3072
    %v4016 = vunpack.c.l.b16 %v3073
    %v4017 = vunpack.c.h.b16 %v3073
    %v4018 = vunpack.c.l.b16 %v3074
    %v4019 = vunpack.c.l.b16 %v3075
    %v4020 = vunpack.c.h.b16 %v3075
    %v4021 = vunpack.c.l.b16 %v3076
    %v4022 = vunpack.c.h.b16 %v3076
    %v4023 = vunpack.c.l.b16 %v3077
    %v4024 = vunpack.c.h.b16 %v3077
    %v4025 = vunpack.c.l.b16 %v3078
    %v4026 = vunpack.c.l.b16 %v3079
    %v4027 = vunpack.c.h.b16 %v3079
    %v4028 = vunpack.c.l.b16 %v3080
    %v4029 = vunpack.c.h.b16 %v3080
    %v4030 = vunpack.c.l.b16 %v3081
    %v4031 = vunpack.c.h.b16 %v3081
    %v4032 = vunpack.c.l.b16 %v3082
    %v4033 = vunpack.c.l.b16 %v3083
    %v4034 = vunpack.c.h.b16 %v3083
    %v4035 = vunpack.c.l.b16 %v3084
    %v4036 = vunpack.c.h.b16 %v3084
    %v4037 = vunpack.c.l.b16 %v3085
    %v4038 = vunpack.c.h.b16 %v3085
    %v4039 = vunpack.c.l.b16 %v3086
    %v4040 = vunpack.c.l.b16 %v3087
    %v4041 = vunpack.c.h.b16 %v3087
    %v4042 = vunpack.c.l.b16 %v3088
    %v4043 = vunpack.c.h.b16 %v3088
    %v4044 = vunpack.c.l.b16 %v3089
    %v4045 = vunpack.c.h.b16 %v3089
    %v4046 = vunpack.c.l.b16 %v3090
    %v4047 = vunpack.c.l.b16 %v3091
    %v4048 = vunpack.c.h.b16 %v3091
    %v4049 = vunpack.c.l.b16 %v3092
    %v4050 = vunpack.c.h.b16 %v3092
    %v4051 = vunpack.c.l.b16 %v3093
    %v4052 = vunpack.c.h.b16 %v3093
    %v4053 = vunpack.c.l.b16 %v3094
    %v4054 = vunpack.c.l.b16 %v3095
    %v4055 = vunpack.c.h.b16 %v3095
    %v4056 = vunpack.c.l.b16 %v3096
    %v4057 = vunpack.c.h.b16 %v3096
    %v4058 = vunpack.c.l.b16 %v3097
    %v4059 = vunpack.c.h.b16 %v3097
    %v4060 = vunpack.c.l.b16 %v3098
    %v4061 = vunpack.c.l.b16 %v3099
    %v4062 = vunpack.c.h.b16 %v3099
    %v4063 = vunpack.c.l.b16 %v3100
    %v4064 = vunpack.c.h.b16 %v3100
    %v4065 = vunpack.c.l.b16 %v3101
    %v4066 = vunpack.c.h.b16 %v3101
    %v4067 = vunpack.c.l.b16 %v3102
    %v4068 = vunpack.c.l.b16 %v3103
    %v4069 = vunpack.c.h.b16 %v3103
    %v4070 = vunpack.c.l.b16 %v3104
    %v4071 = vunpack.c.h.b16 %v3104
    %v4072 = vunpack.c.l.b16 %v3105
    %v4073 = vunpack.c.h.b16 %v3105
    %v4074 = vunpack.c.l.b16 %v3106
    %v4075 = vunpack.c.l.b16 %v3107
    %v4076 = vunpack.c.h.b16 %v3107
    %v4077 = vunpack.c.l.b16 %v3108
    %v4078 = vunpack.c.h.b16 %v3108
    %v4079 = vunpack.c.l.b16 %v3109
    %v4080 = vunpack.c.h.b16 %v3109
    %v4081 = vunpack.c.l.b16 %v3110
    %v4082 = vunpack.c.l.b16 %v3111
    %v4083 = vunpack.c.h.b16 %v3111
    %v4084 = vunpack.c.l.b16 %v3112
    %v4085 = vunpack.c.h.b16 %v3112
    %v4086 = vunpack.c.l.b16 %v3113
    %v4087 = vunpack.c.h.b16 %v3113
    %v4088 = vunpack.c.l.b16 %v3114
    %v4089 = vunpack.c.l.b16 %v3115
    %v4090 = vunpack.c.h.b16 %v3115
    %v4091 = vunpack.c.l.b16 %v3116
    %v4092 = vunpack.c.h.b16 %v3116
    %v4093 = vunpack.c.l.b16 %v3117
    %v4094 = vunpack.c.h.b16 %v3117
    %v4095 = vunpack.c.l.b16 %v3118
    %v4096 = vunpack.c.l.b16 %v3119
    %v4097 = vunpack.c.h.b16 %v3119
    %v4098 = vunpack.c.l.b16 %v3120
    %v4099 = vunpack.c.h.b16 %v3120
    %v4100 = vunpack.c.l.b16 %v3121
    %v4101 = vunpack.c.h.b16 %v3121
    %v4102 = vunpack.c.l.b16 %v3122
    %v4103 = vunpack.c.l.b16 %v3123
    %v4104 = vunpack.c.h.b16 %v3123
    %v4105 = vunpack.c.l.b16 %v3124
    %v4106 = vunpack.c.h.b16 %v3124
    %v4107 = vunpack.c.l.b16 %v3125
    %v4108 = vunpack.c.h.b16 %v3125
    %v4109 = vunpack.c.l.b16 %v3126
    %v4110 = vunpack.c.l.b16 %v3127
    %v4111 = vunpack.c.h.b16 %v3127
    %v4112 = vunpack.c.l.b16 %v3128
    %v4113 = vunpack.c.h.b16 %v3128
    %v4114 = vunpack.c.l.b16 %v3129
    %v4115 = vunpack.c.h.b16 %v3129
    %v4116 = vunpack.c.l.b16 %v3130
    %v4117 = vunpack.c.l.b16 %v3131
    %v4118 = vunpack.c.h.b16 %v3131
    %v4119 = vunpack.c.l.b16 %v3132
    %v4120 = vunpack.c.h.b16 %v3132
    %v4121 = vunpack.c.l.b16 %v3133
    %v4122 = vunpack.c.h.b16 %v3133
    %v4123 = vunpack.c.l.b16 %v3134
    %v4124 = vunpack.c.l.b16 %v3135
    %v4125 = vunpack.c.h.b16 %v3135
    %v4126 = vunpack.c.l.b16 %v3136
    %v4127 = vunpack.c.h.b16 %v3136
    %v4128 = vunpack.c.l.b16 %v3137
    %v4129 = vunpack.c.h.b16 %v3137
    %v4130 = vunpack.c.l.b16 %v3138
    %v4131 = vunpack.c.l.b16 %v3139
    %v4132 = vunpack.c.h.b16 %v3139
    %v4133 = vunpack.c.l.b16 %v3140
    %v4134 = vunpack.c.h.b16 %v3140
    %v4135 = vunpack.c.l.b16 %v3141
    %v4136 = vunpack.c.h.b16 %v3141
    %v4137 = vunpack.c.l.b16 %v3142
    %v4138 = vunpack.c.l.b16 %v3143
    %v4139 = vunpack.c.h.b16 %v3143
    %v4140 = vunpack.c.l.b16 %v3144
    %v4141 = vunpack.c.h.b16 %v3144
    %v4142 = vunpack.c.l.b16 %v3145
    %v4143 = vunpack.c.h.b16 %v3145
    %v4144 = vunpack.c.l.b16 %v3146
    %v4145 = vunpack.c.l.b16 %v3147
    %v4146 = vunpack.c.h.b16 %v3147
    %v4147 = vunpack.c.l.b16 %v3148
    %v4148 = vunpack.c.h.b16 %v3148
    %v4149 = vunpack.c.l.b16 %v3149
    %v4150 = vunpack.c.h.b16 %v3149
    %v4151 = vunpack.c.l.b16 %v3150
    %v4152 = vunpack.c.l.b16 %v3151
    %v4153 = vunpack.c.h.b16 %v3151
    %v4154 = vunpack.c.l.b16 %v3152
    %v4155 = vunpack.c.h.b16 %v3152
    %v4156 = vunpack.c.l.b16 %v3153
    %v4157 = vunpack.c.h.b16 %v3153
    %v4158 = vunpack.c.l.b16 %v3154
    %v4159 = vunpack.c.l.b16 %v3155
    %v4160 = vunpack.c.h.b16 %v3155
    %v4161 = vunpack.c.l.b16 %v3156
    %v4162 = vunpack.c.h.b16 %v3156
    %v4163 = vunpack.c.l.b16 %v3157
    %v4164 = vunpack.c.h.b16 %v3157
    %v4165 = vunpack.c.l.b16 %v3158
    %v4166 = vunpack.c.l.b16 %v3159
    %v4167 = vunpack.c.h.b16 %v3159
    %v4168 = vunpack.c.l.b16 %v3160
    %v4169 = vunpack.c.h.b16 %v3160
    %v4170 = vunpack.c.l.b16 %v3161
    %v4171 = vunpack.c.h.b16 %v3161
    %v4172 = vunpack.c.l.b16 %v3162
    %v4173 = vunpack.c.l.b16 %v3163
    %v4174 = vunpack.c.h.b16 %v3163
    %v4175 = vunpack.c.l.b16 %v3164
    %v4176 = vunpack.c.h.b16 %v3164
    %v4177 = vunpack.c.l.b16 %v3165
    %v4178 = vunpack.c.h.b16 %v3165
    %v4179 = vunpack.c.l.b16 %v3166
    %v4180 = vunpack.c.l.b16 %v3167
    %v4181 = vunpack.c.h.b16 %v3167
    %v4182 = vunpack.c.l.b16 %v3168
    %v4183 = vunpack.c.h.b16 %v3168
    %v4184 = vunpack.c.l.b16 %v3169
    %v4185 = vunpack.c.h.b16 %v3169
    %v4186 = vunpack.c.l.b16 %v3170
    %v4187 = vunpack.c.l.b16 %v3171
    %v4188 = vunpack.c.h.b16 %v3171
    %v4189 = vunpack.c.l.b16 %v3172
    %v4190 = vunpack.c.h.b16 %v3172
    %v4191 = vunpack.c.l.b16 %v3173
    %v4192 = vunpack.c.h.b16 %v3173
    %v4193 = vunpack.c.l.b16 %v3174
    %v4194 = vunpack.c.l.b16 %v3175
    %v4195 = vunpack.c.h.b16 %v3175
    %v4196 = vunpack.c.l.b16 %v3176
    %v4197 = vunpack.c.h.b16 %v3176
    %v4198 = vunpack.c.l.b16 %v3177
    %v4199 = vunpack.c.h.b16 %v3177
    %v4200 = vunpack.c.l.b16 %v3178
    %v4201 = vunpack.c.l.b16 %v3179
    %v4202 = vunpack.c.h.b16 %v3179
    %v4203 = vunpack.c.l.b16 %v3180
    %v4204 = vunpack.c.h.b16 %v3180
    %v4205 = vunpack.c.l.b16 %v3181
    %v4206 = vunpack.c.h.b16 %v3181
    %v4207 = vunpack.c.l.b16 %v3182
    %v4208 = vunpack.c.l.b16 %v3183
    %v4209 = vunpack.c.h.b16 %v3183
    %v4210 = vunpack.c.l.b16 %v3184
    %v4211 = vunpack.c.h.b16 %v3184
    %v4212 = vunpack.c.l.b16 %v3185
    %v4213 = vunpack.c.h.b16 %v3185
    %v4214 = vunpack.c.l.b16 %v3186
    %v4215 = vunpack.c.l.b16 %v3187
    %v4216 = vunpack.c.h.b16 %v3187
    %v4217 = vunpack.c.l.b16 %v3188
    %v4218 = vunpack.c.h.b16 %v3188
    %v4219 = vunpack.c.l.b16 %v3189
    %v4220 = vunpack.c.h.b16 %v3189
    %v4221 = vunpack.c.l.b16 %v3190
    %v4222 = vunpack.c.l.b16 %v3191
    %v4223 = vunpack.c.h.b16 %v3191
    %v4224 = vunpack.c.l.b16 %v3192
    %v4225 = vunpack.c.h.b16 %v3192
    %v4226 = vunpack.c.l.b16 %v3193
    %v4227 = vunpack.c.h.b16 %v3193
    %v4228 = vunpack.c.l.b16 %v3194
    %v4229 = vunpack.c.l.b16 %v3195
    %v4230 = vunpack.c.h.b16 %v3195
    %v4231 = vunpack.c.l.b16 %v3196
    %v4232 = vunpack.c.h.b16 %v3196
    %v4233 = vunpack.c.l.b16 %v3197
    %v4234 = vunpack.c.h.b16 %v3197
    %v4235 = vunpack.c.l.b16 %v3198
    %v4236 = vunpack.c.l.b16 %v3199
    %v4237 = vunpack.c.h.b16 %v3199
    %v4238 = vunpack.c.l.b16 %v3200
    %v4239 = vunpack.c.h.b16 %v3200
    %v4240 = vunpack.c.l.b16 %v3201
    %v4241 = vunpack.c.h.b16 %v3201
    %v4242 = vunpack.c.l.b16 %v3202
    %v4243 = vunpack.c.l.b16 %v3203
    %v4244 = vunpack.c.h.b16 %v3203
    %v4245 = vunpack.c.l.b16 %v3204
    %v4246 = vunpack.c.h.b16 %v3204
    %v4247 = vunpack.c.l.b16 %v3205
    %v4248 = vunpack.c.h.b16 %v3205
    %v4249 = vunpack.c.l.b16 %v3206
    %v4250 = vunpack.c.l.b16 %v3207
    %v4251 = vunpack.c.h.b16 %v3207
    %v4252 = vunpack.c.l.b16 %v3208
    %v4253 = vunpack.c.h.b16 %v3208
    %v4254 = vunpack.c.l.b16 %v3209
    %v4255 = vunpack.c.h.b16 %v3209
    %v4256 = vunpack.c.l.b16 %v3210
    %v4257 = vunpack.c.l.b16 %v3211
    %v4258 = vunpack.c.h.b16 %v3211
    %v4259 = vunpack.c.l.b16 %v3212
    %v4260 = vunpack.c.h.b16 %v3212
    %v4261 = vunpack.c.l.b16 %v3213
    %v4262 = vunpack.c.h.b16 %v3213
    %v4263 = vunpack.c.l.b16 %v3214
    %v4264 = vunpack.c.l.b16 %v3215
    %v4265 = vunpack.c.h.b16 %v3215
    %v4266 = vunpack.c.l.b16 %v3216
    %v4267 = vunpack.c.h.b16 %v3216
    %v4268 = vunpack.c.l.b16 %v3217
    %v4269 = vunpack.c.h.b16 %v3217
    %v4270 = vunpack.c.l.b16 %v3218
    %v4271 = vunpack.c.l.b16 %v3219
    %v4272 = vunpack.c.h.b16 %v3219
    %v4273 = vunpack.c.l.b16 %v3220
    %v4274 = vunpack.c.h.b16 %v3220
    %v4275 = vunpack.c.l.b16 %v3221
    %v4276 = vunpack.c.h.b16 %v3221
    %v4277 = vunpack.c.l.b16 %v3222
    %v4278 = vunpack.c.l.b16 %v3223
    %v4279 = vunpack.c.h.b16 %v3223
    %v4280 = vunpack.c.l.b16 %v3224
    %v4281 = vunpack.c.h.b16 %v3224
    %v4282 = vunpack.c.l.b16 %v3225
    %v4283 = vunpack.c.h.b16 %v3225
    %v4284 = vunpack.c.l.b16 %v3226
    %v4285 = vunpack.c.l.b16 %v3227
    %v4286 = vunpack.c.h.b16 %v3227
    %v4287 = vunpack.c.l.b16 %v3228
    %v4288 = vunpack.c.h.b16 %v3228
    %v4289 = vunpack.c.l.b16 %v3229
    %v4290 = vunpack.c.h.b16 %v3229
    %v4291 = vunpack.c.l.b16 %v3230
    %v4292 = vunpack.c.l.b16 %v3231
    %v4293 = vunpack.c.h.b16 %v3231
    %v4294 = vunpack.c.l.b16 %v3232
    %v4295 = vunpack.c.h.b16 %v3232
    %v4296 = vunpack.c.l.b16 %v3233
    %v4297 = vunpack.c.h.b16 %v3233
    %v4298 = vunpack.c.l.b16 %v3234
    %v4299 = vunpack.c.l.b16 %v3235
    %v4300 = vunpack.c.h.b16 %v3235
    %v4301 = vunpack.c.l.b16 %v3236
    %v4302 = vunpack.c.h.b16 %v3236
    %v4303 = vunpack.c.l.b16 %v3237
    %v4304 = vunpack.c.h.b16 %v3237
    %v4305 = vunpack.c.l.b16 %v3238
    %v4306 = vunpack.c.l.b16 %v3239
    %v4307 = vunpack.c.h.b16 %v3239
    %v4308 = vunpack.c.l.b16 %v3240
    %v4309 = vunpack.c.h.b16 %v3240
    %v4310 = vunpack.c.l.b16 %v3241
    %v4311 = vunpack.c.h.b16 %v3241
    %v4312 = vunpack.c.l.b16 %v3242
    %v4313 = vunpack.c.l.b16 %v3243
    %v4314 = vunpack.c.h.b16 %v3243
    %v4315 = vunpack.c.l.b16 %v3244
    %v4316 = vunpack.c.h.b16 %v3244
    %v4317 = vunpack.c.l.b16 %v3245
    %v4318 = vunpack.c.h.b16 %v3245
    %v4319 = vunpack.c.l.b16 %v3246
    %v4320 = vunpack.c.l.b16 %v3247
    %v4321 = vunpack.c.h.b16 %v3247
    %v4322 = vunpack.c.l.b16 %v3248
    %v4323 = vunpack.c.h.b16 %v3248
    %v4324 = vunpack.c.l.b16 %v3249
    %v4325 = vunpack.c.h.b16 %v3249
    %v4326 = vunpack.c.l.b16 %v3250
    %v4327 = vunpack.c.l.b16 %v3251
    %v4328 = vunpack.c.h.b16 %v3251
    %v4329 = vunpack.c.l.b16 %v3252
    %v4330 = vunpack.c.h.b16 %v3252
    %v4331 = vunpack.c.l.b16 %v3253
    %v4332 = vunpack.c.h.b16 %v3253
    %v4333 = vunpack.c.l.b16 %v3254
    %v4334 = vunpack.c.l.b16 %v3255
    %v4335 = vunpack.c.h.b16 %v3255
    %v4336 = vunpack.c.l.b16 %v3256
    %v4337 = vunpack.c.h.b16 %v3256
    %v4338 = vunpack.c.l.b16 %v3257
    %v4339 = vunpack.c.h.b16 %v3257
    %v4340 = vunpack.c.l.b16 %v3258
    %v4341 = vunpack.c.l.b16 %v3259
    %v4342 = vunpack.c.h.b16 %v3259
    %v4343 = vunpack.c.l.b16 %v3260
    %v4344 = vunpack.c.h.b16 %v3260
    %v4345 = vunpack.c.l.b16 %v3261
    %v4346 = vunpack.c.h.b16 %v3261
    %v4347 = vunpack.c.l.b16 %v3262
    %v4348 = vunpack.c.l.b16 %v3263
    %v4349 = vunpack.c.h.b16 %v3263
    %v4350 = vunpack.c.l.b16 %v3264
    %v4351 = vunpack.c.h.b16 %v3264
    %v4352 = vunpack.c.l.b16 %v3265
    %v4353 = vunpack.c.h.b16 %v3265
    %v4354 = vunpack.c.l.b16 %v3266
    %v4355 = vunpack.c.l.b16 %v3267
    %v4356 = vunpack.c.h.b16 %v3267
    %v4357 = vunpack.c.l.b16 %v3268
    %v4358 = vunpack.c.h.b16 %v3268
    %v4359 = vunpack.c.l.b16 %v3269
    %v4360 = vunpack.c.h.b16 %v3269
    %v4361 = vunpack.c.l.b16 %v3270
    %v4362 = vunpack.c.l.b16 %v3271
    %v4363 = vunpack.c.h.b16 %v3271
    %v4364 = vunpack.c.l.b16 %v3272
    %v4365 = vunpack.c.h.b16 %v3272
    %v4366 = vunpack.c.l.b16 %v3273
    %v4367 = vunpack.c.h.b16 %v3273
    %v4368 = vunpack.c.l.b16 %v3274
    %v4369 = vpack.c.b16 %v3690, %v3683
    %v4370 = vpack.c.b16 %v3691, %v3684
    %v4371 = vpack.c.b16 %v3692, %v3685
    %v4372 = vpack.c.b16 %v3693, %v3686
    %v4373 = vpack.c.b16 %v3694, %v3687
    %v4374 = vpack.c.b16 %v3695, %v3688
    %v4375 = vpack.c.b16 %v3696, %v3689
    %v4376 = vpack.c.b16 %v3704, %v3697
    %v4377 = vpack.c.b16 %v3705, %v3698
    %v4378 = vpack.c.b16 %v3706, %v3699
    %v4379 = vpack.c.b16 %v3707, %v3700
    %v4380 = vpack.c.b16 %v3708, %v3701
    %v4381 = vpack.c.b16 %v3709, %v3702
    %v4382 = vpack.c.b16 %v3710, %v3703
    %v4383 = vpack.c.b16 %v3718, %v3711
    %v4384 = vpack.c.b16 %v3719, %v3712
    %v4385 = vpack.c.b16 %v3720, %v3713
    %v4386 = vpack.c.b16 %v3721, %v3714
    %v4387 = vpack.c.b16 %v3722, %v3715
    %v4388 = vpack.c.b16 %v3723, %v3716
    %v4389 = vpack.c.b16 %v3724, %v3717
    %v4390 = vpack.c.b16 %v3732, %v3725
    %v4391 = vpack.c.b16 %v3733, %v3726
    %v4392 = vpack.c.b16 %v3734, %v3727
    %v4393 = vpack.c.b16 %v3735, %v3728
    %v4394 = vpack.c.b16 %v3736, %v3729
    %v4395 = vpack.c.b16 %v3737, %v3730
    %v4396 = vpack.c.b16 %v3738, %v3731
    %v4397 = vpack.c.b16 %v3746, %v3739
    %v4398 = vpack.c.b16 %v3747, %v3740
    %v4399 = vpack.c.b16 %v3748, %v3741
    %v4400 = vpack.c.b16 %v3749, %v3742
    %v4401 = vpack.c.b16 %v3750, %v3743
    %v4402 = vpack.c.b16 %v3751, %v3744
    %v4403 = vpack.c.b16 %v3752, %v3745
    %v4404 = vpack.c.b16 %v3760, %v3753
    %v4405 = vpack.c.b16 %v3761, %v3754
    %v4406 = vpack.c.b16 %v3762, %v3755
    %v4407 = vpack.c.b16 %v3763, %v3756
    %v4408 = vpack.c.b16 %v3764, %v3757
    %v4409 = vpack.c.b16 %v3765, %v3758
    %v4410 = vpack.c.b16 %v3766, %v3759
    %v4411 = vpack.c.b16 %v3774, %v3767
    %v4412 = vpack.c.b16 %v3775, %v3768
    %v4413 = vpack.c.b16 %v3776, %v3769
    %v4414 = vpack.c.b16 %v3777, %v3770
    %v4415 = vpack.c.b16 %v3778, %v3771
    %v4416 = vpack.c.b16 %v3779, %v3772
    %v4417 = vpack.c.b16 %v3780, %v3773
    %v4418 = vpack.c.b16 %v3788, %v3781
    %v4419 = vpack.c.b16 %v3789, %v3782
    %v4420 = vpack.c.b16 %v3790, %v3783
    %v4421 = vpack.c.b16 %v3791, %v3784
    %v4422 = vpack.c.b16 %v3792, %v3785
    %v4423 = vpack.c.b16 %v3793, %v3786
    %v4424 = vpack.c.b16 %v3794, %v3787
    %v4425 = vpack.c.b16 %v3802, %v3795
    %v4426 = vpack.c.b16 %v3803, %v3796
    %v4427 = vpack.c.b16 %v3804, %v3797
    %v4428 = vpack.c.b16 %v3805, %v3798
    %v4429 = vpack.c.b16 %v3806, %v3799
    %v4430 = vpack.c.b16 %v3807, %v3800
    %v4431 = vpack.c.b16 %v3808, %v3801
    %v4432 = vpack.c.b16 %v3816, %v3809
    %v4433 = vpack.c.b16 %v3817, %v3810
    %v4434 = vpack.c.b16 %v3818, %v3811
    %v4435 = vpack.c.b16 %v3819, %v3812
    %v4436 = vpack.c.b16 %v3820, %v3813
    %v4437 = vpack.c.b16 %v3821, %v3814
    %v4438 = vpack.c.b16 %v3822, %v3815
    %v4439 = vpack.c.b16 %v3830, %v3823
    %v4440 = vpack.c.b16 %v3831, %v3824
    %v4441 = vpack.c.b16 %v3832, %v3825
    %v4442 = vpack.c.b16 %v3833, %v3826
    %v4443 = vpack.c.b16 %v3834, %v3827
    %v4444 = vpack.c.b16 %v3835, %v3828
    %v4445 = vpack.c.b16 %v3836, %v3829
    %v4446 = vpack.c.b16 %v3844, %v3837
    %v4447 = vpack.c.b16 %v3845, %v3838
    %v4448 = vpack.c.b16 %v3846, %v3839
    %v4449 = vpack.c.b16 %v3847, %v3840
    %v4450 = vpack.c.b16 %v3848, %v3841
    %v4451 = vpack.c.b16 %v3849, %v3842
    %v4452 = vpack.c.b16 %v3850, %v3843
    %v4453 = vpack.c.b16 %v3858, %v3851
    %v4454 = vpack.c.b16 %v3859, %v3852
    %v4455 = vpack.c.b16 %v3860, %v3853
    %v4456 = vpack.c.b16 %v3861, %v3854
    %v4457 = vpack.c.b16 %v3862, %v3855
    %v4458 = vpack.c.b16 %v3863, %v3856
    %v4459 = vpack.c.b16 %v3864, %v3857
    %v4460 = vpack.c.b16 %v3872, %v3865
    %v4461 = vpack.c.b16 %v3873, %v3866
    %v4462 = vpack.c.b16 %v3874, %v3867
    %v4463 = vpack.c.b16 %v3875, %v3868
    %v4464 = vpack.c.b16 %v3876, %v3869
    %v4465 = vpack.c.b16 %v3877, %v3870
    %v4466 = vpack.c.b16 %v3878, %v3871
    %v4467 = vpack.c.b16 %v3886, %v3879
    %v4468 = vpack.c.b16 %v3887, %v3880
    %v4469 = vpack.c.b16 %v3888, %v3881
    %v4470 = vpack.c.b16 %v3889, %v3882
    %v4471 = vpack.c.b16 %v3890, %v3883
    %v4472 = vpack.c.b16 %v3891, %v3884
    %v4473 = vpack.c.b16 %v3892, %v3885
    %v4474 = vpack.c.b16 %v3900, %v3893
    %v4475 = vpack.c.b16 %v3901, %v3894
    %v4476 = vpack.c.b16 %v3902, %v3895
    %v4477 = vpack.c.b16 %v3903, %v3896
    %v4478 = vpack.c.b16 %v3904, %v3897
    %v4479 = vpack.c.b16 %v3905, %v3898
    %v4480 = vpack.c.b16 %v3906, %v3899
    %v4481 = vpack.c.b16 %v3914, %v3907
    %v4482 = vpack.c.b16 %v3915, %v3908
    %v4483 = vpack.c.b16 %v3916, %v3909
    %v4484 = vpack.c.b16 %v3917, %v3910
    %v4485 = vpack.c.b16 %v3918, %v3911
    %v4486 = vpack.c.b16 %v3919, %v3912
    %v4487 = vpack.c.b16 %v3920, %v3913
    %v4488 = vpack.c.b16 %v3928, %v3921
    %v4489 = vpack.c.b16 %v3929, %v3922
    %v4490 = vpack.c.b16 %v3930, %v3923
    %v4491 = vpack.c.b16 %v3931, %v3924
    %v4492 = vpack.c.b16 %v3932, %v3925
    %v4493 = vpack.c.b16 %v3933, %v3926
    %v4494 = vpack.c.b16 %v3934, %v3927
    %v4495 = vpack.c.b16 %v3942, %v3935
    %v4496 = vpack.c.b16 %v3943, %v3936
    %v4497 = vpack.c.b16 %v3944, %v3937
    %v4498 = vpack.c.b16 %v3945, %v3938
    %v4499 = vpack.c.b16 %v3946, %v3939
    %v4500 = vpack.c.b16 %v3947, %v3940
    %v4501 = vpack.c.b16 %v3948, %v3941
    %v4502 = vpack.c.b16 %v3956, %v3949
    %v4503 = vpack.c.b16 %v3957, %v3950
    %v4504 = vpack.c.b16 %v3958, %v3951
    %v4505 = vpack.c.b16 %v3959, %v3952
    %v4506 = vpack.c.b16 %v3960, %v3953
    %v4507 = vpack.c.b16 %v3961, %v3954
    %v4508 = vpack.c.b16 %v3962, %v3955
    %v4509 = vpack.c.b16 %v3970, %v3963
    %v4510 = vpack.c.b16 %v3971, %v3964
    %v4511 = vpack.c.b16 %v3972, %v3965
    %v4512 = vpack.c.b16 %v3973, %v3966
    %v4513 = vpack.c.b16 %v3974, %v3967
    %v4514 = vpack.c.b16 %v3975, %v3968
    %v4515 = vpack.c.b16 %v3976, %v3969
    %v4516 = vpack.c.b16 %v3984, %v3977
    %v4517 = vpack.c.b16 %v3985, %v3978
    %v4518 = vpack.c.b16 %v3986, %v3979
    %v4519 = vpack.c.b16 %v3987, %v3980
    %v4520 = vpack.c.b16 %v3988, %v3981
    %v4521 = vpack.c.b16 %v3989, %v3982
    %v4522 = vpack.c.b16 %v3990, %v3983
    %v4523 = vpack.c.b16 %v3998, %v3991
    %v4524 = vpack.c.b16 %v3999, %v3992
    %v4525 = vpack.c.b16 %v4000, %v3993
    %v4526 = vpack.c.b16 %v4001, %v3994
    %v4527 = vpack.c.b16 %v4002, %v3995
    %v4528 = vpack.c.b16 %v4003, %v3996
    %v4529 = vpack.c.b16 %v4004, %v3997
    %v4530 = vpack.c.b16 %v4012, %v4005
    %v4531 = vpack.c.b16 %v4013, %v4006
    %v4532 = vpack.c.b16 %v4014, %v4007
    %v4533 = vpack.c.b16 %v4015, %v4008
    %v4534 = vpack.c.b16 %v4016, %v4009
    %v4535 = vpack.c.b16 %v4017, %v4010
    %v4536 = vpack.c.b16 %v4018, %v4011
    %v4537 = vpack.c.b16 %v4026, %v4019
    %v4538 = vpack.c.b16 %v4027, %v4020
    %v4539 = vpack.c.b16 %v4028, %v4021
    %v4540 = vpack.c.b16 %v4029, %v4022
    %v4541 = vpack.c.b16 %v4030, %v4023
    %v4542 = vpack.c.b16 %v4031, %v4024
    %v4543 = vpack.c.b16 %v4032, %v4025
    %v4544 = vpack.c.b16 %v4040, %v4033
    %v4545 = vpack.c.b16 %v4041, %v4034
    %v4546 = vpack.c.b16 %v4042, %v4035
    %v4547 = vpack.c.b16 %v4043, %v4036
    %v4548 = vpack.c.b16 %v4044, %v4037
    %v4549 = vpack.c.b16 %v4045, %v4038
    %v4550 = vpack.c.b16 %v4046, %v4039
    %v4551 = vpack.c.b16 %v4054, %v4047
    %v4552 = vpack.c.b16 %v4055, %v4048
    %v4553 = vpack.c.b16 %v4056, %v4049
    %v4554 = vpack.c.b16 %v4057, %v4050
    %v4555 = vpack.c.b16 %v4058, %v4051
    %v4556 = vpack.c.b16 %v4059, %v4052
    %v4557 = vpack.c.b16 %v4060, %v4053
    %v4558 = vpack.c.b16 %v4068, %v4061
    %v4559 = vpack.c.b16 %v4069, %v4062
    %v4560 = vpack.c.b16 %v4070, %v4063
    %v4561 = vpack.c.b16 %v4071, %v4064
    %v4562 = vpack.c.b16 %v4072, %v4065
    %v4563 = vpack.c.b16 %v4073, %v4066
    %v4564 = vpack.c.b16 %v4074, %v4067
    %v4565 = vpack.c.b16 %v4082, %v4075
    %v4566 = vpack.c.b16 %v4083, %v4076
    %v4567 = vpack.c.b16 %v4084, %v4077
    %v4568 = vpack.c.b16 %v4085, %v4078
    %v4569 = vpack.c.b16 %v4086, %v4079
    %v4570 = vpack.c.b16 %v4087, %v4080
    %v4571 = vpack.c.b16 %v4088, %v4081
    %v4572 = vpack.c.b16 %v4096, %v4089
    %v4573 = vpack.c.b16 %v4097, %v4090
    %v4574 = vpack.c.b16 %v4098, %v4091
    %v4575 = vpack.c.b16 %v4099, %v4092
    %v4576 = vpack.c.b16 %v4100, %v4093
    %v4577 = vpack.c.b16 %v4101, %v4094
    %v4578 = vpack.c.b16 %v4102, %v4095
    %v4579 = vpack.c.b16 %v4110, %v4103
    %v4580 = vpack.c.b16 %v4111, %v4104
    %v4581 = vpack.c.b16 %v4112, %v4105
    %v4582 = vpack.c.b16 %v4113, %v4106
    %v4583 = vpack.c.b16 %v4114, %v4107
    %v4584 = vpack.c.b16 %v4115, %v4108
    %v4585 = vpack.c.b16 %v4116, %v4109
    %v4586 = vpack.c.b16 %v4124, %v4117
    %v4587 = vpack.c.b16 %v4125, %v4118
    %v4588 = vpack.c.b16 %v4126, %v4119
    %v4589 = vpack.c.b16 %v4127, %v4120
    %v4590 = vpack.c.b16 %v4128, %v4121
    %v4591 = vpack.c.b16 %v4129, %v4122
    %v4592 = vpack.c.b16 %v4130, %v4123
    %v4593 = vpack.c.b16 %v4138, %v4131
    %v4594 = vpack.c.b16 %v4139, %v4132
    %v4595 = vpack.c.b16 %v4140, %v4133
    %v4596 = vpack.c.b16 %v4141, %v4134
    %v4597 = vpack.c.b16 %v4142, %v4135
    %v4598 = vpack.c.b16 %v4143, %v4136
    %v4599 = vpack.c.b16 %v4144, %v4137
    %v4600 = vpack.c.b16 %v4152, %v4145
    %v4601 = vpack.c.b16 %v4153, %v4146
    %v4602 = vpack.c.b16 %v4154, %v4147
    %v4603 = vpack.c.b16 %v4155, %v4148
    %v4604 = vpack.c.b16 %v4156, %v4149
    %v4605 = vpack.c.b16 %v4157, %v4150
    %v4606 = vpack.c.b16 %v4158, %v4151
    %v4607 = vpack.c.b16 %v4166, %v4159
    %v4608 = vpack.c.b16 %v4167, %v4160
    %v4609 = vpack.c.b16 %v4168, %v4161
    %v4610 = vpack.c.b16 %v4169, %v4162
    %v4611 = vpack.c.b16 %v4170, %v4163
    %v4612 = vpack.c.b16 %v4171, %v4164
    %v4613 = vpack.c.b16 %v4172, %v4165
    %v4614 = vpack.c.b16 %v4180, %v4173
    %v4615 = vpack.c.b16 %v4181, %v4174
    %v4616 = vpack.c.b16 %v4182, %v4175
    %v4617 = vpack.c.b16 %v4183, %v4176
    %v4618 = vpack.c.b16 %v4184, %v4177
    %v4619 = vpack.c.b16 %v4185, %v4178
    %v4620 = vpack.c.b16 %v4186, %v4179
    %v4621 = vpack.c.b16 %v4194, %v4187
    %v4622 = vpack.c.b16 %v4195, %v4188
    %v4623 = vpack.c.b16 %v4196, %v4189
    %v4624 = vpack.c.b16 %v4197, %v4190
    %v4625 = vpack.c.b16 %v4198, %v4191
    %v4626 = vpack.c.b16 %v4199, %v4192
    %v4627 = vpack.c.b16 %v4200, %v4193
    %v4628 = vpack.c.b16 %v4208, %v4201
    %v4629 = vpack.c.b16 %v4209, %v4202
    %v4630 = vpack.c.b16 %v4210, %v4203
    %v4631 = vpack.c.b16 %v4211, %v4204
    %v4632 = vpack.c.b16 %v4212, %v4205
    %v4633 = vpack.c.b16 %v4213, %v4206
    %v4634 = vpack.c.b16 %v4214, %v4207
    %v4635 = vpack.c.b16 %v4222, %v4215
    %v4636 = vpack.c.b16 %v4223, %v4216
    %v4637 = vpack.c.b16 %v4224, %v4217
    %v4638 = vpack.c.b16 %v4225, %v4218
    %v4639 = vpack.c.b16 %v4226, %v4219
    %v4640 = vpack.c.b16 %v4227, %v4220
    %v4641 = vpack.c.b16 %v4228, %v4221
    %v4642 = vpack.c.b16 %v4236, %v4229
    %v4643 = vpack.c.b16 %v4237, %v4230
    %v4644 = vpack.c.b16 %v4238, %v4231
    %v4645 = vpack.c.b16 %v4239, %v4232
    %v4646 = vpack.c.b16 %v4240, %v4233
    %v4647 = vpack.c.b16 %v4241, %v4234
    %v4648 = vpack.c.b16 %v4242, %v4235
    %v4649 = vpack.c.b16 %v4250, %v4243
    %v4650 = vpack.c.b16 %v4251, %v4244
    %v4651 = vpack.c.b16 %v4252, %v4245
    %v4652 = vpack.c.b16 %v4253, %v4246
    %v4653 = vpack.c.b16 %v4254, %v4247
    %v4654 = vpack.c.b16 %v4255, %v4248
    %v4655 = vpack.c.b16 %v4256, %v4249
    %v4656 = vpack.c.b16 %v4264, %v4257
    %v4657 = vpack.c.b16 %v4265, %v4258
    %v4658 = vpack.c.b16 %v4266, %v4259
    %v4659 = vpack.c.b16 %v4267, %v4260
    %v4660 = vpack.c.b16 %v4268, %v4261
    %v4661 = vpack.c.b16 %v4269, %v4262
    %v4662 = vpack.c.b16 %v4270, %v4263
    %v4663 = vpack.c.b16 %v4278, %v4271
    %v4664 = vpack.c.b16 %v4279, %v4272
    %v4665 = vpack.c.b16 %v4280, %v4273
    %v4666 = vpack.c.b16 %v4281, %v4274
    %v4667 = vpack.c.b16 %v4282, %v4275
    %v4668 = vpack.c.b16 %v4283, %v4276
    %v4669 = vpack.c.b16 %v4284, %v4277
    %v4670 = vpack.c.b16 %v4292, %v4285
    %v4671 = vpack.c.b16 %v4293, %v4286
    %v4672 = vpack.c.b16 %v4294, %v4287
    %v4673 = vpack.c.b16 %v4295, %v4288
    %v4674 = vpack.c.b16 %v4296, %v4289
    %v4675 = vpack.c.b16 %v4297, %v4290
    %v4676 = vpack.c.b16 %v4298, %v4291
    %v4677 = vpack.c.b16 %v4306, %v4299
    %v4678 = vpack.c.b16 %v4307, %v4300
    %v4679 = vpack.c.b16 %v4308, %v4301
    %v4680 = vpack.c.b16 %v4309, %v4302
    %v4681 = vpack.c.b16 %v4310, %v4303
    %v4682 = vpack.c.b16 %v4311, %v4304
    %v4683 = vpack.c.b16 %v4312, %v4305
    %v4684 = vpack.c.b16 %v4320, %v4313
    %v4685 = vpack.c.b16 %v4321, %v4314
    %v4686 = vpack.c.b16 %v4322, %v4315
    %v4687 = vpack.c.b16 %v4323, %v4316
    %v4688 = vpack.c.b16 %v4324, %v4317
    %v4689 = vpack.c.b16 %v4325, %v4318
    %v4690 = vpack.c.b16 %v4326, %v4319
    %v4691 = vpack.c.b16 %v4334, %v4327
    %v4692 = vpack.c.b16 %v4335, %v4328
    %v4693 = vpack.c.b16 %v4336, %v4329
    %v4694 = vpack.c.b16 %v4337, %v4330
    %v4695 = vpack.c.b16 %v4338, %v4331
    %v4696 = vpack.c.b16 %v4339, %v4332
    %v4697 = vpack.c.b16 %v4340, %v4333
    %v4698 = vpack.c.b16 %v4348, %v4341
    %v4699 = vpack.c.b16 %v4349, %v4342
    %v4700 = vpack.c.b16 %v4350, %v4343
    %v4701 = vpack.c.b16 %v4351, %v4344
    %v4702 = vpack.c.b16 %v4352, %v4345
    %v4703 = vpack.c.b16 %v4353, %v4346
    %v4704 = vpack.c.b16 %v4354, %v4347
    %v4705 = vpack.c.b16 %v4362, %v4355
    %v4706 = vpack.c.b16 %v4363, %v4356
    %v4707 = vpack.c.b16 %v4364, %v4357
    %v4708 = vpack.c.b16 %v4365, %v4358
    %v4709 = vpack.c.b16 %v4366, %v4359
    %v4710 = vpack.c.b16 %v4367, %v4360
    %v4711 = vpack.c.b16 %v4368, %v4361
    %v5056 = vsel %vm2228, %v2882, 0
    %5058 = vmatpush.bf16.msra.mxu0 %v4418
    %5059 = vmatpush.bf16.msra.mxu0 %v4411
    %5060 = vmatpush.bf16.msra.mxu0 %v4404
    %5061 = vmatpush.bf16.msra.mxu0 %v4397
    %5062 = vmatpush.bf16.msra.mxu0 %v4390
    %5063 = vmatpush.bf16.msra.mxu0 %v4383
    %5064 = vmatpush.bf16.msra.mxu0 %v4376
    %5065 = vmatpush.bf16.msra.mxu0 %v4369
    %5066 = vmatmul.bf16.gmra.mxu0 %v2876
    %v5067 = vpop.f32.mrf.mxu0
    %v5068 = vadd.f32 %v3277, %v5067
    %v5069 = vpop.f32.mrf.mxu0
    %5070 = vdwg.mxu0
    %5071 = vmatpush.bf16.msra.mxu0 %v4474
    %5072 = vmatpush.bf16.msra.mxu0 %v4467
    %5073 = vmatpush.bf16.msra.mxu0 %v4460
    %5074 = vmatpush.bf16.msra.mxu0 %v4453
    %5075 = vmatpush.bf16.msra.mxu0 %v4446
    %5076 = vmatpush.bf16.msra.mxu0 %v4439
    %5077 = vmatpush.bf16.msra.mxu0 %v4432
    %5078 = vmatpush.bf16.msra.mxu0 %v4425
    %5079 = vmatmul.bf16.gmra.mxu0 %v2877
    %v5080 = vpop.f32.mrf.mxu0
    %v5081 = vadd.f32 %v5068, %v5080
    %v5082 = vpop.f32.mrf.mxu0
    %5083 = vdwg.mxu0
    %5084 = vmatpush.bf16.msra.mxu0 %v4530
    %5085 = vmatpush.bf16.msra.mxu0 %v4523
    %5086 = vmatpush.bf16.msra.mxu0 %v4516
    %5087 = vmatpush.bf16.msra.mxu0 %v4509
    %5088 = vmatpush.bf16.msra.mxu0 %v4502
    %5089 = vmatpush.bf16.msra.mxu0 %v4495
    %5090 = vmatpush.bf16.msra.mxu0 %v4488
    %5091 = vmatpush.bf16.msra.mxu0 %v4481
    %5092 = vmatmul.bf16.gmra.mxu0 %v2878
    %v5093 = vpop.f32.mrf.mxu0
    %v5094 = vadd.f32 %v5081, %v5093
    %v5095 = vpop.f32.mrf.mxu0
    %5096 = vdwg.mxu0
    %5097 = vmatpush.bf16.msra.mxu0 %v4586
    %5098 = vmatpush.bf16.msra.mxu0 %v4579
    %5099 = vmatpush.bf16.msra.mxu0 %v4572
    %5100 = vmatpush.bf16.msra.mxu0 %v4565
    %5101 = vmatpush.bf16.msra.mxu0 %v4558
    %5102 = vmatpush.bf16.msra.mxu0 %v4551
    %5103 = vmatpush.bf16.msra.mxu0 %v4544
    %5104 = vmatpush.bf16.msra.mxu0 %v4537
    %5105 = vmatmul.bf16.gmra.mxu0 %v2879
    %v5106 = vpop.f32.mrf.mxu0
    %v5107 = vadd.f32 %v5094, %v5106
    %v5108 = vpop.f32.mrf.mxu0
    %5109 = vdwg.mxu0
    %5110 = vmatpush.bf16.msra.mxu0 %v4642
    %5111 = vmatpush.bf16.msra.mxu0 %v4635
    %5112 = vmatpush.bf16.msra.mxu0 %v4628
    %5113 = vmatpush.bf16.msra.mxu0 %v4621
    %5114 = vmatpush.bf16.msra.mxu0 %v4614
    %5115 = vmatpush.bf16.msra.mxu0 %v4607
    %5116 = vmatpush.bf16.msra.mxu0 %v4600
    %5117 = vmatpush.bf16.msra.mxu0 %v4593
    %5118 = vmatmul.bf16.gmra.mxu0 %v2880
    %v5119 = vpop.f32.mrf.mxu0
    %v5120 = vadd.f32 %v5107, %v5119
    %v5121 = vpop.f32.mrf.mxu0
    %5122 = vdwg.mxu0
    %5123 = vmatpush.bf16.msra.mxu0 %v4698
    %5124 = vmatpush.bf16.msra.mxu0 %v4691
    %5125 = vmatpush.bf16.msra.mxu0 %v4684
    %5126 = vmatpush.bf16.msra.mxu0 %v4677
    %5127 = vmatpush.bf16.msra.mxu0 %v4670
    %5128 = vmatpush.bf16.msra.mxu0 %v4663
    %5129 = vmatpush.bf16.msra.mxu0 %v4656
    %5130 = vmatpush.bf16.msra.mxu0 %v4649
    %5131 = vmatmul.bf16.gmra.mxu0 %v2881
    %v5132 = vpop.f32.mrf.mxu0
    %v5133 = vadd.f32 %v5120, %v5132
    %v5134 = vpop.f32.mrf.mxu0
    %5135 = vdwg.mxu0
    %5136 = vmatpush.bf16.msra.mxu0 0
    %5137 = vmatpush.bf16.msra.mxu0 0
    %5138 = vmatpush.bf16.msra.mxu0 0
    %5139 = vmatpush.bf16.msra.mxu0 0
    %5140 = vmatpush.bf16.msra.mxu0 0
    %5141 = vmatpush.bf16.msra.mxu0 0
    %5142 = vmatpush.bf16.msra.mxu0 0
    %5143 = vmatpush.bf16.msra.mxu0 %v4705
    %5144 = vmatmul.bf16.gmra.mxu0 %v5056
    %v5145 = vpop.f32.mrf.mxu0
    %v5146 = vadd.f32 %v5133, %v5145
    %v5147 = vpop.f32.mrf.mxu0
    %5148 = vdwg.mxu0
    %5149 = vmatpush.bf16.msra.mxu0 %v4419
    %5150 = vmatpush.bf16.msra.mxu0 %v4412
    %5151 = vmatpush.bf16.msra.mxu0 %v4405
    %5152 = vmatpush.bf16.msra.mxu0 %v4398
    %5153 = vmatpush.bf16.msra.mxu0 %v4391
    %5154 = vmatpush.bf16.msra.mxu0 %v4384
    %5155 = vmatpush.bf16.msra.mxu0 %v4377
    %5156 = vmatpush.bf16.msra.mxu0 %v4370
    %5157 = vmatmul.bf16.gmra.mxu0 %v2876
    %v5158 = vpop.f32.mrf.mxu0
    %v5159 = vadd.f32 %v3278, %v5158
    %v5160 = vpop.f32.mrf.mxu0
    %5161 = vdwg.mxu0
    %5162 = vmatpush.bf16.msra.mxu0 %v4475
    %5163 = vmatpush.bf16.msra.mxu0 %v4468
    %5164 = vmatpush.bf16.msra.mxu0 %v4461
    %5165 = vmatpush.bf16.msra.mxu0 %v4454
    %5166 = vmatpush.bf16.msra.mxu0 %v4447
    %5167 = vmatpush.bf16.msra.mxu0 %v4440
    %5168 = vmatpush.bf16.msra.mxu0 %v4433
    %5169 = vmatpush.bf16.msra.mxu0 %v4426
    %5170 = vmatmul.bf16.gmra.mxu0 %v2877
    %v5171 = vpop.f32.mrf.mxu0
    %v5172 = vadd.f32 %v5159, %v5171
    %v5173 = vpop.f32.mrf.mxu0
    %5174 = vdwg.mxu0
    %5175 = vmatpush.bf16.msra.mxu0 %v4531
    %5176 = vmatpush.bf16.msra.mxu0 %v4524
    %5177 = vmatpush.bf16.msra.mxu0 %v4517
    %5178 = vmatpush.bf16.msra.mxu0 %v4510
    %5179 = vmatpush.bf16.msra.mxu0 %v4503
    %5180 = vmatpush.bf16.msra.mxu0 %v4496
    %5181 = vmatpush.bf16.msra.mxu0 %v4489
    %5182 = vmatpush.bf16.msra.mxu0 %v4482
    %5183 = vmatmul.bf16.gmra.mxu0 %v2878
    %v5184 = vpop.f32.mrf.mxu0
    %v5185 = vadd.f32 %v5172, %v5184
    %v5186 = vpop.f32.mrf.mxu0
    %5187 = vdwg.mxu0
    %5188 = vmatpush.bf16.msra.mxu0 %v4587
    %5189 = vmatpush.bf16.msra.mxu0 %v4580
    %5190 = vmatpush.bf16.msra.mxu0 %v4573
    %5191 = vmatpush.bf16.msra.mxu0 %v4566
    %5192 = vmatpush.bf16.msra.mxu0 %v4559
    %5193 = vmatpush.bf16.msra.mxu0 %v4552
    %5194 = vmatpush.bf16.msra.mxu0 %v4545
    %5195 = vmatpush.bf16.msra.mxu0 %v4538
    %5196 = vmatmul.bf16.gmra.mxu0 %v2879
    %v5197 = vpop.f32.mrf.mxu0
    %v5198 = vadd.f32 %v5185, %v5197
    %v5199 = vpop.f32.mrf.mxu0
    %5200 = vdwg.mxu0
    %5201 = vmatpush.bf16.msra.mxu0 %v4643
    %5202 = vmatpush.bf16.msra.mxu0 %v4636
    %5203 = vmatpush.bf16.msra.mxu0 %v4629
    %5204 = vmatpush.bf16.msra.mxu0 %v4622
    %5205 = vmatpush.bf16.msra.mxu0 %v4615
    %5206 = vmatpush.bf16.msra.mxu0 %v4608
    %5207 = vmatpush.bf16.msra.mxu0 %v4601
    %5208 = vmatpush.bf16.msra.mxu0 %v4594
    %5209 = vmatmul.bf16.gmra.mxu0 %v2880
    %v5210 = vpop.f32.mrf.mxu0
    %v5211 = vadd.f32 %v5198, %v5210
    %v5212 = vpop.f32.mrf.mxu0
    %5213 = vdwg.mxu0
    %5214 = vmatpush.bf16.msra.mxu0 %v4699
    %5215 = vmatpush.bf16.msra.mxu0 %v4692
    %5216 = vmatpush.bf16.msra.mxu0 %v4685
    %5217 = vmatpush.bf16.msra.mxu0 %v4678
    %5218 = vmatpush.bf16.msra.mxu0 %v4671
    %5219 = vmatpush.bf16.msra.mxu0 %v4664
    %5220 = vmatpush.bf16.msra.mxu0 %v4657
    %5221 = vmatpush.bf16.msra.mxu0 %v4650
    %5222 = vmatmul.bf16.gmra.mxu0 %v2881
    %v5223 = vpop.f32.mrf.mxu0
    %v5224 = vadd.f32 %v5211, %v5223
    %v5225 = vpop.f32.mrf.mxu0
    %5226 = vdwg.mxu0
    %5227 = vmatpush.bf16.msra.mxu0 0
    %5228 = vmatpush.bf16.msra.mxu0 0
    %5229 = vmatpush.bf16.msra.mxu0 0
    %5230 = vmatpush.bf16.msra.mxu0 0
    %5231 = vmatpush.bf16.msra.mxu0 0
    %5232 = vmatpush.bf16.msra.mxu0 0
    %5233 = vmatpush.bf16.msra.mxu0 0
    %5234 = vmatpush.bf16.msra.mxu0 %v4706
    %5235 = vmatmul.bf16.gmra.mxu0 %v5056
    %v5236 = vpop.f32.mrf.mxu0
    %v5237 = vadd.f32 %v5224, %v5236
    %v5238 = vpop.f32.mrf.mxu0
    %5239 = vdwg.mxu0
    %5240 = vmatpush.bf16.msra.mxu0 %v4420
    %5241 = vmatpush.bf16.msra.mxu0 %v4413
    %5242 = vmatpush.bf16.msra.mxu0 %v4406
    %5243 = vmatpush.bf16.msra.mxu0 %v4399
    %5244 = vmatpush.bf16.msra.mxu0 %v4392
    %5245 = vmatpush.bf16.msra.mxu0 %v4385
    %5246 = vmatpush.bf16.msra.mxu0 %v4378
    %5247 = vmatpush.bf16.msra.mxu0 %v4371
    %5248 = vmatmul.bf16.gmra.mxu0 %v2876
    %v5249 = vpop.f32.mrf.mxu0
    %v5250 = vadd.f32 %v3279, %v5249
    %v5251 = vpop.f32.mrf.mxu0
    %5252 = vdwg.mxu0
    %5253 = vmatpush.bf16.msra.mxu0 %v4476
    %5254 = vmatpush.bf16.msra.mxu0 %v4469
    %5255 = vmatpush.bf16.msra.mxu0 %v4462
    %5256 = vmatpush.bf16.msra.mxu0 %v4455
    %5257 = vmatpush.bf16.msra.mxu0 %v4448
    %5258 = vmatpush.bf16.msra.mxu0 %v4441
    %5259 = vmatpush.bf16.msra.mxu0 %v4434
    %5260 = vmatpush.bf16.msra.mxu0 %v4427
    %5261 = vmatmul.bf16.gmra.mxu0 %v2877
    %v5262 = vpop.f32.mrf.mxu0
    %v5263 = vadd.f32 %v5250, %v5262
    %v5264 = vpop.f32.mrf.mxu0
    %5265 = vdwg.mxu0
    %5266 = vmatpush.bf16.msra.mxu0 %v4532
    %5267 = vmatpush.bf16.msra.mxu0 %v4525
    %5268 = vmatpush.bf16.msra.mxu0 %v4518
    %5269 = vmatpush.bf16.msra.mxu0 %v4511
    %5270 = vmatpush.bf16.msra.mxu0 %v4504
    %5271 = vmatpush.bf16.msra.mxu0 %v4497
    %5272 = vmatpush.bf16.msra.mxu0 %v4490
    %5273 = vmatpush.bf16.msra.mxu0 %v4483
    %5274 = vmatmul.bf16.gmra.mxu0 %v2878
    %v5275 = vpop.f32.mrf.mxu0
    %v5276 = vadd.f32 %v5263, %v5275
    %v5277 = vpop.f32.mrf.mxu0
    %5278 = vdwg.mxu0
    %5279 = vmatpush.bf16.msra.mxu0 %v4588
    %5280 = vmatpush.bf16.msra.mxu0 %v4581
    %5281 = vmatpush.bf16.msra.mxu0 %v4574
    %5282 = vmatpush.bf16.msra.mxu0 %v4567
    %5283 = vmatpush.bf16.msra.mxu0 %v4560
    %5284 = vmatpush.bf16.msra.mxu0 %v4553
    %5285 = vmatpush.bf16.msra.mxu0 %v4546
    %5286 = vmatpush.bf16.msra.mxu0 %v4539
    %5287 = vmatmul.bf16.gmra.mxu0 %v2879
    %v5288 = vpop.f32.mrf.mxu0
    %v5289 = vadd.f32 %v5276, %v5288
    %v5290 = vpop.f32.mrf.mxu0
    %5291 = vdwg.mxu0
    %5292 = vmatpush.bf16.msra.mxu0 %v4644
    %5293 = vmatpush.bf16.msra.mxu0 %v4637
    %5294 = vmatpush.bf16.msra.mxu0 %v4630
    %5295 = vmatpush.bf16.msra.mxu0 %v4623
    %5296 = vmatpush.bf16.msra.mxu0 %v4616
    %5297 = vmatpush.bf16.msra.mxu0 %v4609
    %5298 = vmatpush.bf16.msra.mxu0 %v4602
    %5299 = vmatpush.bf16.msra.mxu0 %v4595
    %5300 = vmatmul.bf16.gmra.mxu0 %v2880
    %v5301 = vpop.f32.mrf.mxu0
    %v5302 = vadd.f32 %v5289, %v5301
    %v5303 = vpop.f32.mrf.mxu0
    %5304 = vdwg.mxu0
    %5305 = vmatpush.bf16.msra.mxu0 %v4700
    %5306 = vmatpush.bf16.msra.mxu0 %v4693
    %5307 = vmatpush.bf16.msra.mxu0 %v4686
    %5308 = vmatpush.bf16.msra.mxu0 %v4679
    %5309 = vmatpush.bf16.msra.mxu0 %v4672
    %5310 = vmatpush.bf16.msra.mxu0 %v4665
    %5311 = vmatpush.bf16.msra.mxu0 %v4658
    %5312 = vmatpush.bf16.msra.mxu0 %v4651
    %5313 = vmatmul.bf16.gmra.mxu0 %v2881
    %v5314 = vpop.f32.mrf.mxu0
    %v5315 = vadd.f32 %v5302, %v5314
    %v5316 = vpop.f32.mrf.mxu0
    %5317 = vdwg.mxu0
    %5318 = vmatpush.bf16.msra.mxu0 0
    %5319 = vmatpush.bf16.msra.mxu0 0
    %5320 = vmatpush.bf16.msra.mxu0 0
    %5321 = vmatpush.bf16.msra.mxu0 0
    %5322 = vmatpush.bf16.msra.mxu0 0
    %5323 = vmatpush.bf16.msra.mxu0 0
    %5324 = vmatpush.bf16.msra.mxu0 0
    %5325 = vmatpush.bf16.msra.mxu0 %v4707
    %5326 = vmatmul.bf16.gmra.mxu0 %v5056
    %v5327 = vpop.f32.mrf.mxu0
    %v5328 = vadd.f32 %v5315, %v5327
    %v5329 = vpop.f32.mrf.mxu0
    %5330 = vdwg.mxu0
    %5331 = vmatpush.bf16.msra.mxu0 %v4421
    %5332 = vmatpush.bf16.msra.mxu0 %v4414
    %5333 = vmatpush.bf16.msra.mxu0 %v4407
    %5334 = vmatpush.bf16.msra.mxu0 %v4400
    %5335 = vmatpush.bf16.msra.mxu0 %v4393
    %5336 = vmatpush.bf16.msra.mxu0 %v4386
    %5337 = vmatpush.bf16.msra.mxu0 %v4379
    %5338 = vmatpush.bf16.msra.mxu0 %v4372
    %5339 = vmatmul.bf16.gmra.mxu0 %v2876
    %v5340 = vpop.f32.mrf.mxu0
    %v5341 = vadd.f32 %v3280, %v5340
    %v5342 = vpop.f32.mrf.mxu0
    %5343 = vdwg.mxu0
    %5344 = vmatpush.bf16.msra.mxu0 %v4477
    %5345 = vmatpush.bf16.msra.mxu0 %v4470
    %5346 = vmatpush.bf16.msra.mxu0 %v4463
    %5347 = vmatpush.bf16.msra.mxu0 %v4456
    %5348 = vmatpush.bf16.msra.mxu0 %v4449
    %5349 = vmatpush.bf16.msra.mxu0 %v4442
    %5350 = vmatpush.bf16.msra.mxu0 %v4435
    %5351 = vmatpush.bf16.msra.mxu0 %v4428
    %5352 = vmatmul.bf16.gmra.mxu0 %v2877
    %v5353 = vpop.f32.mrf.mxu0
    %v5354 = vadd.f32 %v5341, %v5353
    %v5355 = vpop.f32.mrf.mxu0
    %5356 = vdwg.mxu0
    %5357 = vmatpush.bf16.msra.mxu0 %v4533
    %5358 = vmatpush.bf16.msra.mxu0 %v4526
    %5359 = vmatpush.bf16.msra.mxu0 %v4519
    %5360 = vmatpush.bf16.msra.mxu0 %v4512
    %5361 = vmatpush.bf16.msra.mxu0 %v4505
    %5362 = vmatpush.bf16.msra.mxu0 %v4498
    %5363 = vmatpush.bf16.msra.mxu0 %v4491
    %5364 = vmatpush.bf16.msra.mxu0 %v4484
    %5365 = vmatmul.bf16.gmra.mxu0 %v2878
    %v5366 = vpop.f32.mrf.mxu0
    %v5367 = vadd.f32 %v5354, %v5366
    %v5368 = vpop.f32.mrf.mxu0
    %5369 = vdwg.mxu0
    %5370 = vmatpush.bf16.msra.mxu0 %v4589
    %5371 = vmatpush.bf16.msra.mxu0 %v4582
    %5372 = vmatpush.bf16.msra.mxu0 %v4575
    %5373 = vmatpush.bf16.msra.mxu0 %v4568
    %5374 = vmatpush.bf16.msra.mxu0 %v4561
    %5375 = vmatpush.bf16.msra.mxu0 %v4554
    %5376 = vmatpush.bf16.msra.mxu0 %v4547
    %5377 = vmatpush.bf16.msra.mxu0 %v4540
    %5378 = vmatmul.bf16.gmra.mxu0 %v2879
    %v5379 = vpop.f32.mrf.mxu0
    %v5380 = vadd.f32 %v5367, %v5379
    %v5381 = vpop.f32.mrf.mxu0
    %5382 = vdwg.mxu0
    %5383 = vmatpush.bf16.msra.mxu0 %v4645
    %5384 = vmatpush.bf16.msra.mxu0 %v4638
    %5385 = vmatpush.bf16.msra.mxu0 %v4631
    %5386 = vmatpush.bf16.msra.mxu0 %v4624
    %5387 = vmatpush.bf16.msra.mxu0 %v4617
    %5388 = vmatpush.bf16.msra.mxu0 %v4610
    %5389 = vmatpush.bf16.msra.mxu0 %v4603
    %5390 = vmatpush.bf16.msra.mxu0 %v4596
    %5391 = vmatmul.bf16.gmra.mxu0 %v2880
    %v5392 = vpop.f32.mrf.mxu0
    %v5393 = vadd.f32 %v5380, %v5392
    %v5394 = vpop.f32.mrf.mxu0
    %5395 = vdwg.mxu0
    %5396 = vmatpush.bf16.msra.mxu0 %v4701
    %5397 = vmatpush.bf16.msra.mxu0 %v4694
    %5398 = vmatpush.bf16.msra.mxu0 %v4687
    %5399 = vmatpush.bf16.msra.mxu0 %v4680
    %5400 = vmatpush.bf16.msra.mxu0 %v4673
    %5401 = vmatpush.bf16.msra.mxu0 %v4666
    %5402 = vmatpush.bf16.msra.mxu0 %v4659
    %5403 = vmatpush.bf16.msra.mxu0 %v4652
    %5404 = vmatmul.bf16.gmra.mxu0 %v2881
    %v5405 = vpop.f32.mrf.mxu0
    %v5406 = vadd.f32 %v5393, %v5405
    %v5407 = vpop.f32.mrf.mxu0
    %5408 = vdwg.mxu0
    %5409 = vmatpush.bf16.msra.mxu0 0
    %5410 = vmatpush.bf16.msra.mxu0 0
    %5411 = vmatpush.bf16.msra.mxu0 0
    %5412 = vmatpush.bf16.msra.mxu0 0
    %5413 = vmatpush.bf16.msra.mxu0 0
    %5414 = vmatpush.bf16.msra.mxu0 0
    %5415 = vmatpush.bf16.msra.mxu0 0
    %5416 = vmatpush.bf16.msra.mxu0 %v4708
    %5417 = vmatmul.bf16.gmra.mxu0 %v5056
    %v5418 = vpop.f32.mrf.mxu0
    %v5419 = vadd.f32 %v5406, %v5418
    %v5420 = vpop.f32.mrf.mxu0
    %5421 = vdwg.mxu0
    %5422 = vmatpush.bf16.msra.mxu0 %v4422
    %5423 = vmatpush.bf16.msra.mxu0 %v4415
    %5424 = vmatpush.bf16.msra.mxu0 %v4408
    %5425 = vmatpush.bf16.msra.mxu0 %v4401
    %5426 = vmatpush.bf16.msra.mxu0 %v4394
    %5427 = vmatpush.bf16.msra.mxu0 %v4387
    %5428 = vmatpush.bf16.msra.mxu0 %v4380
    %5429 = vmatpush.bf16.msra.mxu0 %v4373
    %5430 = vmatmul.bf16.gmra.mxu0 %v2876
    %v5431 = vpop.f32.mrf.mxu0
    %v5432 = vadd.f32 %v3281, %v5431
    %v5433 = vpop.f32.mrf.mxu0
    %5434 = vdwg.mxu0
    %5435 = vmatpush.bf16.msra.mxu0 %v4478
    %5436 = vmatpush.bf16.msra.mxu0 %v4471
    %5437 = vmatpush.bf16.msra.mxu0 %v4464
    %5438 = vmatpush.bf16.msra.mxu0 %v4457
    %5439 = vmatpush.bf16.msra.mxu0 %v4450
    %5440 = vmatpush.bf16.msra.mxu0 %v4443
    %5441 = vmatpush.bf16.msra.mxu0 %v4436
    %5442 = vmatpush.bf16.msra.mxu0 %v4429
    %5443 = vmatmul.bf16.gmra.mxu0 %v2877
    %v5444 = vpop.f32.mrf.mxu0
    %v5445 = vadd.f32 %v5432, %v5444
    %v5446 = vpop.f32.mrf.mxu0
    %5447 = vdwg.mxu0
    %5448 = vmatpush.bf16.msra.mxu0 %v4534
    %5449 = vmatpush.bf16.msra.mxu0 %v4527
    %5450 = vmatpush.bf16.msra.mxu0 %v4520
    %5451 = vmatpush.bf16.msra.mxu0 %v4513
    %5452 = vmatpush.bf16.msra.mxu0 %v4506
    %5453 = vmatpush.bf16.msra.mxu0 %v4499
    %5454 = vmatpush.bf16.msra.mxu0 %v4492
    %5455 = vmatpush.bf16.msra.mxu0 %v4485
    %5456 = vmatmul.bf16.gmra.mxu0 %v2878
    %v5457 = vpop.f32.mrf.mxu0
    %v5458 = vadd.f32 %v5445, %v5457
    %v5459 = vpop.f32.mrf.mxu0
    %5460 = vdwg.mxu0
    %5461 = vmatpush.bf16.msra.mxu0 %v4590
    %5462 = vmatpush.bf16.msra.mxu0 %v4583
    %5463 = vmatpush.bf16.msra.mxu0 %v4576
    %5464 = vmatpush.bf16.msra.mxu0 %v4569
    %5465 = vmatpush.bf16.msra.mxu0 %v4562
    %5466 = vmatpush.bf16.msra.mxu0 %v4555
    %5467 = vmatpush.bf16.msra.mxu0 %v4548
    %5468 = vmatpush.bf16.msra.mxu0 %v4541
    %5469 = vmatmul.bf16.gmra.mxu0 %v2879
    %v5470 = vpop.f32.mrf.mxu0
    %v5471 = vadd.f32 %v5458, %v5470
    %v5472 = vpop.f32.mrf.mxu0
    %5473 = vdwg.mxu0
    %5474 = vmatpush.bf16.msra.mxu0 %v4646
    %5475 = vmatpush.bf16.msra.mxu0 %v4639
    %5476 = vmatpush.bf16.msra.mxu0 %v4632
    %5477 = vmatpush.bf16.msra.mxu0 %v4625
    %5478 = vmatpush.bf16.msra.mxu0 %v4618
    %5479 = vmatpush.bf16.msra.mxu0 %v4611
    %5480 = vmatpush.bf16.msra.mxu0 %v4604
    %5481 = vmatpush.bf16.msra.mxu0 %v4597
    %5482 = vmatmul.bf16.gmra.mxu0 %v2880
    %v5483 = vpop.f32.mrf.mxu0
    %v5484 = vadd.f32 %v5471, %v5483
    %v5485 = vpop.f32.mrf.mxu0
    %5486 = vdwg.mxu0
    %5487 = vmatpush.bf16.msra.mxu0 %v4702
    %5488 = vmatpush.bf16.msra.mxu0 %v4695
    %5489 = vmatpush.bf16.msra.mxu0 %v4688
    %5490 = vmatpush.bf16.msra.mxu0 %v4681
    %5491 = vmatpush.bf16.msra.mxu0 %v4674
    %5492 = vmatpush.bf16.msra.mxu0 %v4667
    %5493 = vmatpush.bf16.msra.mxu0 %v4660
    %5494 = vmatpush.bf16.msra.mxu0 %v4653
    %5495 = vmatmul.bf16.gmra.mxu0 %v2881
    %v5496 = vpop.f32.mrf.mxu0
    %v5497 = vadd.f32 %v5484, %v5496
    %v5498 = vpop.f32.mrf.mxu0
    %5499 = vdwg.mxu0
    %5500 = vmatpush.bf16.msra.mxu0 0
    %5501 = vmatpush.bf16.msra.mxu0 0
    %5502 = vmatpush.bf16.msra.mxu0 0
    %5503 = vmatpush.bf16.msra.mxu0 0
    %5504 = vmatpush.bf16.msra.mxu0 0
    %5505 = vmatpush.bf16.msra.mxu0 0
    %5506 = vmatpush.bf16.msra.mxu0 0
    %5507 = vmatpush.bf16.msra.mxu0 %v4709
    %5508 = vmatmul.bf16.gmra.mxu0 %v5056
    %v5509 = vpop.f32.mrf.mxu0
    %v5510 = vadd.f32 %v5497, %v5509
    %v5511 = vpop.f32.mrf.mxu0
    %5512 = vdwg.mxu0
    %5513 = vmatpush.bf16.msra.mxu0 %v4423
    %5514 = vmatpush.bf16.msra.mxu0 %v4416
    %5515 = vmatpush.bf16.msra.mxu0 %v4409
    %5516 = vmatpush.bf16.msra.mxu0 %v4402
    %5517 = vmatpush.bf16.msra.mxu0 %v4395
    %5518 = vmatpush.bf16.msra.mxu0 %v4388
    %5519 = vmatpush.bf16.msra.mxu0 %v4381
    %5520 = vmatpush.bf16.msra.mxu0 %v4374
    %5521 = vmatmul.bf16.gmra.mxu0 %v2876
    %v5522 = vpop.f32.mrf.mxu0
    %v5523 = vadd.f32 %v3282, %v5522
    %v5524 = vpop.f32.mrf.mxu0
    %5525 = vdwg.mxu0
    %5526 = vmatpush.bf16.msra.mxu0 %v4479
    %5527 = vmatpush.bf16.msra.mxu0 %v4472
    %5528 = vmatpush.bf16.msra.mxu0 %v4465
    %5529 = vmatpush.bf16.msra.mxu0 %v4458
    %5530 = vmatpush.bf16.msra.mxu0 %v4451
    %5531 = vmatpush.bf16.msra.mxu0 %v4444
    %5532 = vmatpush.bf16.msra.mxu0 %v4437
    %5533 = vmatpush.bf16.msra.mxu0 %v4430
    %5534 = vmatmul.bf16.gmra.mxu0 %v2877
    %v5535 = vpop.f32.mrf.mxu0
    %v5536 = vadd.f32 %v5523, %v5535
    %v5537 = vpop.f32.mrf.mxu0
    %5538 = vdwg.mxu0
    %5539 = vmatpush.bf16.msra.mxu0 %v4535
    %5540 = vmatpush.bf16.msra.mxu0 %v4528
    %5541 = vmatpush.bf16.msra.mxu0 %v4521
    %5542 = vmatpush.bf16.msra.mxu0 %v4514
    %5543 = vmatpush.bf16.msra.mxu0 %v4507
    %5544 = vmatpush.bf16.msra.mxu0 %v4500
    %5545 = vmatpush.bf16.msra.mxu0 %v4493
    %5546 = vmatpush.bf16.msra.mxu0 %v4486
    %5547 = vmatmul.bf16.gmra.mxu0 %v2878
    %v5548 = vpop.f32.mrf.mxu0
    %v5549 = vadd.f32 %v5536, %v5548
    %v5550 = vpop.f32.mrf.mxu0
    %5551 = vdwg.mxu0
    %5552 = vmatpush.bf16.msra.mxu0 %v4591
    %5553 = vmatpush.bf16.msra.mxu0 %v4584
    %5554 = vmatpush.bf16.msra.mxu0 %v4577
    %5555 = vmatpush.bf16.msra.mxu0 %v4570
    %5556 = vmatpush.bf16.msra.mxu0 %v4563
    %5557 = vmatpush.bf16.msra.mxu0 %v4556
    %5558 = vmatpush.bf16.msra.mxu0 %v4549
    %5559 = vmatpush.bf16.msra.mxu0 %v4542
    %5560 = vmatmul.bf16.gmra.mxu0 %v2879
    %v5561 = vpop.f32.mrf.mxu0
    %v5562 = vadd.f32 %v5549, %v5561
    %v5563 = vpop.f32.mrf.mxu0
    %5564 = vdwg.mxu0
    %5565 = vmatpush.bf16.msra.mxu0 %v4647
    %5566 = vmatpush.bf16.msra.mxu0 %v4640
    %5567 = vmatpush.bf16.msra.mxu0 %v4633
    %5568 = vmatpush.bf16.msra.mxu0 %v4626
    %5569 = vmatpush.bf16.msra.mxu0 %v4619
    %5570 = vmatpush.bf16.msra.mxu0 %v4612
    %5571 = vmatpush.bf16.msra.mxu0 %v4605
    %5572 = vmatpush.bf16.msra.mxu0 %v4598
    %5573 = vmatmul.bf16.gmra.mxu0 %v2880
    %v5574 = vpop.f32.mrf.mxu0
    %v5575 = vadd.f32 %v5562, %v5574
    %v5576 = vpop.f32.mrf.mxu0
    %5577 = vdwg.mxu0
    %5578 = vmatpush.bf16.msra.mxu0 %v4703
    %5579 = vmatpush.bf16.msra.mxu0 %v4696
    %5580 = vmatpush.bf16.msra.mxu0 %v4689
    %5581 = vmatpush.bf16.msra.mxu0 %v4682
    %5582 = vmatpush.bf16.msra.mxu0 %v4675
    %5583 = vmatpush.bf16.msra.mxu0 %v4668
    %5584 = vmatpush.bf16.msra.mxu0 %v4661
    %5585 = vmatpush.bf16.msra.mxu0 %v4654
    %5586 = vmatmul.bf16.gmra.mxu0 %v2881
    %v5587 = vpop.f32.mrf.mxu0
    %v5588 = vadd.f32 %v5575, %v5587
    %v5589 = vpop.f32.mrf.mxu0
    %5590 = vdwg.mxu0
    %5591 = vmatpush.bf16.msra.mxu0 0
    %5592 = vmatpush.bf16.msra.mxu0 0
    %5593 = vmatpush.bf16.msra.mxu0 0
    %5594 = vmatpush.bf16.msra.mxu0 0
    %5595 = vmatpush.bf16.msra.mxu0 0
    %5596 = vmatpush.bf16.msra.mxu0 0
    %5597 = vmatpush.bf16.msra.mxu0 0
    %5598 = vmatpush.bf16.msra.mxu0 %v4710
    %5599 = vmatmul.bf16.gmra.mxu0 %v5056
    %v5600 = vpop.f32.mrf.mxu0
    %v5601 = vadd.f32 %v5588, %v5600
    %v5602 = vpop.f32.mrf.mxu0
    %5603 = vdwg.mxu0
    %5604 = vmatpush.bf16.msra.mxu0 %v4424
    %5605 = vmatpush.bf16.msra.mxu0 %v4417
    %5606 = vmatpush.bf16.msra.mxu0 %v4410
    %5607 = vmatpush.bf16.msra.mxu0 %v4403
    %5608 = vmatpush.bf16.msra.mxu0 %v4396
    %5609 = vmatpush.bf16.msra.mxu0 %v4389
    %5610 = vmatpush.bf16.msra.mxu0 %v4382
    %5611 = vmatpush.bf16.msra.mxu0 %v4375
    %5612 = vmatmul.bf16.gmra.mxu0 %v2876
    %v5613 = vpop.f32.mrf.mxu0
    %v5614 = vadd.f32 %v3283, %v5613
    %v5615 = vpop.f32.mrf.mxu0
    %5616 = vdwg.mxu0
    %5617 = vmatpush.bf16.msra.mxu0 %v4480
    %5618 = vmatpush.bf16.msra.mxu0 %v4473
    %5619 = vmatpush.bf16.msra.mxu0 %v4466
    %5620 = vmatpush.bf16.msra.mxu0 %v4459
    %5621 = vmatpush.bf16.msra.mxu0 %v4452
    %5622 = vmatpush.bf16.msra.mxu0 %v4445
    %5623 = vmatpush.bf16.msra.mxu0 %v4438
    %5624 = vmatpush.bf16.msra.mxu0 %v4431
    %5625 = vmatmul.bf16.gmra.mxu0 %v2877
    %v5626 = vpop.f32.mrf.mxu0
    %v5627 = vadd.f32 %v5614, %v5626
    %v5628 = vpop.f32.mrf.mxu0
    %5629 = vdwg.mxu0
    %5630 = vmatpush.bf16.msra.mxu0 %v4536
    %5631 = vmatpush.bf16.msra.mxu0 %v4529
    %5632 = vmatpush.bf16.msra.mxu0 %v4522
    %5633 = vmatpush.bf16.msra.mxu0 %v4515
    %5634 = vmatpush.bf16.msra.mxu0 %v4508
    %5635 = vmatpush.bf16.msra.mxu0 %v4501
    %5636 = vmatpush.bf16.msra.mxu0 %v4494
    %5637 = vmatpush.bf16.msra.mxu0 %v4487
    %5638 = vmatmul.bf16.gmra.mxu0 %v2878
    %v5639 = vpop.f32.mrf.mxu0
    %v5640 = vadd.f32 %v5627, %v5639
    %v5641 = vpop.f32.mrf.mxu0
    %5642 = vdwg.mxu0
    %5643 = vmatpush.bf16.msra.mxu0 %v4592
    %5644 = vmatpush.bf16.msra.mxu0 %v4585
    %5645 = vmatpush.bf16.msra.mxu0 %v4578
    %5646 = vmatpush.bf16.msra.mxu0 %v4571
    %5647 = vmatpush.bf16.msra.mxu0 %v4564
    %5648 = vmatpush.bf16.msra.mxu0 %v4557
    %5649 = vmatpush.bf16.msra.mxu0 %v4550
    %5650 = vmatpush.bf16.msra.mxu0 %v4543
    %5651 = vmatmul.bf16.gmra.mxu0 %v2879
    %v5652 = vpop.f32.mrf.mxu0
    %v5653 = vadd.f32 %v5640, %v5652
    %v5654 = vpop.f32.mrf.mxu0
    %5655 = vdwg.mxu0
    %5656 = vmatpush.bf16.msra.mxu0 %v4648
    %5657 = vmatpush.bf16.msra.mxu0 %v4641
    %5658 = vmatpush.bf16.msra.mxu0 %v4634
    %5659 = vmatpush.bf16.msra.mxu0 %v4627
    %5660 = vmatpush.bf16.msra.mxu0 %v4620
    %5661 = vmatpush.bf16.msra.mxu0 %v4613
    %5662 = vmatpush.bf16.msra.mxu0 %v4606
    %5663 = vmatpush.bf16.msra.mxu0 %v4599
    %5664 = vmatmul.bf16.gmra.mxu0 %v2880
    %v5665 = vpop.f32.mrf.mxu0
    %v5666 = vadd.f32 %v5653, %v5665
    %v5667 = vpop.f32.mrf.mxu0
    %5668 = vdwg.mxu0
    %5669 = vmatpush.bf16.msra.mxu0 %v4704
    %5670 = vmatpush.bf16.msra.mxu0 %v4697
    %5671 = vmatpush.bf16.msra.mxu0 %v4690
    %5672 = vmatpush.bf16.msra.mxu0 %v4683
    %5673 = vmatpush.bf16.msra.mxu0 %v4676
    %5674 = vmatpush.bf16.msra.mxu0 %v4669
    %5675 = vmatpush.bf16.msra.mxu0 %v4662
    %5676 = vmatpush.bf16.msra.mxu0 %v4655
    %5677 = vmatmul.bf16.gmra.mxu0 %v2881
    %v5678 = vpop.f32.mrf.mxu0
    %v5679 = vadd.f32 %v5666, %v5678
    %v5680 = vpop.f32.mrf.mxu0
    %5681 = vdwg.mxu0
    %5682 = vmatpush.bf16.msra.mxu0 0
    %5683 = vmatpush.bf16.msra.mxu0 0
    %5684 = vmatpush.bf16.msra.mxu0 0
    %5685 = vmatpush.bf16.msra.mxu0 0
    %5686 = vmatpush.bf16.msra.mxu0 0
    %5687 = vmatpush.bf16.msra.mxu0 0
    %5688 = vmatpush.bf16.msra.mxu0 0
    %5689 = vmatpush.bf16.msra.mxu0 %v4711
    %5690 = vmatmul.bf16.gmra.mxu0 %v5056
    %v5691 = vpop.f32.mrf.mxu0
    %v5692 = vadd.f32 %v5679, %v5691
    %v5693 = vpop.f32.mrf.mxu0
    %5694 = vdwg.mxu0
    %v5695 = vmax.f32 %v5146, 0.0
    %v5696 = vmax.f32 %v5237, 0.0
    %v5697 = vmax.f32 %v5328, 0.0
    %v5698 = vmax.f32 %v5419, 0.0
    %v5699 = vmax.f32 %v5510, 0.0
    %v5700 = vmax.f32 %v5601, 0.0
    %v5701 = vmax.f32 %v5692, 0.0
    %v5702 = vpack.c.bf16 %v5695, %v5695
    %v5703 = vpack.c.bf16 %v5696, %v5696
    %v5704 = vpack.c.bf16 %v5697, %v5697
    %v5705 = vpack.c.bf16 %v5698, %v5698
    %v5706 = vpack.c.bf16 %v5699, %v5699
    %v5707 = vpack.c.bf16 %v5700, %v5700
    %v5708 = vpack.c.bf16 %v5701, %v5701
    %v5709 = vld [vmem:[%s5] sm:$0xf]
    %v5710 = vld [vmem:[%s5 + $0x4] sm:$0xf]
    %v5711 = vld [vmem:[%s5 + $0x8] sm:$0xf]
    %v5712 = vld [vmem:[%s5 + $0xc] sm:$0xf]
    %v5713 = vld [vmem:[%s5 + $0x10] sm:$0xf]
    %v5714 = vld [vmem:[%s5 + $0x14] sm:$0xf]
    %v5715 = vld [vmem:[%s5 + $0x18] sm:$0xf]
    %v5716 = vld [vmem:[%s5 + $0x1c] sm:$0xf]
    %v5717 = vld [vmem:[%s5 + $0x20] sm:$0xf]
    %v5718 = vld [vmem:[%s5 + $0x24] sm:$0xf]
    %v5719 = vld [vmem:[%s5 + $0x28] sm:$0xf]
    %v5720 = vld [vmem:[%s5 + $0x2c] sm:$0xf]
    %v5721 = vld [vmem:[%s5 + $0x30] sm:$0xf]
    %v5722 = vld [vmem:[%s5 + $0x34] sm:$0xf]
    %v5723 = vld [vmem:[%s5 + $0x38] sm:$0xf]
    %v5724 = vld [vmem:[%s5 + $0x3c] sm:$0xf]
    %v5725 = vld [vmem:[%s5 + $0x40] sm:$0xf]
    %v5726 = vld [vmem:[%s5 + $0x44] sm:$0xf]
    %v5727 = vld [vmem:[%s5 + $0x48] sm:$0xf]
    %v5728 = vld [vmem:[%s5 + $0x4c] sm:$0xf]
    %v5729 = vld [vmem:[%s5 + $0x50] sm:$0xf]
    %v5730 = vld [vmem:[%s5 + $0x54] sm:$0xf]
    %v5731 = vld [vmem:[%s5 + $0x58] sm:$0xf]
    %v5732 = vld [vmem:[%s5 + $0x5c] sm:$0xf]
    %v5733 = vld [vmem:[%s5 + $0x60] sm:$0xf]
    %v5734 = vld [vmem:[%s5 + $0x64] sm:$0xf]
    %v5735 = vld [vmem:[%s5 + $0x68] sm:$0xf]
    %v5736 = vld [vmem:[%s5 + $0x6c] sm:$0xf]
    %v5737 = vld [vmem:[%s5 + $0x70] sm:$0xf]
    %v5738 = vld [vmem:[%s5 + $0x74] sm:$0xf]
    %v5739 = vld [vmem:[%s5 + $0x78] sm:$0xf]
    %v5740 = vld [vmem:[%s5 + $0x7c] sm:$0xf]
    %v5741 = vld [vmem:[%s5 + $0x80] sm:$0xf]
    %v5742 = vld [vmem:[%s5 + $0x84] sm:$0xf]
    %v5743 = vld [vmem:[%s5 + $0x88] sm:$0xf]
    %v5744 = vld [vmem:[%s5 + $0x8c] sm:$0xf]
    %v5745 = vld [vmem:[%s5 + $0x90] sm:$0xf]
    %v5746 = vld [vmem:[%s5 + $0x94] sm:$0xf]
    %v5747 = vld [vmem:[%s5 + $0x98] sm:$0xf]
    %v5748 = vld [vmem:[%s5 + $0x9c] sm:$0xf]
    %v5749 = vld [vmem:[%s5 + $0xa0] sm:$0xf]
    %v5750 = vld [vmem:[%s5 + $0xa4] sm:$0xf]
    %v5751 = vld [vmem:[%s5 + $0xa8] sm:$0xf]
    %v5752 = vld [vmem:[%s5 + $0xac] sm:$0xf]
    %v5753 = vld [vmem:[%s5 + $0xb0] sm:$0xf]
    %v5754 = vld [vmem:[%s5 + $0xb4] sm:$0xf]
    %v5755 = vld [vmem:[%s5 + $0xb8] sm:$0xf]
    %v5756 = vld [vmem:[%s5 + $0xbc] sm:$0xf]
    %v5757 = vld [vmem:[%s5 + $0xc0] sm:$0xf]
    %v5758 = vld [vmem:[%s5 + $0xc4] sm:$0xf]
    %v5759 = vld [vmem:[%s5 + $0xc8] sm:$0xf]
    %v5760 = vld [vmem:[%s5 + $0xcc] sm:$0xf]
    %v5761 = vld [vmem:[%s5 + $0xd0] sm:$0xf]
    %v5762 = vld [vmem:[%s5 + $0xd4] sm:$0xf]
    %v5763 = vld [vmem:[%s5 + $0xd8] sm:$0xf]
    %v5764 = vld [vmem:[%s5 + $0xdc] sm:$0xf]
    %v5765 = vld [vmem:[%s5 + $0xe0] sm:$0xf]
    %v5766 = vld [vmem:[%s5 + $0xe4] sm:$0xf]
    %v5767 = vld [vmem:[%s5 + $0xe8] sm:$0xf]
    %v5768 = vld [vmem:[%s5 + $0xec] sm:$0xf]
    %v5769 = vld [vmem:[%s5 + $0xf0] sm:$0xf]
    %v5770 = vld [vmem:[%s5 + $0xf4] sm:$0xf]
    %v5771 = vld [vmem:[%s5 + $0xf8] sm:$0xf]
    %v5772 = vld [vmem:[%s5 + $0xfc] sm:$0xf]
    %v5773 = vld [vmem:[%s5 + $0x100] sm:$0xf]
    %v5774 = vld [vmem:[%s5 + $0x104] sm:$0xf]
    %v5775 = vld [vmem:[%s5 + $0x108] sm:$0xf]
    %v5776 = vld [vmem:[%s5 + $0x10c] sm:$0xf]
    %v5777 = vld [vmem:[%s5 + $0x110] sm:$0xf]
    %v5778 = vld [vmem:[%s5 + $0x114] sm:$0xf]
    %v5779 = vld [vmem:[%s5 + $0x118] sm:$0xf]
    %v5780 = vld [vmem:[%s5 + $0x11c] sm:$0xf]
    %v5781 = vld [vmem:[%s5 + $0x120] sm:$0xf]
    %v5782 = vld [vmem:[%s5 + $0x124] sm:$0xf]
    %v5783 = vld [vmem:[%s5 + $0x128] sm:$0xf]
    %v5784 = vld [vmem:[%s5 + $0x12c] sm:$0xf]
    %v5785 = vld [vmem:[%s5 + $0x130] sm:$0xf]
    %v5786 = vld [vmem:[%s5 + $0x134] sm:$0xf]
    %v5787 = vld [vmem:[%s5 + $0x138] sm:$0xf]
    %v5788 = vld [vmem:[%s5 + $0x13c] sm:$0xf]
    %v5789 = vld [vmem:[%s5 + $0x140] sm:$0xf]
    %v5790 = vld [vmem:[%s5 + $0x144] sm:$0xf]
    %v5791 = vld [vmem:[%s5 + $0x148] sm:$0xf]
    %v5792 = vld [vmem:[%s5 + $0x14c] sm:$0xf]
    %v5793 = vld [vmem:[%s5 + $0x150] sm:$0xf]
    %v5794 = vld [vmem:[%s5 + $0x154] sm:$0xf]
    %v5795 = vld [vmem:[%s5 + $0x158] sm:$0xf]
    %v5796 = vld [vmem:[%s5 + $0x15c] sm:$0xf]
    %v5797 = vld [vmem:[%s5 + $0x160] sm:$0xf]
    %v5798 = vld [vmem:[%s5 + $0x164] sm:$0xf]
    %v5799 = vld [vmem:[%s5 + $0x168] sm:$0xf]
    %v5800 = vld [vmem:[%s5 + $0x16c] sm:$0xf]
    %v5801 = vld [vmem:[%s5 + $0x170] sm:$0xf]
    %v5802 = vld [vmem:[%s5 + $0x174] sm:$0xf]
    %v5803 = vld [vmem:[%s5 + $0x178] sm:$0xf]
    %v5804 = vld [vmem:[%s5 + $0x17c] sm:$0xf]
    %v5805 = vld [vmem:[%s5 + $0x180] sm:$0xf]
    %v5806 = vld [vmem:[%s5 + $0x184] sm:$0xf]
    %v5807 = vld [vmem:[%s6] sm:$0x1]
    %v5809 = vperm.slane %v5807, 0
    %v5909 = vunpack.c.l.b16 %v5709
    %v5910 = vunpack.c.l.b16 %v5710
    %v5911 = vunpack.c.l.b16 %v5711
    %v5912 = vunpack.c.l.b16 %v5712
    %v5913 = vunpack.c.l.b16 %v5713
    %v5914 = vunpack.c.l.b16 %v5714
    %v5915 = vunpack.c.l.b16 %v5715
    %v5916 = vunpack.c.l.b16 %v5716
    %v5917 = vunpack.c.l.b16 %v5717
    %v5918 = vunpack.c.l.b16 %v5718
    %v5919 = vunpack.c.l.b16 %v5719
    %v5920 = vunpack.c.l.b16 %v5720
    %v5921 = vunpack.c.l.b16 %v5721
    %v5922 = vunpack.c.l.b16 %v5722
    %v5923 = vunpack.c.l.b16 %v5723
    %v5924 = vunpack.c.l.b16 %v5724
    %v5925 = vunpack.c.l.b16 %v5725
    %v5926 = vunpack.c.l.b16 %v5726
    %v5927 = vunpack.c.l.b16 %v5727
    %v5928 = vunpack.c.l.b16 %v5728
    %v5929 = vunpack.c.l.b16 %v5729
    %v5930 = vunpack.c.l.b16 %v5730
    %v5931 = vunpack.c.l.b16 %v5731
    %v5932 = vunpack.c.l.b16 %v5732
    %v5933 = vunpack.c.l.b16 %v5733
    %v5934 = vunpack.c.l.b16 %v5734
    %v5935 = vunpack.c.l.b16 %v5735
    %v5936 = vunpack.c.l.b16 %v5736
    %v5937 = vunpack.c.l.b16 %v5737
    %v5938 = vunpack.c.l.b16 %v5738
    %v5939 = vunpack.c.l.b16 %v5739
    %v5940 = vunpack.c.l.b16 %v5740
    %v5941 = vunpack.c.l.b16 %v5741
    %v5942 = vunpack.c.l.b16 %v5742
    %v5943 = vunpack.c.l.b16 %v5743
    %v5944 = vunpack.c.l.b16 %v5744
    %v5945 = vunpack.c.l.b16 %v5745
    %v5946 = vunpack.c.l.b16 %v5746
    %v5947 = vunpack.c.l.b16 %v5747
    %v5948 = vunpack.c.l.b16 %v5748
    %v5949 = vunpack.c.l.b16 %v5749
    %v5950 = vunpack.c.l.b16 %v5750
    %v5951 = vunpack.c.l.b16 %v5751
    %v5952 = vunpack.c.l.b16 %v5752
    %v5953 = vunpack.c.l.b16 %v5753
    %v5954 = vunpack.c.l.b16 %v5754
    %v5955 = vunpack.c.l.b16 %v5755
    %v5956 = vunpack.c.l.b16 %v5756
    %v5957 = vunpack.c.l.b16 %v5757
    %v5958 = vunpack.c.l.b16 %v5758
    %v5959 = vunpack.c.l.b16 %v5759
    %v5960 = vunpack.c.l.b16 %v5760
    %v5961 = vunpack.c.l.b16 %v5761
    %v5962 = vunpack.c.l.b16 %v5762
    %v5963 = vunpack.c.l.b16 %v5763
    %v5964 = vunpack.c.l.b16 %v5764
    %v5965 = vunpack.c.l.b16 %v5765
    %v5966 = vunpack.c.l.b16 %v5766
    %v5967 = vunpack.c.l.b16 %v5767
    %v5968 = vunpack.c.l.b16 %v5768
    %v5969 = vunpack.c.l.b16 %v5769
    %v5970 = vunpack.c.l.b16 %v5770
    %v5971 = vunpack.c.l.b16 %v5771
    %v5972 = vunpack.c.l.b16 %v5772
    %v5973 = vunpack.c.l.b16 %v5773
    %v5974 = vunpack.c.l.b16 %v5774
    %v5975 = vunpack.c.l.b16 %v5775
    %v5976 = vunpack.c.l.b16 %v5776
    %v5977 = vunpack.c.l.b16 %v5777
    %v5978 = vunpack.c.l.b16 %v5778
    %v5979 = vunpack.c.l.b16 %v5779
    %v5980 = vunpack.c.l.b16 %v5780
    %v5981 = vunpack.c.l.b16 %v5781
    %v5982 = vunpack.c.l.b16 %v5782
    %v5983 = vunpack.c.l.b16 %v5783
    %v5984 = vunpack.c.l.b16 %v5784
    %v5985 = vunpack.c.l.b16 %v5785
    %v5986 = vunpack.c.l.b16 %v5786
    %v5987 = vunpack.c.l.b16 %v5787
    %v5988 = vunpack.c.l.b16 %v5788
    %v5989 = vunpack.c.l.b16 %v5789
    %v5990 = vunpack.c.l.b16 %v5790
    %v5991 = vunpack.c.l.b16 %v5791
    %v5992 = vunpack.c.l.b16 %v5792
    %v5993 = vunpack.c.l.b16 %v5793
    %v5994 = vunpack.c.l.b16 %v5794
    %v5995 = vunpack.c.l.b16 %v5795
    %v5996 = vunpack.c.l.b16 %v5796
    %v5997 = vunpack.c.l.b16 %v5797
    %v5998 = vunpack.c.l.b16 %v5798
    %v5999 = vunpack.c.l.b16 %v5799
    %v6000 = vunpack.c.l.b16 %v5800
    %v6001 = vunpack.c.l.b16 %v5801
    %v6002 = vunpack.c.l.b16 %v5802
    %v6003 = vunpack.c.l.b16 %v5803
    %v6004 = vunpack.c.l.b16 %v5804
    %v6005 = vunpack.c.l.b16 %v5805
    %v6006 = vunpack.c.l.b16 %v5806
    %v6007 = vpack.c.b16 %v5910, %v5909
    %v6008 = vpack.c.b16 %v5912, %v5911
    %v6009 = vpack.c.b16 %v5914, %v5913
    %v6010 = vpack.c.b16 %v5916, %v5915
    %v6011 = vpack.c.b16 %v5918, %v5917
    %v6012 = vpack.c.b16 %v5920, %v5919
    %v6013 = vpack.c.b16 %v5922, %v5921
    %v6014 = vpack.c.b16 %v5924, %v5923
    %v6015 = vpack.c.b16 %v5926, %v5925
    %v6016 = vpack.c.b16 %v5928, %v5927
    %v6017 = vpack.c.b16 %v5930, %v5929
    %v6018 = vpack.c.b16 %v5932, %v5931
    %v6019 = vpack.c.b16 %v5934, %v5933
    %v6020 = vpack.c.b16 %v5936, %v5935
    %v6021 = vpack.c.b16 %v5938, %v5937
    %v6022 = vpack.c.b16 %v5940, %v5939
    %v6023 = vpack.c.b16 %v5942, %v5941
    %v6024 = vpack.c.b16 %v5944, %v5943
    %v6025 = vpack.c.b16 %v5946, %v5945
    %v6026 = vpack.c.b16 %v5948, %v5947
    %v6027 = vpack.c.b16 %v5950, %v5949
    %v6028 = vpack.c.b16 %v5952, %v5951
    %v6029 = vpack.c.b16 %v5954, %v5953
    %v6030 = vpack.c.b16 %v5956, %v5955
    %v6031 = vpack.c.b16 %v5958, %v5957
    %v6032 = vpack.c.b16 %v5960, %v5959
    %v6033 = vpack.c.b16 %v5962, %v5961
    %v6034 = vpack.c.b16 %v5964, %v5963
    %v6035 = vpack.c.b16 %v5966, %v5965
    %v6036 = vpack.c.b16 %v5968, %v5967
    %v6037 = vpack.c.b16 %v5970, %v5969
    %v6038 = vpack.c.b16 %v5972, %v5971
    %v6039 = vpack.c.b16 %v5974, %v5973
    %v6040 = vpack.c.b16 %v5976, %v5975
    %v6041 = vpack.c.b16 %v5978, %v5977
    %v6042 = vpack.c.b16 %v5980, %v5979
    %v6043 = vpack.c.b16 %v5982, %v5981
    %v6044 = vpack.c.b16 %v5984, %v5983
    %v6045 = vpack.c.b16 %v5986, %v5985
    %v6046 = vpack.c.b16 %v5988, %v5987
    %v6047 = vpack.c.b16 %v5990, %v5989
    %v6048 = vpack.c.b16 %v5992, %v5991
    %v6049 = vpack.c.b16 %v5994, %v5993
    %v6050 = vpack.c.b16 %v5996, %v5995
    %v6051 = vpack.c.b16 %v5998, %v5997
    %v6052 = vpack.c.b16 %v6000, %v5999
    %v6053 = vpack.c.b16 %v6002, %v6001
    %v6054 = vpack.c.b16 %v6004, %v6003
    %v6055 = vpack.c.b16 %v6006, %v6005
    %v6106 = vsel %vm2228, %v5708, 0
    %6108 = vmatpush.bf16.msra.mxu0 %v6014
    %6109 = vmatpush.bf16.msra.mxu0 %v6013
    %6110 = vmatpush.bf16.msra.mxu0 %v6012
    %6111 = vmatpush.bf16.msra.mxu0 %v6011
    %6112 = vmatpush.bf16.msra.mxu0 %v6010
    %6113 = vmatpush.bf16.msra.mxu0 %v6009
    %6114 = vmatpush.bf16.msra.mxu0 %v6008
    %6115 = vmatpush.bf16.msra.mxu0 %v6007
    %6116 = vmatmul.bf16.gmra.mxu0 %v5702
    %v6117 = vpop.f32.mrf.mxu0
    %v6118 = vadd.f32 %v5809, %v6117
    %v6119 = vpop.f32.mrf.mxu0
    %6120 = vdwg.mxu0
    %6121 = vmatpush.bf16.msra.mxu0 %v6022
    %6122 = vmatpush.bf16.msra.mxu0 %v6021
    %6123 = vmatpush.bf16.msra.mxu0 %v6020
    %6124 = vmatpush.bf16.msra.mxu0 %v6019
    %6125 = vmatpush.bf16.msra.mxu0 %v6018
    %6126 = vmatpush.bf16.msra.mxu0 %v6017
    %6127 = vmatpush.bf16.msra.mxu0 %v6016
    %6128 = vmatpush.bf16.msra.mxu0 %v6015
    %6129 = vmatmul.bf16.gmra.mxu0 %v5703
    %v6130 = vpop.f32.mrf.mxu0
    %v6131 = vadd.f32 %v6118, %v6130
    %v6132 = vpop.f32.mrf.mxu0
    %6133 = vdwg.mxu0
    %6134 = vmatpush.bf16.msra.mxu0 %v6030
    %6135 = vmatpush.bf16.msra.mxu0 %v6029
    %6136 = vmatpush.bf16.msra.mxu0 %v6028
    %6137 = vmatpush.bf16.msra.mxu0 %v6027
    %6138 = vmatpush.bf16.msra.mxu0 %v6026
    %6139 = vmatpush.bf16.msra.mxu0 %v6025
    %6140 = vmatpush.bf16.msra.mxu0 %v6024
    %6141 = vmatpush.bf16.msra.mxu0 %v6023
    %6142 = vmatmul.bf16.gmra.mxu0 %v5704
    %v6143 = vpop.f32.mrf.mxu0
    %v6144 = vadd.f32 %v6131, %v6143
    %v6145 = vpop.f32.mrf.mxu0
    %6146 = vdwg.mxu0
    %6147 = vmatpush.bf16.msra.mxu0 %v6038
    %6148 = vmatpush.bf16.msra.mxu0 %v6037
    %6149 = vmatpush.bf16.msra.mxu0 %v6036
    %6150 = vmatpush.bf16.msra.mxu0 %v6035
    %6151 = vmatpush.bf16.msra.mxu0 %v6034
    %6152 = vmatpush.bf16.msra.mxu0 %v6033
    %6153 = vmatpush.bf16.msra.mxu0 %v6032
    %6154 = vmatpush.bf16.msra.mxu0 %v6031
    %6155 = vmatmul.bf16.gmra.mxu0 %v5705
    %v6156 = vpop.f32.mrf.mxu0
    %v6157 = vadd.f32 %v6144, %v6156
    %v6158 = vpop.f32.mrf.mxu0
    %6159 = vdwg.mxu0
    %6160 = vmatpush.bf16.msra.mxu0 %v6046
    %6161 = vmatpush.bf16.msra.mxu0 %v6045
    %6162 = vmatpush.bf16.msra.mxu0 %v6044
    %6163 = vmatpush.bf16.msra.mxu0 %v6043
    %6164 = vmatpush.bf16.msra.mxu0 %v6042
    %6165 = vmatpush.bf16.msra.mxu0 %v6041
    %6166 = vmatpush.bf16.msra.mxu0 %v6040
    %6167 = vmatpush.bf16.msra.mxu0 %v6039
    %6168 = vmatmul.bf16.gmra.mxu0 %v5706
    %v6169 = vpop.f32.mrf.mxu0
    %v6170 = vadd.f32 %v6157, %v6169
    %v6171 = vpop.f32.mrf.mxu0
    %6172 = vdwg.mxu0
    %6173 = vmatpush.bf16.msra.mxu0 %v6054
    %6174 = vmatpush.bf16.msra.mxu0 %v6053
    %6175 = vmatpush.bf16.msra.mxu0 %v6052
    %6176 = vmatpush.bf16.msra.mxu0 %v6051
    %6177 = vmatpush.bf16.msra.mxu0 %v6050
    %6178 = vmatpush.bf16.msra.mxu0 %v6049
    %6179 = vmatpush.bf16.msra.mxu0 %v6048
    %6180 = vmatpush.bf16.msra.mxu0 %v6047
    %6181 = vmatmul.bf16.gmra.mxu0 %v5707
    %v6182 = vpop.f32.mrf.mxu0
    %v6183 = vadd.f32 %v6170, %v6182
    %v6184 = vpop.f32.mrf.mxu0
    %6185 = vdwg.mxu0
    %6186 = vmatpush.bf16.msra.mxu0 0
    %6187 = vmatpush.bf16.msra.mxu0 0
    %6188 = vmatpush.bf16.msra.mxu0 0
    %6189 = vmatpush.bf16.msra.mxu0 0
    %6190 = vmatpush.bf16.msra.mxu0 0
    %6191 = vmatpush.bf16.msra.mxu0 0
    %6192 = vmatpush.bf16.msra.mxu0 0
    %6193 = vmatpush.bf16.msra.mxu0 %v6055
    %6194 = vmatmul.bf16.gmra.mxu0 %v6106
    %v6195 = vpop.f32.mrf.mxu0
    %v6196 = vadd.f32 %v6183, %v6195
    %v6197 = vpop.f32.mrf.mxu0
    %6198 = vdwg.mxu0
    %6199 = vst [vmem:[#allocation2] sm:$0xff] %v6196
    // Predicated region
    $region30: #{mlp_forward.1} parent=1 // pred_check
      _
    $region31: #{mlp_forward.1} parent=1 // pred_check_branch
      %6201 = sbr.rel (0) target = $region33
    $region32: #{mlp_forward.1} parent=1 // pred_region
      %6203 = vsyncadd [#allocation3], 0
      %s6205 = sshll.u32 [#allocation2], 4
      %s6206 = int_to_ptr.vmem [resolvable:$true] %s6205
      %s6207 = sshll.u32 %s7, 4
      %s6208 = int_to_ptr.hbm [resolvable:$true] %s6207
      %6210 = dma.vmem_to_hbm [thread:$0]  %s6206, 128, %s6208, [#allocation3]
    $region33: #{mlp_forward.1} parent=1 // pred_fallthru
      _
    // Predicated region
    $region34: #{mlp_forward.1} parent=1 // pred_check
      _
    $region35: #{mlp_forward.1} parent=1 // pred_check_branch
      %6212 = sbr.rel (0) target = $region37
    $region36: #{mlp_forward.1} parent=1 // pred_region
      %6214 = dma.done [#allocation3], 128
    $region37: #{mlp_forward.1} parent=1 // pred_fallthru
      _
    %6215 = vsyncpa [#allocation3], 1

</llo_original>
